<compile_context>
chip_gen: v6e
topology: v6e:2x2x1
jax: 0.10.0
libtpu: 0.0.40
codegen_flags: <defaults>
</compile_context>

<pallas_src>
import jax
import jax.numpy as jnp
from jax.experimental import pallas as pl
from jax.experimental.pallas import tpu as pltpu

# Small, module-consistent shapes.
B, S, D, M, H, L = 2, 8, 32, 64, 4, 2   # batch, seq_length, hidden, mlp_dim, heads, layers
HD = D // H
ACT_EPS = 0.01
GATE_SCALE = 10.0
GATE_CENTER = 30.0
LN_EPS = 1e-5


def _layernorm(x, w, b):
    # Single-pass (E[x^2] - mu^2) variance: both reductions issue independently.
    mu = jnp.mean(x, axis=-1, keepdims=True)
    ms = jnp.mean(x * x, axis=-1, keepdims=True)
    var = ms - mu * mu
    return (x - mu) * jax.lax.rsqrt(var + LN_EPS) * w + b


def _gelu(x):
    # TODO(synk): PyTorch nn.GELU default is erf-exact; tanh approximation used
    # here since lax.erf has no Mosaic lowering (expect ~1e-3 deviations).
    return jax.nn.gelu(x, approximate=True)


def avit_encoder_kernel(
    x_ref,
    ln1w_ref, ln1b_ref, qkvw_ref, qkvb_ref, projw_ref, projb_ref,
    ln2w_ref, ln2b_ref, fc1w_ref, fc1b_ref, fc2w_ref, fc2b_ref,
    lnfw_ref, lnfb_ref,
    o_ref,
):
    f32 = jnp.float32

    out = x_ref[...]                  # running token state (pos-embedding already added)
    c = r = mask = acc = None         # ACT state; first iteration defines it

    for l in range(L):                # static unroll; all stacked weights resident in VMEM
        first = l == 0
        last = l == L - 1

        ln1_w, ln1_b = ln1w_ref[l], ln1b_ref[l]       # (1, D)
        qkv_w, qkv_b = qkvw_ref[l], qkvb_ref[l]       # (D, 3D), (1, 3D)   [(in, out) layout]
        proj_w, proj_b = projw_ref[l], projb_ref[l]   # (D, D),  (1, D)
        ln2_w, ln2_b = ln2w_ref[l], ln2b_ref[l]
        fc1_w, fc1_b = fc1w_ref[l], fc1b_ref[l]       # (D, M),  (1, M)
        fc2_w, fc2_b = fc2w_ref[l], fc2b_ref[l]       # (M, D),  (1, D)

        # One (B,S,D) mask broadcast per layer, reused at all masking sites;
        # skipped entirely in layer 0 where mask_token == 1.
        mask_bd = None if first else jnp.broadcast_to(mask, (B, S, D))

        def masked(t, _m=mask_bd):
            return t if _m is None else t * _m

        # out.data = out.data * mask_token
        out = masked(out)

        # ---- attention branch: out + SA(ln_1(out) * mask) ----
        # (out is already masked, so the reference's inner x*mask is idempotent.)
        h1 = masked(_layernorm(out, ln1_w, ln1_b))
        qkv = jnp.dot(h1.reshape(B * S, D), qkv_w,
                      preferred_element_type=f32) + qkv_b        # (B*S, 3D)
        qkv3 = qkv.reshape(B, S, 3 * D)

        # Head-batched attention: stack heads into the leading batch dim
        # (index = h*B + b) -> one score matmul, one softmax, one PV matmul.
        q = jnp.concatenate(
            [qkv3[:, :, h * HD:(h + 1) * HD] for h in range(H)], axis=0)
        k = jnp.concatenate(
            [qkv3[:, :, D + h * HD:D + (h + 1) * HD] for h in range(H)], axis=0)
        v = jnp.concatenate(
            [qkv3[:, :, 2 * D + h * HD:2 * D + (h + 1) * HD] for h in range(H)],
            axis=0)                                              # (B*H, S, HD)

        # 1/sqrt(HD) is folded into the Q weights/bias in the wrapper.
        s = jnp.einsum('bqd,bkd->bqk', q, k,
                       preferred_element_type=f32)               # (B*H, S, S)
        s = s - jnp.max(s, axis=-1, keepdims=True)
        p = jnp.exp(s)
        p = p / jnp.sum(p, axis=-1, keepdims=True)               # exact divide (parity)
        ctx = jnp.einsum('bqk,bkd->bqd', p, v,
                         preferred_element_type=f32)             # (B*H, S, HD)

        attn = jnp.concatenate(
            [ctx[h * B:(h + 1) * B] for h in range(H)], axis=-1)  # (B, S, D)
        attn_out = jnp.dot(attn.reshape(B * S, D), proj_w,
                           preferred_element_type=f32) + proj_b
        x1 = out + attn_out.reshape(B, S, D)

        # ---- MLP branch: x1 + MLP(ln_2(x1 * mask) * mask) ----
        # (x1 * mask is NOT redundant: attn_out is nonzero at halted tokens.)
        h2 = masked(_layernorm(masked(x1), ln2_w, ln2_b))
        z1 = _gelu(jnp.dot(h2.reshape(B * S, D), fc1_w,
                           preferred_element_type=f32) + fc1_b)   # (B*S, M)
        z2 = jnp.dot(z1, fc2_w, preferred_element_type=f32) + fc2_b
        block_output = x1 + z2.reshape(B, S, D)

        # ---- ACT bookkeeping (forward_features_act_token) ----
        if last:
            h_gate = jnp.ones((B, S, 1), f32)        # last layer forces h_token = 1
        else:
            h_gate = jax.nn.sigmoid(
                block_output[:, :, 0:1] * GATE_SCALE - GATE_CENTER)

        block_masked = masked(block_output)          # block_output * mask_token
        c = h_gate if first else c + h_gate
        # Strict comparisons mirror the reference: a token landing exactly on
        # 1 - eps contributes to neither delta and R is not decremented.
        reached = (c > 1.0 - ACT_EPS).astype(f32)    # `* mask` folded into block_masked
        not_reached = (c < 1.0 - ACT_EPS).astype(f32)
        if first:                                    # R_token == 1 in layer 0
            acc = block_masked * (reached + h_gate * not_reached)
        else:
            acc = acc + block_masked * (r * reached + h_gate * not_reached)
        if not last:                                 # R/mask/out are dead after the last layer
            r = (1.0 - not_reached * h_gate) if first else (r - not_reached * h_gate)
            mask = not_reached                       # mask_token = c < 1 - eps
            out = block_output                       # out = block_output.clone()

    o_ref[...] = _layernorm(acc, lnfw_ref[...], lnfb_ref[...])


def avit_encoder(x, params):
    (pos, ln1w, ln1b, qkvw, qkvb, projw, projb, ln2w, ln2b,
     fc1w, fc1b, fc2w, fc2b, lnfw, lnfb) = params

    # pos-embedding add + dropout(identity) done outside the kernel (trivially
    # fused XLA op, one fewer resident VMEM input).
    x = x + pos

    # Fold the attention scale 1/sqrt(HD) into the Q rows of the QKV linear
    # (weights are in PyTorch (out, in) layout here), then pre-transpose every
    # matmul weight to (in, out) so the kernel never transposes an rhs.
    scale = 1.0 / (HD ** 0.5)
    qkvw = qkvw.at[:, :D, :].multiply(scale)
    qkvb = qkvb.at[:, :, :D].multiply(scale)
    t = lambda w: jnp.swapaxes(w, -1, -2)

    vmem = lambda: pl.BlockSpec(memory_space=pltpu.MemorySpace.VMEM)
    n_in = 15

    return pl.pallas_call(
        avit_encoder_kernel,
        out_shape=jax.ShapeDtypeStruct((B, S, D), jnp.float32),
        in_specs=[vmem() for _ in range(n_in)],
        out_specs=vmem(),
    )(
        x,
        ln1w, ln1b,
        t(qkvw), qkvb,
        t(projw), projb,
        ln2w, ln2b,
        t(fc1w), fc1b,
        t(fc2w), fc2b,
        lnfw, lnfb,
    )


def init_params(key):
    ks = jax.random.split(key, 5)
    pos = 0.02 * jax.random.normal(ks[0], (1, S, D), jnp.float32)
    # PyTorch nn.Linear weights kept as (out_features, in_features), stacked over layers.
    qkvw = 0.02 * jax.random.normal(ks[1], (L, 3 * D, D), jnp.float32)
    projw = 0.02 * jax.random.normal(ks[2], (L, D, D), jnp.float32)
    fc1w = 0.02 * jax.random.normal(ks[3], (L, M, D), jnp.float32)
    fc2w = 0.02 * jax.random.normal(ks[4], (L, D, M), jnp.float32)
    ln1w = jnp.ones((L, 1, D), jnp.float32)
    ln1b = jnp.zeros((L, 1, D), jnp.float32)
    ln2w = jnp.ones((L, 1, D), jnp.float32)
    ln2b = jnp.zeros((L, 1, D), jnp.float32)
    qkvb = jnp.zeros((L, 1, 3 * D), jnp.float32)
    projb = jnp.zeros((L, 1, D), jnp.float32)
    fc1b = jnp.zeros((L, 1, M), jnp.float32)
    fc2b = jnp.zeros((L, 1, D), jnp.float32)
    lnfw = jnp.ones((1, D), jnp.float32)
    lnfb = jnp.zeros((1, D), jnp.float32)
    return (pos, ln1w, ln1b, qkvw, qkvb, projw, projb, ln2w, ln2b,
            fc1w, fc1b, fc2w, fc2b, lnfw, lnfb)


if __name__ == "__main__":
    key = jax.random.PRNGKey(0)
    kx, kp = jax.random.split(key)
    x = jax.random.normal(kx, (B, S, D), jnp.float32)   # (batch, seq_length, hidden_dim)
    params = init_params(kp)
    y = jax.jit(avit_encoder)(x, params)
    jax.block_until_ready(y)
    assert y.shape == (B, S, D) and y.dtype == jnp.float32
    assert bool(jnp.all(jnp.isfinite(y)))
    print("KERNEL_OK")
</pallas_src>

<mosaic_0001>
module attributes {stable_mosaic.version = 11 : i64} {
  func.func @avit_encoder_kernel(%arg0: memref<2x8x32xf32, #tpu.memory_space<vmem>>, %arg1: memref<2x1x32xf32, #tpu.memory_space<vmem>>, %arg2: memref<2x1x32xf32, #tpu.memory_space<vmem>>, %arg3: memref<2x32x96xf32, #tpu.memory_space<vmem>>, %arg4: memref<2x1x96xf32, #tpu.memory_space<vmem>>, %arg5: memref<2x32x32xf32, #tpu.memory_space<vmem>>, %arg6: memref<2x1x32xf32, #tpu.memory_space<vmem>>, %arg7: memref<2x1x32xf32, #tpu.memory_space<vmem>>, %arg8: memref<2x1x32xf32, #tpu.memory_space<vmem>>, %arg9: memref<2x32x64xf32, #tpu.memory_space<vmem>>, %arg10: memref<2x1x64xf32, #tpu.memory_space<vmem>>, %arg11: memref<2x64x32xf32, #tpu.memory_space<vmem>>, %arg12: memref<2x1x32xf32, #tpu.memory_space<vmem>>, %arg13: memref<1x32xf32, #tpu.memory_space<vmem>>, %arg14: memref<1x32xf32, #tpu.memory_space<vmem>>, %arg15: memref<2x8x32xf32, #tpu.memory_space<vmem>>) attributes {dimension_semantics = [], scalar_prefetch = 0 : i64, scratch_operands = 0 : i64, tpu.core_type = #tpu.core_type<tc>} {
    %c0 = arith.constant 0 : index
    %c0_0 = arith.constant 0 : index
    %c0_1 = arith.constant 0 : index
    %0 = vector.load %arg0[%c0, %c0_0, %c0_1] : memref<2x8x32xf32, #tpu.memory_space<vmem>>, vector<2x8x32xf32>
    %c0_2 = arith.constant 0 : index
    %c0_3 = arith.constant 0 : index
    %c0_4 = arith.constant 0 : index
    %1 = vector.load %arg1[%c0_2, %c0_3, %c0_4] : memref<2x1x32xf32, #tpu.memory_space<vmem>>, vector<1x1x32xf32>
    %2 = vector.shape_cast %1 : vector<1x1x32xf32> to vector<1x32xf32>
    %c0_5 = arith.constant 0 : index
    %c0_6 = arith.constant 0 : index
    %c0_7 = arith.constant 0 : index
    %3 = vector.load %arg2[%c0_5, %c0_6, %c0_7] : memref<2x1x32xf32, #tpu.memory_space<vmem>>, vector<1x1x32xf32>
    %4 = vector.shape_cast %3 : vector<1x1x32xf32> to vector<1x32xf32>
    %c0_8 = arith.constant 0 : index
    %c0_9 = arith.constant 0 : index
    %c0_10 = arith.constant 0 : index
    %5 = vector.load %arg3[%c0_8, %c0_9, %c0_10] : memref<2x32x96xf32, #tpu.memory_space<vmem>>, vector<1x32x96xf32>
    %6 = vector.shape_cast %5 : vector<1x32x96xf32> to vector<32x96xf32>
    %c0_11 = arith.constant 0 : index
    %c0_12 = arith.constant 0 : index
    %c0_13 = arith.constant 0 : index
    %7 = vector.load %arg4[%c0_11, %c0_12, %c0_13] : memref<2x1x96xf32, #tpu.memory_space<vmem>>, vector<1x1x96xf32>
    %8 = vector.shape_cast %7 : vector<1x1x96xf32> to vector<1x96xf32>
    %c0_14 = arith.constant 0 : index
    %c0_15 = arith.constant 0 : index
    %c0_16 = arith.constant 0 : index
    %9 = vector.load %arg5[%c0_14, %c0_15, %c0_16] : memref<2x32x32xf32, #tpu.memory_space<vmem>>, vector<1x32x32xf32>
    %10 = vector.shape_cast %9 : vector<1x32x32xf32> to vector<32x32xf32>
    %c0_17 = arith.constant 0 : index
    %c0_18 = arith.constant 0 : index
    %c0_19 = arith.constant 0 : index
    %11 = vector.load %arg6[%c0_17, %c0_18, %c0_19] : memref<2x1x32xf32, #tpu.memory_space<vmem>>, vector<1x1x32xf32>
    %12 = vector.shape_cast %11 : vector<1x1x32xf32> to vector<1x32xf32>
    %c0_20 = arith.constant 0 : index
    %c0_21 = arith.constant 0 : index
    %c0_22 = arith.constant 0 : index
    %13 = vector.load %arg7[%c0_20, %c0_21, %c0_22] : memref<2x1x32xf32, #tpu.memory_space<vmem>>, vector<1x1x32xf32>
    %14 = vector.shape_cast %13 : vector<1x1x32xf32> to vector<1x32xf32>
    %c0_23 = arith.constant 0 : index
    %c0_24 = arith.constant 0 : index
    %c0_25 = arith.constant 0 : index
    %15 = vector.load %arg8[%c0_23, %c0_24, %c0_25] : memref<2x1x32xf32, #tpu.memory_space<vmem>>, vector<1x1x32xf32>
    %16 = vector.shape_cast %15 : vector<1x1x32xf32> to vector<1x32xf32>
    %c0_26 = arith.constant 0 : index
    %c0_27 = arith.constant 0 : index
    %c0_28 = arith.constant 0 : index
    %17 = vector.load %arg9[%c0_26, %c0_27, %c0_28] : memref<2x32x64xf32, #tpu.memory_space<vmem>>, vector<1x32x64xf32>
    %18 = vector.shape_cast %17 : vector<1x32x64xf32> to vector<32x64xf32>
    %c0_29 = arith.constant 0 : index
    %c0_30 = arith.constant 0 : index
    %c0_31 = arith.constant 0 : index
    %19 = vector.load %arg10[%c0_29, %c0_30, %c0_31] : memref<2x1x64xf32, #tpu.memory_space<vmem>>, vector<1x1x64xf32>
    %20 = vector.shape_cast %19 : vector<1x1x64xf32> to vector<1x64xf32>
    %c0_32 = arith.constant 0 : index
    %c0_33 = arith.constant 0 : index
    %c0_34 = arith.constant 0 : index
    %21 = vector.load %arg11[%c0_32, %c0_33, %c0_34] : memref<2x64x32xf32, #tpu.memory_space<vmem>>, vector<1x64x32xf32>
    %22 = vector.shape_cast %21 : vector<1x64x32xf32> to vector<64x32xf32>
    %c0_35 = arith.constant 0 : index
    %c0_36 = arith.constant 0 : index
    %c0_37 = arith.constant 0 : index
    %23 = vector.load %arg12[%c0_35, %c0_36, %c0_37] : memref<2x1x32xf32, #tpu.memory_space<vmem>>, vector<1x1x32xf32>
    %24 = vector.shape_cast %23 : vector<1x1x32xf32> to vector<1x32xf32>
    %cst = arith.constant dense<0.000000e+00> : vector<2x8xf32>
    %25 = vector.multi_reduction <add>, %0, %cst [2] : vector<2x8x32xf32> to vector<2x8xf32>
    %26 = vector.shape_cast %25 : vector<2x8xf32> to vector<2x8x1xf32>
    %cst_38 = arith.constant 3.200000e+01 : f32
    %27 = vector.broadcast %cst_38 : f32 to vector<2x8x1xf32>
    %28 = arith.divf %26, %27 : vector<2x8x1xf32>
    %29 = arith.mulf %0, %0 : vector<2x8x32xf32>
    %cst_39 = arith.constant dense<0.000000e+00> : vector<2x8xf32>
    %30 = vector.multi_reduction <add>, %29, %cst_39 [2] : vector<2x8x32xf32> to vector<2x8xf32>
    %31 = vector.shape_cast %30 : vector<2x8xf32> to vector<2x8x1xf32>
    %cst_40 = arith.constant 3.200000e+01 : f32
    %32 = vector.broadcast %cst_40 : f32 to vector<2x8x1xf32>
    %33 = arith.divf %31, %32 : vector<2x8x1xf32>
    %34 = arith.mulf %28, %28 : vector<2x8x1xf32>
    %35 = arith.subf %33, %34 : vector<2x8x1xf32>
    %36 = vector.broadcast %28 : vector<2x8x1xf32> to vector<2x8x32xf32>
    %37 = arith.subf %0, %36 : vector<2x8x32xf32>
    %cst_41 = arith.constant 9.99999974E-6 : f32
    %38 = vector.broadcast %cst_41 : f32 to vector<2x8x1xf32>
    %39 = arith.addf %35, %38 : vector<2x8x1xf32>
    %40 = math.rsqrt %39 : vector<2x8x1xf32>
    %41 = vector.broadcast %40 : vector<2x8x1xf32> to vector<2x8x32xf32>
    %42 = arith.mulf %37, %41 : vector<2x8x32xf32>
    %43 = vector.shape_cast %2 : vector<1x32xf32> to vector<1x1x32xf32>
    %44 = vector.broadcast %43 : vector<1x1x32xf32> to vector<2x8x32xf32>
    %45 = arith.mulf %42, %44 : vector<2x8x32xf32>
    %46 = vector.shape_cast %4 : vector<1x32xf32> to vector<1x1x32xf32>
    %47 = vector.broadcast %46 : vector<1x1x32xf32> to vector<2x8x32xf32>
    %48 = arith.addf %45, %47 : vector<2x8x32xf32>
    %49 = vector.shape_cast %48 : vector<2x8x32xf32> to vector<16x32xf32>
    %cst_42 = arith.constant dense<0.000000e+00> : vector<16x96xf32>
    %50 = tpu.matmul %49, %6, %cst_42 {dimension_numbers = #tpu.dot_dimension_numbers<[1], [0], [0], [1], [0, 0, 1, 1], [], []>} : vector<16x32xf32>, vector<32x96xf32>, vector<16x96xf32> -> vector<16x96xf32>
    %51 = vector.broadcast %8 : vector<1x96xf32> to vector<16x96xf32>
    %52 = arith.addf %50, %51 : vector<16x96xf32>
    %53 = vector.shape_cast %52 : vector<16x96xf32> to vector<2x8x96xf32>
    %54 = vector.extract_strided_slice %53 {offsets = [0, 0, 0], sizes = [2, 8, 8], strides = [1, 1, 1]} : vector<2x8x96xf32> to vector<2x8x8xf32>
    %55 = vector.extract_strided_slice %53 {offsets = [0, 0, 8], sizes = [2, 8, 8], strides = [1, 1, 1]} : vector<2x8x96xf32> to vector<2x8x8xf32>
    %56 = vector.extract_strided_slice %53 {offsets = [0, 0, 16], sizes = [2, 8, 8], strides = [1, 1, 1]} : vector<2x8x96xf32> to vector<2x8x8xf32>
    %57 = vector.extract_strided_slice %53 {offsets = [0, 0, 24], sizes = [2, 8, 8], strides = [1, 1, 1]} : vector<2x8x96xf32> to vector<2x8x8xf32>
    %58 = tpu.concatenate %54, %55, %56, %57 in 0 : vector<2x8x8xf32>, vector<2x8x8xf32>, vector<2x8x8xf32>, vector<2x8x8xf32> -> vector<8x8x8xf32>
    %59 = vector.extract_strided_slice %53 {offsets = [0, 0, 32], sizes = [2, 8, 8], strides = [1, 1, 1]} : vector<2x8x96xf32> to vector<2x8x8xf32>
    %60 = vector.extract_strided_slice %53 {offsets = [0, 0, 40], sizes = [2, 8, 8], strides = [1, 1, 1]} : vector<2x8x96xf32> to vector<2x8x8xf32>
    %61 = vector.extract_strided_slice %53 {offsets = [0, 0, 48], sizes = [2, 8, 8], strides = [1, 1, 1]} : vector<2x8x96xf32> to vector<2x8x8xf32>
    %62 = vector.extract_strided_slice %53 {offsets = [0, 0, 56], sizes = [2, 8, 8], strides = [1, 1, 1]} : vector<2x8x96xf32> to vector<2x8x8xf32>
    %63 = tpu.concatenate %59, %60, %61, %62 in 0 : vector<2x8x8xf32>, vector<2x8x8xf32>, vector<2x8x8xf32>, vector<2x8x8xf32> -> vector<8x8x8xf32>
    %64 = vector.extract_strided_slice %53 {offsets = [0, 0, 64], sizes = [2, 8, 8], strides = [1, 1, 1]} : vector<2x8x96xf32> to vector<2x8x8xf32>
    %65 = vector.extract_strided_slice %53 {offsets = [0, 0, 72], sizes = [2, 8, 8], strides = [1, 1, 1]} : vector<2x8x96xf32> to vector<2x8x8xf32>
    %66 = vector.extract_strided_slice %53 {offsets = [0, 0, 80], sizes = [2, 8, 8], strides = [1, 1, 1]} : vector<2x8x96xf32> to vector<2x8x8xf32>
    %67 = vector.extract_strided_slice %53 {offsets = [0, 0, 88], sizes = [2, 8, 8], strides = [1, 1, 1]} : vector<2x8x96xf32> to vector<2x8x8xf32>
    %68 = tpu.concatenate %64, %65, %66, %67 in 0 : vector<2x8x8xf32>, vector<2x8x8xf32>, vector<2x8x8xf32>, vector<2x8x8xf32> -> vector<8x8x8xf32>
    "tpu.trace_start"() <{level = 10 : i32, message = "bqd,bkd->bqk"}> : () -> ()
    %cst_43 = arith.constant dense<0.000000e+00> : vector<8x8x8xf32>
    %69 = tpu.matmul %58, %63, %cst_43 {dimension_numbers = #tpu.dot_dimension_numbers<[2], [2], [1], [1], [0, 0, 0, 1, 1, 1], [0], [0]>} : vector<8x8x8xf32>, vector<8x8x8xf32>, vector<8x8x8xf32> -> vector<8x8x8xf32>
    "tpu.trace_stop"() : () -> ()
    %cst_44 = arith.constant dense<0xFF800000> : vector<8x8xf32>
    %70 = vector.multi_reduction <maximumf>, %69, %cst_44 [2] : vector<8x8x8xf32> to vector<8x8xf32>
    %71 = vector.shape_cast %70 : vector<8x8xf32> to vector<8x8x1xf32>
    %72 = vector.broadcast %71 : vector<8x8x1xf32> to vector<8x8x8xf32>
    %73 = arith.subf %69, %72 : vector<8x8x8xf32>
    %74 = math.exp %73 : vector<8x8x8xf32>
    %cst_45 = arith.constant dense<0.000000e+00> : vector<8x8xf32>
    %75 = vector.multi_reduction <add>, %74, %cst_45 [2] : vector<8x8x8xf32> to vector<8x8xf32>
    %76 = vector.shape_cast %75 : vector<8x8xf32> to vector<8x8x1xf32>
    %77 = vector.broadcast %76 : vector<8x8x1xf32> to vector<8x8x8xf32>
    %78 = arith.divf %74, %77 : vector<8x8x8xf32>
    "tpu.trace_start"() <{level = 10 : i32, message = "bqk,bkd->bqd"}> : () -> ()
    %cst_46 = arith.constant dense<0.000000e+00> : vector<8x8x8xf32>
    %79 = tpu.matmul %78, %68, %cst_46 {dimension_numbers = #tpu.dot_dimension_numbers<[2], [1], [1], [2], [0, 0, 0, 1, 1, 2], [0], [0]>} : vector<8x8x8xf32>, vector<8x8x8xf32>, vector<8x8x8xf32> -> vector<8x8x8xf32>
    "tpu.trace_stop"() : () -> ()
    %80 = vector.extract_strided_slice %79 {offsets = [0, 0, 0], sizes = [2, 8, 8], strides = [1, 1, 1]} : vector<8x8x8xf32> to vector<2x8x8xf32>
    %81 = vector.extract_strided_slice %79 {offsets = [2, 0, 0], sizes = [2, 8, 8], strides = [1, 1, 1]} : vector<8x8x8xf32> to vector<2x8x8xf32>
    %82 = vector.extract_strided_slice %79 {offsets = [4, 0, 0], sizes = [2, 8, 8], strides = [1, 1, 1]} : vector<8x8x8xf32> to vector<2x8x8xf32>
    %83 = vector.extract_strided_slice %79 {offsets = [6, 0, 0], sizes = [2, 8, 8], strides = [1, 1, 1]} : vector<8x8x8xf32> to vector<2x8x8xf32>
    %84 = tpu.concatenate %80, %81, %82, %83 in 2 : vector<2x8x8xf32>, vector<2x8x8xf32>, vector<2x8x8xf32>, vector<2x8x8xf32> -> vector<2x8x32xf32>
    %85 = vector.shape_cast %84 : vector<2x8x32xf32> to vector<16x32xf32>
    %cst_47 = arith.constant dense<0.000000e+00> : vector<16x32xf32>
    %86 = tpu.matmul %85, %10, %cst_47 {dimension_numbers = #tpu.dot_dimension_numbers<[1], [0], [0], [1], [0, 0, 1, 1], [], []>} : vector<16x32xf32>, vector<32x32xf32>, vector<16x32xf32> -> vector<16x32xf32>
    %87 = vector.broadcast %12 : vector<1x32xf32> to vector<16x32xf32>
    %88 = arith.addf %86, %87 : vector<16x32xf32>
    %89 = vector.shape_cast %88 : vector<16x32xf32> to vector<2x8x32xf32>
    %90 = arith.addf %0, %89 : vector<2x8x32xf32>
    %cst_48 = arith.constant dense<0.000000e+00> : vector<2x8xf32>
    %91 = vector.multi_reduction <add>, %90, %cst_48 [2] : vector<2x8x32xf32> to vector<2x8xf32>
    %92 = vector.shape_cast %91 : vector<2x8xf32> to vector<2x8x1xf32>
    %cst_49 = arith.constant 3.200000e+01 : f32
    %93 = vector.broadcast %cst_49 : f32 to vector<2x8x1xf32>
    %94 = arith.divf %92, %93 : vector<2x8x1xf32>
    %95 = arith.mulf %90, %90 : vector<2x8x32xf32>
    %cst_50 = arith.constant dense<0.000000e+00> : vector<2x8xf32>
    %96 = vector.multi_reduction <add>, %95, %cst_50 [2] : vector<2x8x32xf32> to vector<2x8xf32>
    %97 = vector.shape_cast %96 : vector<2x8xf32> to vector<2x8x1xf32>
    %cst_51 = arith.constant 3.200000e+01 : f32
    %98 = vector.broadcast %cst_51 : f32 to vector<2x8x1xf32>
    %99 = arith.divf %97, %98 : vector<2x8x1xf32>
    %100 = arith.mulf %94, %94 : vector<2x8x1xf32>
    %101 = arith.subf %99, %100 : vector<2x8x1xf32>
    %102 = vector.broadcast %94 : vector<2x8x1xf32> to vector<2x8x32xf32>
    %103 = arith.subf %90, %102 : vector<2x8x32xf32>
    %cst_52 = arith.constant 9.99999974E-6 : f32
    %104 = vector.broadcast %cst_52 : f32 to vector<2x8x1xf32>
    %105 = arith.addf %101, %104 : vector<2x8x1xf32>
    %106 = math.rsqrt %105 : vector<2x8x1xf32>
    %107 = vector.broadcast %106 : vector<2x8x1xf32> to vector<2x8x32xf32>
    %108 = arith.mulf %103, %107 : vector<2x8x32xf32>
    %109 = vector.shape_cast %14 : vector<1x32xf32> to vector<1x1x32xf32>
    %110 = vector.broadcast %109 : vector<1x1x32xf32> to vector<2x8x32xf32>
    %111 = arith.mulf %108, %110 : vector<2x8x32xf32>
    %112 = vector.shape_cast %16 : vector<1x32xf32> to vector<1x1x32xf32>
    %113 = vector.broadcast %112 : vector<1x1x32xf32> to vector<2x8x32xf32>
    %114 = arith.addf %111, %113 : vector<2x8x32xf32>
    %115 = vector.shape_cast %114 : vector<2x8x32xf32> to vector<16x32xf32>
    %cst_53 = arith.constant dense<0.000000e+00> : vector<16x64xf32>
    %116 = tpu.matmul %115, %18, %cst_53 {dimension_numbers = #tpu.dot_dimension_numbers<[1], [0], [0], [1], [0, 0, 1, 1], [], []>} : vector<16x32xf32>, vector<32x64xf32>, vector<16x64xf32> -> vector<16x64xf32>
    %117 = vector.broadcast %20 : vector<1x64xf32> to vector<16x64xf32>
    %118 = arith.addf %116, %117 : vector<16x64xf32>
    %119 = arith.mulf %118, %118 : vector<16x64xf32>
    %120 = arith.mulf %118, %119 : vector<16x64xf32>
    %cst_54 = arith.constant 4.471500e-02 : f32
    %121 = vector.broadcast %cst_54 : f32 to vector<16x64xf32>
    %122 = arith.mulf %121, %120 : vector<16x64xf32>
    %123 = arith.addf %118, %122 : vector<16x64xf32>
    %cst_55 = arith.constant 0.797884583 : f32
    %124 = vector.broadcast %cst_55 : f32 to vector<16x64xf32>
    %125 = arith.mulf %124, %123 : vector<16x64xf32>
    %126 = math.tanh %125 : vector<16x64xf32>
    %cst_56 = arith.constant 1.000000e+00 : f32
    %127 = vector.broadcast %cst_56 : f32 to vector<16x64xf32>
    %128 = arith.addf %127, %126 : vector<16x64xf32>
    %cst_57 = arith.constant 5.000000e-01 : f32
    %129 = vector.broadcast %cst_57 : f32 to vector<16x64xf32>
    %130 = arith.mulf %129, %128 : vector<16x64xf32>
    %131 = arith.mulf %118, %130 : vector<16x64xf32>
    %cst_58 = arith.constant dense<0.000000e+00> : vector<16x32xf32>
    %132 = tpu.matmul %131, %22, %cst_58 {dimension_numbers = #tpu.dot_dimension_numbers<[1], [0], [0], [1], [0, 0, 1, 1], [], []>} : vector<16x64xf32>, vector<64x32xf32>, vector<16x32xf32> -> vector<16x32xf32>
    %133 = vector.broadcast %24 : vector<1x32xf32> to vector<16x32xf32>
    %134 = arith.addf %132, %133 : vector<16x32xf32>
    %135 = vector.shape_cast %134 : vector<16x32xf32> to vector<2x8x32xf32>
    %136 = arith.addf %90, %135 : vector<2x8x32xf32>
    %137 = vector.extract_strided_slice %136 {offsets = [0, 0, 0], sizes = [2, 8, 1], strides = [1, 1, 1]} : vector<2x8x32xf32> to vector<2x8x1xf32>
    %cst_59 = arith.constant 1.000000e+01 : f32
    %138 = vector.broadcast %cst_59 : f32 to vector<2x8x1xf32>
    %139 = arith.mulf %137, %138 : vector<2x8x1xf32>
    %cst_60 = arith.constant 3.000000e+01 : f32
    %140 = vector.broadcast %cst_60 : f32 to vector<2x8x1xf32>
    %141 = arith.subf %139, %140 : vector<2x8x1xf32>
    %142 = arith.negf %141 : vector<2x8x1xf32>
    %143 = math.exp %142 : vector<2x8x1xf32>
    %cst_61 = arith.constant 1.000000e+00 : f32
    %144 = vector.broadcast %cst_61 : f32 to vector<2x8x1xf32>
    %145 = arith.addf %144, %143 : vector<2x8x1xf32>
    %146 = arith.divf %144, %145 : vector<2x8x1xf32>
    %cst_62 = arith.constant 9.900000e-01 : f32
    %147 = vector.broadcast %cst_62 : f32 to vector<2x8x1xf32>
    %148 = arith.cmpf ogt, %146, %147 : vector<2x8x1xf32>
    %149 = arith.extui %148 : vector<2x8x1xi1> to vector<2x8x1xi32>
    %150 = arith.sitofp %149 : vector<2x8x1xi32> to vector<2x8x1xf32>
    %cst_63 = arith.constant 9.900000e-01 : f32
    %151 = vector.broadcast %cst_63 : f32 to vector<2x8x1xf32>
    %152 = arith.cmpf olt, %146, %151 : vector<2x8x1xf32>
    %153 = arith.extui %152 : vector<2x8x1xi1> to vector<2x8x1xi32>
    %154 = arith.sitofp %153 : vector<2x8x1xi32> to vector<2x8x1xf32>
    %155 = arith.mulf %146, %154 : vector<2x8x1xf32>
    %156 = arith.addf %150, %155 : vector<2x8x1xf32>
    %157 = vector.broadcast %156 : vector<2x8x1xf32> to vector<2x8x32xf32>
    %158 = arith.mulf %136, %157 : vector<2x8x32xf32>
    %159 = arith.mulf %154, %146 : vector<2x8x1xf32>
    %cst_64 = arith.constant 1.000000e+00 : f32
    %160 = vector.broadcast %cst_64 : f32 to vector<2x8x1xf32>
    %161 = arith.subf %160, %159 : vector<2x8x1xf32>
    %c1 = arith.constant 1 : index
    %c0_65 = arith.constant 0 : index
    %c0_66 = arith.constant 0 : index
    %162 = vector.load %arg1[%c1, %c0_65, %c0_66] : memref<2x1x32xf32, #tpu.memory_space<vmem>>, vector<1x1x32xf32>
    %163 = vector.shape_cast %162 : vector<1x1x32xf32> to vector<1x32xf32>
    %c1_67 = arith.constant 1 : index
    %c0_68 = arith.constant 0 : index
    %c0_69 = arith.constant 0 : index
    %164 = vector.load %arg2[%c1_67, %c0_68, %c0_69] : memref<2x1x32xf32, #tpu.memory_space<vmem>>, vector<1x1x32xf32>
    %165 = vector.shape_cast %164 : vector<1x1x32xf32> to vector<1x32xf32>
    %c1_70 = arith.constant 1 : index
    %c0_71 = arith.constant 0 : index
    %c0_72 = arith.constant 0 : index
    %166 = vector.load %arg3[%c1_70, %c0_71, %c0_72] : memref<2x32x96xf32, #tpu.memory_space<vmem>>, vector<1x32x96xf32>
    %167 = vector.shape_cast %166 : vector<1x32x96xf32> to vector<32x96xf32>
    %c1_73 = arith.constant 1 : index
    %c0_74 = arith.constant 0 : index
    %c0_75 = arith.constant 0 : index
    %168 = vector.load %arg4[%c1_73, %c0_74, %c0_75] : memref<2x1x96xf32, #tpu.memory_space<vmem>>, vector<1x1x96xf32>
    %169 = vector.shape_cast %168 : vector<1x1x96xf32> to vector<1x96xf32>
    %c1_76 = arith.constant 1 : index
    %c0_77 = arith.constant 0 : index
    %c0_78 = arith.constant 0 : index
    %170 = vector.load %arg5[%c1_76, %c0_77, %c0_78] : memref<2x32x32xf32, #tpu.memory_space<vmem>>, vector<1x32x32xf32>
    %171 = vector.shape_cast %170 : vector<1x32x32xf32> to vector<32x32xf32>
    %c1_79 = arith.constant 1 : index
    %c0_80 = arith.constant 0 : index
    %c0_81 = arith.constant 0 : index
    %172 = vector.load %arg6[%c1_79, %c0_80, %c0_81] : memref<2x1x32xf32, #tpu.memory_space<vmem>>, vector<1x1x32xf32>
    %173 = vector.shape_cast %172 : vector<1x1x32xf32> to vector<1x32xf32>
    %c1_82 = arith.constant 1 : index
    %c0_83 = arith.constant 0 : index
    %c0_84 = arith.constant 0 : index
    %174 = vector.load %arg7[%c1_82, %c0_83, %c0_84] : memref<2x1x32xf32, #tpu.memory_space<vmem>>, vector<1x1x32xf32>
    %175 = vector.shape_cast %174 : vector<1x1x32xf32> to vector<1x32xf32>
    %c1_85 = arith.constant 1 : index
    %c0_86 = arith.constant 0 : index
    %c0_87 = arith.constant 0 : index
    %176 = vector.load %arg8[%c1_85, %c0_86, %c0_87] : memref<2x1x32xf32, #tpu.memory_space<vmem>>, vector<1x1x32xf32>
    %177 = vector.shape_cast %176 : vector<1x1x32xf32> to vector<1x32xf32>
    %c1_88 = arith.constant 1 : index
    %c0_89 = arith.constant 0 : index
    %c0_90 = arith.constant 0 : index
    %178 = vector.load %arg9[%c1_88, %c0_89, %c0_90] : memref<2x32x64xf32, #tpu.memory_space<vmem>>, vector<1x32x64xf32>
    %179 = vector.shape_cast %178 : vector<1x32x64xf32> to vector<32x64xf32>
    %c1_91 = arith.constant 1 : index
    %c0_92 = arith.constant 0 : index
    %c0_93 = arith.constant 0 : index
    %180 = vector.load %arg10[%c1_91, %c0_92, %c0_93] : memref<2x1x64xf32, #tpu.memory_space<vmem>>, vector<1x1x64xf32>
    %181 = vector.shape_cast %180 : vector<1x1x64xf32> to vector<1x64xf32>
    %c1_94 = arith.constant 1 : index
    %c0_95 = arith.constant 0 : index
    %c0_96 = arith.constant 0 : index
    %182 = vector.load %arg11[%c1_94, %c0_95, %c0_96] : memref<2x64x32xf32, #tpu.memory_space<vmem>>, vector<1x64x32xf32>
    %183 = vector.shape_cast %182 : vector<1x64x32xf32> to vector<64x32xf32>
    %c1_97 = arith.constant 1 : index
    %c0_98 = arith.constant 0 : index
    %c0_99 = arith.constant 0 : index
    %184 = vector.load %arg12[%c1_97, %c0_98, %c0_99] : memref<2x1x32xf32, #tpu.memory_space<vmem>>, vector<1x1x32xf32>
    %185 = vector.shape_cast %184 : vector<1x1x32xf32> to vector<1x32xf32>
    %186 = vector.shape_cast %154 : vector<2x8x1xf32> to vector<2x8x1xf32>
    %187 = vector.broadcast %186 : vector<2x8x1xf32> to vector<2x8x32xf32>
    %188 = arith.mulf %136, %187 : vector<2x8x32xf32>
    %cst_100 = arith.constant dense<0.000000e+00> : vector<2x8xf32>
    %189 = vector.multi_reduction <add>, %188, %cst_100 [2] : vector<2x8x32xf32> to vector<2x8xf32>
    %190 = vector.shape_cast %189 : vector<2x8xf32> to vector<2x8x1xf32>
    %cst_101 = arith.constant 3.200000e+01 : f32
    %191 = vector.broadcast %cst_101 : f32 to vector<2x8x1xf32>
    %192 = arith.divf %190, %191 : vector<2x8x1xf32>
    %193 = arith.mulf %188, %188 : vector<2x8x32xf32>
    %cst_102 = arith.constant dense<0.000000e+00> : vector<2x8xf32>
    %194 = vector.multi_reduction <add>, %193, %cst_102 [2] : vector<2x8x32xf32> to vector<2x8xf32>
    %195 = vector.shape_cast %194 : vector<2x8xf32> to vector<2x8x1xf32>
    %cst_103 = arith.constant 3.200000e+01 : f32
    %196 = vector.broadcast %cst_103 : f32 to vector<2x8x1xf32>
    %197 = arith.divf %195, %196 : vector<2x8x1xf32>
    %198 = arith.mulf %192, %192 : vector<2x8x1xf32>
    %199 = arith.subf %197, %198 : vector<2x8x1xf32>
    %200 = vector.broadcast %192 : vector<2x8x1xf32> to vector<2x8x32xf32>
    %201 = arith.subf %188, %200 : vector<2x8x32xf32>
    %cst_104 = arith.constant 9.99999974E-6 : f32
    %202 = vector.broadcast %cst_104 : f32 to vector<2x8x1xf32>
    %203 = arith.addf %199, %202 : vector<2x8x1xf32>
    %204 = math.rsqrt %203 : vector<2x8x1xf32>
    %205 = vector.broadcast %204 : vector<2x8x1xf32> to vector<2x8x32xf32>
    %206 = arith.mulf %201, %205 : vector<2x8x32xf32>
    %207 = vector.shape_cast %163 : vector<1x32xf32> to vector<1x1x32xf32>
    %208 = vector.broadcast %207 : vector<1x1x32xf32> to vector<2x8x32xf32>
    %209 = arith.mulf %206, %208 : vector<2x8x32xf32>
    %210 = vector.shape_cast %165 : vector<1x32xf32> to vector<1x1x32xf32>
    %211 = vector.broadcast %210 : vector<1x1x32xf32> to vector<2x8x32xf32>
    %212 = arith.addf %209, %211 : vector<2x8x32xf32>
    %213 = arith.mulf %212, %187 : vector<2x8x32xf32>
    %214 = vector.shape_cast %213 : vector<2x8x32xf32> to vector<16x32xf32>
    %cst_105 = arith.constant dense<0.000000e+00> : vector<16x96xf32>
    %215 = tpu.matmul %214, %167, %cst_105 {dimension_numbers = #tpu.dot_dimension_numbers<[1], [0], [0], [1], [0, 0, 1, 1], [], []>} : vector<16x32xf32>, vector<32x96xf32>, vector<16x96xf32> -> vector<16x96xf32>
    %216 = vector.broadcast %169 : vector<1x96xf32> to vector<16x96xf32>
    %217 = arith.addf %215, %216 : vector<16x96xf32>
    %218 = vector.shape_cast %217 : vector<16x96xf32> to vector<2x8x96xf32>
    %219 = vector.extract_strided_slice %218 {offsets = [0, 0, 0], sizes = [2, 8, 8], strides = [1, 1, 1]} : vector<2x8x96xf32> to vector<2x8x8xf32>
    %220 = vector.extract_strided_slice %218 {offsets = [0, 0, 8], sizes = [2, 8, 8], strides = [1, 1, 1]} : vector<2x8x96xf32> to vector<2x8x8xf32>
    %221 = vector.extract_strided_slice %218 {offsets = [0, 0, 16], sizes = [2, 8, 8], strides = [1, 1, 1]} : vector<2x8x96xf32> to vector<2x8x8xf32>
    %222 = vector.extract_strided_slice %218 {offsets = [0, 0, 24], sizes = [2, 8, 8], strides = [1, 1, 1]} : vector<2x8x96xf32> to vector<2x8x8xf32>
    %223 = tpu.concatenate %219, %220, %221, %222 in 0 : vector<2x8x8xf32>, vector<2x8x8xf32>, vector<2x8x8xf32>, vector<2x8x8xf32> -> vector<8x8x8xf32>
    %224 = vector.extract_strided_slice %218 {offsets = [0, 0, 32], sizes = [2, 8, 8], strides = [1, 1, 1]} : vector<2x8x96xf32> to vector<2x8x8xf32>
    %225 = vector.extract_strided_slice %218 {offsets = [0, 0, 40], sizes = [2, 8, 8], strides = [1, 1, 1]} : vector<2x8x96xf32> to vector<2x8x8xf32>
    %226 = vector.extract_strided_slice %218 {offsets = [0, 0, 48], sizes = [2, 8, 8], strides = [1, 1, 1]} : vector<2x8x96xf32> to vector<2x8x8xf32>
    %227 = vector.extract_strided_slice %218 {offsets = [0, 0, 56], sizes = [2, 8, 8], strides = [1, 1, 1]} : vector<2x8x96xf32> to vector<2x8x8xf32>
    %228 = tpu.concatenate %224, %225, %226, %227 in 0 : vector<2x8x8xf32>, vector<2x8x8xf32>, vector<2x8x8xf32>, vector<2x8x8xf32> -> vector<8x8x8xf32>
    %229 = vector.extract_strided_slice %218 {offsets = [0, 0, 64], sizes = [2, 8, 8], strides = [1, 1, 1]} : vector<2x8x96xf32> to vector<2x8x8xf32>
    %230 = vector.extract_strided_slice %218 {offsets = [0, 0, 72], sizes = [2, 8, 8], strides = [1, 1, 1]} : vector<2x8x96xf32> to vector<2x8x8xf32>
    %231 = vector.extract_strided_slice %218 {offsets = [0, 0, 80], sizes = [2, 8, 8], strides = [1, 1, 1]} : vector<2x8x96xf32> to vector<2x8x8xf32>
    %232 = vector.extract_strided_slice %218 {offsets = [0, 0, 88], sizes = [2, 8, 8], strides = [1, 1, 1]} : vector<2x8x96xf32> to vector<2x8x8xf32>
    %233 = tpu.concatenate %229, %230, %231, %232 in 0 : vector<2x8x8xf32>, vector<2x8x8xf32>, vector<2x8x8xf32>, vector<2x8x8xf32> -> vector<8x8x8xf32>
    "tpu.trace_start"() <{level = 10 : i32, message = "bqd,bkd->bqk"}> : () -> ()
    %cst_106 = arith.constant dense<0.000000e+00> : vector<8x8x8xf32>
    %234 = tpu.matmul %223, %228, %cst_106 {dimension_numbers = #tpu.dot_dimension_numbers<[2], [2], [1], [1], [0, 0, 0, 1, 1, 1], [0], [0]>} : vector<8x8x8xf32>, vector<8x8x8xf32>, vector<8x8x8xf32> -> vector<8x8x8xf32>
    "tpu.trace_stop"() : () -> ()
    %cst_107 = arith.constant dense<0xFF800000> : vector<8x8xf32>
    %235 = vector.multi_reduction <maximumf>, %234, %cst_107 [2] : vector<8x8x8xf32> to vector<8x8xf32>
    %236 = vector.shape_cast %235 : vector<8x8xf32> to vector<8x8x1xf32>
    %237 = vector.broadcast %236 : vector<8x8x1xf32> to vector<8x8x8xf32>
    %238 = arith.subf %234, %237 : vector<8x8x8xf32>
    %239 = math.exp %238 : vector<8x8x8xf32>
    %cst_108 = arith.constant dense<0.000000e+00> : vector<8x8xf32>
    %240 = vector.multi_reduction <add>, %239, %cst_108 [2] : vector<8x8x8xf32> to vector<8x8xf32>
    %241 = vector.shape_cast %240 : vector<8x8xf32> to vector<8x8x1xf32>
    %242 = vector.broadcast %241 : vector<8x8x1xf32> to vector<8x8x8xf32>
    %243 = arith.divf %239, %242 : vector<8x8x8xf32>
    "tpu.trace_start"() <{level = 10 : i32, message = "bqk,bkd->bqd"}> : () -> ()
    %cst_109 = arith.constant dense<0.000000e+00> : vector<8x8x8xf32>
    %244 = tpu.matmul %243, %233, %cst_109 {dimension_numbers = #tpu.dot_dimension_numbers<[2], [1], [1], [2], [0, 0, 0, 1, 1, 2], [0], [0]>} : vector<8x8x8xf32>, vector<8x8x8xf32>, vector<8x8x8xf32> -> vector<8x8x8xf32>
    "tpu.trace_stop"() : () -> ()
    %245 = vector.extract_strided_slice %244 {offsets = [0, 0, 0], sizes = [2, 8, 8], strides = [1, 1, 1]} : vector<8x8x8xf32> to vector<2x8x8xf32>
    %246 = vector.extract_strided_slice %244 {offsets = [2, 0, 0], sizes = [2, 8, 8], strides = [1, 1, 1]} : vector<8x8x8xf32> to vector<2x8x8xf32>
    %247 = vector.extract_strided_slice %244 {offsets = [4, 0, 0], sizes = [2, 8, 8], strides = [1, 1, 1]} : vector<8x8x8xf32> to vector<2x8x8xf32>
    %248 = vector.extract_strided_slice %244 {offsets = [6, 0, 0], sizes = [2, 8, 8], strides = [1, 1, 1]} : vector<8x8x8xf32> to vector<2x8x8xf32>
    %249 = tpu.concatenate %245, %246, %247, %248 in 2 : vector<2x8x8xf32>, vector<2x8x8xf32>, vector<2x8x8xf32>, vector<2x8x8xf32> -> vector<2x8x32xf32>
    %250 = vector.shape_cast %249 : vector<2x8x32xf32> to vector<16x32xf32>
    %cst_110 = arith.constant dense<0.000000e+00> : vector<16x32xf32>
    %251 = tpu.matmul %250, %171, %cst_110 {dimension_numbers = #tpu.dot_dimension_numbers<[1], [0], [0], [1], [0, 0, 1, 1], [], []>} : vector<16x32xf32>, vector<32x32xf32>, vector<16x32xf32> -> vector<16x32xf32>
    %252 = vector.broadcast %173 : vector<1x32xf32> to vector<16x32xf32>
    %253 = arith.addf %251, %252 : vector<16x32xf32>
    %254 = vector.shape_cast %253 : vector<16x32xf32> to vector<2x8x32xf32>
    %255 = arith.addf %188, %254 : vector<2x8x32xf32>
    %256 = arith.mulf %255, %187 : vector<2x8x32xf32>
    %cst_111 = arith.constant dense<0.000000e+00> : vector<2x8xf32>
    %257 = vector.multi_reduction <add>, %256, %cst_111 [2] : vector<2x8x32xf32> to vector<2x8xf32>
    %258 = vector.shape_cast %257 : vector<2x8xf32> to vector<2x8x1xf32>
    %cst_112 = arith.constant 3.200000e+01 : f32
    %259 = vector.broadcast %cst_112 : f32 to vector<2x8x1xf32>
    %260 = arith.divf %258, %259 : vector<2x8x1xf32>
    %261 = arith.mulf %256, %256 : vector<2x8x32xf32>
    %cst_113 = arith.constant dense<0.000000e+00> : vector<2x8xf32>
    %262 = vector.multi_reduction <add>, %261, %cst_113 [2] : vector<2x8x32xf32> to vector<2x8xf32>
    %263 = vector.shape_cast %262 : vector<2x8xf32> to vector<2x8x1xf32>
    %cst_114 = arith.constant 3.200000e+01 : f32
    %264 = vector.broadcast %cst_114 : f32 to vector<2x8x1xf32>
    %265 = arith.divf %263, %264 : vector<2x8x1xf32>
    %266 = arith.mulf %260, %260 : vector<2x8x1xf32>
    %267 = arith.subf %265, %266 : vector<2x8x1xf32>
    %268 = vector.broadcast %260 : vector<2x8x1xf32> to vector<2x8x32xf32>
    %269 = arith.subf %256, %268 : vector<2x8x32xf32>
    %cst_115 = arith.constant 9.99999974E-6 : f32
    %270 = vector.broadcast %cst_115 : f32 to vector<2x8x1xf32>
    %271 = arith.addf %267, %270 : vector<2x8x1xf32>
    %272 = math.rsqrt %271 : vector<2x8x1xf32>
    %273 = vector.broadcast %272 : vector<2x8x1xf32> to vector<2x8x32xf32>
    %274 = arith.mulf %269, %273 : vector<2x8x32xf32>
    %275 = vector.shape_cast %175 : vector<1x32xf32> to vector<1x1x32xf32>
    %276 = vector.broadcast %275 : vector<1x1x32xf32> to vector<2x8x32xf32>
    %277 = arith.mulf %274, %276 : vector<2x8x32xf32>
    %278 = vector.shape_cast %177 : vector<1x32xf32> to vector<1x1x32xf32>
    %279 = vector.broadcast %278 : vector<1x1x32xf32> to vector<2x8x32xf32>
    %280 = arith.addf %277, %279 : vector<2x8x32xf32>
    %281 = arith.mulf %280, %187 : vector<2x8x32xf32>
    %282 = vector.shape_cast %281 : vector<2x8x32xf32> to vector<16x32xf32>
    %cst_116 = arith.constant dense<0.000000e+00> : vector<16x64xf32>
    %283 = tpu.matmul %282, %179, %cst_116 {dimension_numbers = #tpu.dot_dimension_numbers<[1], [0], [0], [1], [0, 0, 1, 1], [], []>} : vector<16x32xf32>, vector<32x64xf32>, vector<16x64xf32> -> vector<16x64xf32>
    %284 = vector.broadcast %181 : vector<1x64xf32> to vector<16x64xf32>
    %285 = arith.addf %283, %284 : vector<16x64xf32>
    %286 = arith.mulf %285, %285 : vector<16x64xf32>
    %287 = arith.mulf %285, %286 : vector<16x64xf32>
    %cst_117 = arith.constant 4.471500e-02 : f32
    %288 = vector.broadcast %cst_117 : f32 to vector<16x64xf32>
    %289 = arith.mulf %288, %287 : vector<16x64xf32>
    %290 = arith.addf %285, %289 : vector<16x64xf32>
    %cst_118 = arith.constant 0.797884583 : f32
    %291 = vector.broadcast %cst_118 : f32 to vector<16x64xf32>
    %292 = arith.mulf %291, %290 : vector<16x64xf32>
    %293 = math.tanh %292 : vector<16x64xf32>
    %cst_119 = arith.constant 1.000000e+00 : f32
    %294 = vector.broadcast %cst_119 : f32 to vector<16x64xf32>
    %295 = arith.addf %294, %293 : vector<16x64xf32>
    %cst_120 = arith.constant 5.000000e-01 : f32
    %296 = vector.broadcast %cst_120 : f32 to vector<16x64xf32>
    %297 = arith.mulf %296, %295 : vector<16x64xf32>
    %298 = arith.mulf %285, %297 : vector<16x64xf32>
    %cst_121 = arith.constant dense<0.000000e+00> : vector<16x32xf32>
    %299 = tpu.matmul %298, %183, %cst_121 {dimension_numbers = #tpu.dot_dimension_numbers<[1], [0], [0], [1], [0, 0, 1, 1], [], []>} : vector<16x64xf32>, vector<64x32xf32>, vector<16x32xf32> -> vector<16x32xf32>
    %300 = vector.broadcast %185 : vector<1x32xf32> to vector<16x32xf32>
    %301 = arith.addf %299, %300 : vector<16x32xf32>
    %302 = vector.shape_cast %301 : vector<16x32xf32> to vector<2x8x32xf32>
    %303 = arith.addf %255, %302 : vector<2x8x32xf32>
    %cst_122 = arith.constant 1.000000e+00 : f32
    %304 = vector.broadcast %cst_122 : f32 to vector<2x8x1xf32>
    %305 = arith.mulf %303, %187 : vector<2x8x32xf32>
    %306 = arith.addf %146, %304 : vector<2x8x1xf32>
    %cst_123 = arith.constant 9.900000e-01 : f32
    %307 = vector.broadcast %cst_123 : f32 to vector<2x8x1xf32>
    %308 = arith.cmpf ogt, %306, %307 : vector<2x8x1xf32>
    %309 = arith.extui %308 : vector<2x8x1xi1> to vector<2x8x1xi32>
    %310 = arith.sitofp %309 : vector<2x8x1xi32> to vector<2x8x1xf32>
    %cst_124 = arith.constant 9.900000e-01 : f32
    %311 = vector.broadcast %cst_124 : f32 to vector<2x8x1xf32>
    %312 = arith.cmpf olt, %306, %311 : vector<2x8x1xf32>
    %313 = arith.extui %312 : vector<2x8x1xi1> to vector<2x8x1xi32>
    %314 = arith.sitofp %313 : vector<2x8x1xi32> to vector<2x8x1xf32>
    %315 = arith.mulf %161, %310 : vector<2x8x1xf32>
    %316 = arith.mulf %304, %314 : vector<2x8x1xf32>
    %317 = arith.addf %315, %316 : vector<2x8x1xf32>
    %318 = vector.broadcast %317 : vector<2x8x1xf32> to vector<2x8x32xf32>
    %319 = arith.mulf %305, %318 : vector<2x8x32xf32>
    %320 = arith.addf %158, %319 : vector<2x8x32xf32>
    %c0_125 = arith.constant 0 : index
    %c0_126 = arith.constant 0 : index
    %321 = vector.load %arg13[%c0_125, %c0_126] : memref<1x32xf32, #tpu.memory_space<vmem>>, vector<1x32xf32>
    %c0_127 = arith.constant 0 : index
    %c0_128 = arith.constant 0 : index
    %322 = vector.load %arg14[%c0_127, %c0_128] : memref<1x32xf32, #tpu.memory_space<vmem>>, vector<1x32xf32>
    %cst_129 = arith.constant dense<0.000000e+00> : vector<2x8xf32>
    %323 = vector.multi_reduction <add>, %320, %cst_129 [2] : vector<2x8x32xf32> to vector<2x8xf32>
    %324 = vector.shape_cast %323 : vector<2x8xf32> to vector<2x8x1xf32>
    %cst_130 = arith.constant 3.200000e+01 : f32
    %325 = vector.broadcast %cst_130 : f32 to vector<2x8x1xf32>
    %326 = arith.divf %324, %325 : vector<2x8x1xf32>
    %327 = arith.mulf %320, %320 : vector<2x8x32xf32>
    %cst_131 = arith.constant dense<0.000000e+00> : vector<2x8xf32>
    %328 = vector.multi_reduction <add>, %327, %cst_131 [2] : vector<2x8x32xf32> to vector<2x8xf32>
    %329 = vector.shape_cast %328 : vector<2x8xf32> to vector<2x8x1xf32>
    %cst_132 = arith.constant 3.200000e+01 : f32
    %330 = vector.broadcast %cst_132 : f32 to vector<2x8x1xf32>
    %331 = arith.divf %329, %330 : vector<2x8x1xf32>
    %332 = arith.mulf %326, %326 : vector<2x8x1xf32>
    %333 = arith.subf %331, %332 : vector<2x8x1xf32>
    %334 = vector.broadcast %326 : vector<2x8x1xf32> to vector<2x8x32xf32>
    %335 = arith.subf %320, %334 : vector<2x8x32xf32>
    %cst_133 = arith.constant 9.99999974E-6 : f32
    %336 = vector.broadcast %cst_133 : f32 to vector<2x8x1xf32>
    %337 = arith.addf %333, %336 : vector<2x8x1xf32>
    %338 = math.rsqrt %337 : vector<2x8x1xf32>
    %339 = vector.broadcast %338 : vector<2x8x1xf32> to vector<2x8x32xf32>
    %340 = arith.mulf %335, %339 : vector<2x8x32xf32>
    %341 = vector.shape_cast %321 : vector<1x32xf32> to vector<1x1x32xf32>
    %342 = vector.broadcast %341 : vector<1x1x32xf32> to vector<2x8x32xf32>
    %343 = arith.mulf %340, %342 : vector<2x8x32xf32>
    %344 = vector.shape_cast %322 : vector<1x32xf32> to vector<1x1x32xf32>
    %345 = vector.broadcast %344 : vector<1x1x32xf32> to vector<2x8x32xf32>
    %346 = arith.addf %343, %345 : vector<2x8x32xf32>
    %c0_134 = arith.constant 0 : index
    %c0_135 = arith.constant 0 : index
    %c0_136 = arith.constant 0 : index
    %347 = vector.load %arg15[%c0_134, %c0_135, %c0_136] : memref<2x8x32xf32, #tpu.memory_space<vmem>>, vector<2x8x32xf32>
    tpu.vector_store %arg15[%c0_134, %c0_135, %c0_136], %346 {strides = array<i32>} : memref<2x8x32xf32, #tpu.memory_space<vmem>>, vector<2x8x32xf32>,
    return
  }
}

</mosaic_0001>

<llo_original>
// kernel: avit_encoder.1
$region0: #{avit_encoder.1}
  #allocation0 [shape = 'u32[]', space=smem, size = 0x4, offset = 0x4, fixed_abs, tag = 'smem constant byte address 0x4 - core index']
  #allocation1 [shape = 'u32[144,128]{1,0:T(1,128)}', space=vmem, size = 0x12000, scoped, tag = 'internal scratch']
  %s0 = inlined_call_operand.vmem [shape: f32[2,8,32], index: 0, kind: input, shape index: {}]
  %s1 = inlined_call_operand.vmem [shape: f32[2,1,32], index: 1, kind: input, shape index: {}]
  %s2 = inlined_call_operand.vmem [shape: f32[2,1,32], index: 2, kind: input, shape index: {}]
  %s3 = inlined_call_operand.vmem [shape: f32[2,32,96], index: 3, kind: input, shape index: {}]
  %s4 = inlined_call_operand.vmem [shape: f32[2,1,96], index: 4, kind: input, shape index: {}]
  %s5 = inlined_call_operand.vmem [shape: f32[2,32,32], index: 5, kind: input, shape index: {}]
  %s6 = inlined_call_operand.vmem [shape: f32[2,1,32], index: 6, kind: input, shape index: {}]
  %s7 = inlined_call_operand.vmem [shape: f32[2,1,32], index: 7, kind: input, shape index: {}]
  %s8 = inlined_call_operand.vmem [shape: f32[2,1,32], index: 8, kind: input, shape index: {}]
  %s9 = inlined_call_operand.vmem [shape: f32[2,32,64], index: 9, kind: input, shape index: {}]
  %s10 = inlined_call_operand.vmem [shape: f32[2,1,64], index: 10, kind: input, shape index: {}]
  %s11 = inlined_call_operand.vmem [shape: f32[2,64,32], index: 11, kind: input, shape index: {}]
  %s12 = inlined_call_operand.vmem [shape: f32[2,1,32], index: 12, kind: input, shape index: {}]
  %s13 = inlined_call_operand.vmem [shape: f32[1,32], index: 13, kind: input, shape index: {}]
  %s14 = inlined_call_operand.vmem [shape: f32[1,32], index: 14, kind: input, shape index: {}]
  %s15 = inlined_call_operand.hbm [shape: f32[2,8,32], index: 15, kind: output, shape index: {}]
  %s16 = sld [smem:[#allocation0]]
  $region70: #{avit_encoder.1} parent=0
    _
  %s18 = ssub.s32 1, %s16
  %s19 = scalar_select 0, %s18, %s16
  $region1: #{avit_encoder.1} parent=0
    #allocation2 [shape = 'u8[8192]{0}', space=vmem, size = 0x2000, scoped, tag = 'output window, operand 0, single buffered']
    #allocation3 [shape = 's32[1]{0}', space=sflag, size = 0x4, scoped, tag = 'scoped memory for avit_encoder.1']
    %20 = vsyncpa [#allocation3], 0
    // Predicated region
    $region2: #{avit_encoder.1} parent=1 // pred_check
      _
    $region3: #{avit_encoder.1} parent=1 // pred_check_branch
      %22 = sbr.rel (0) target = $region5
    $region4: #{avit_encoder.1} parent=1 // pred_region
      _
    $region5: #{avit_encoder.1} parent=1 // pred_fallthru
      _
    // Predicated region
    $region6: #{avit_encoder.1} parent=1 // pred_check
      _
    $region7: #{avit_encoder.1} parent=1 // pred_check_branch
      %24 = sbr.rel (0) target = $region9
    $region8: #{avit_encoder.1} parent=1 // pred_region
      _
    $region9: #{avit_encoder.1} parent=1 // pred_fallthru
      _
    // Predicated region
    $region10: #{avit_encoder.1} parent=1 // pred_check
      _
    $region11: #{avit_encoder.1} parent=1 // pred_check_branch
      %26 = sbr.rel (0) target = $region13
    $region12: #{avit_encoder.1} parent=1 // pred_region
      _
    $region13: #{avit_encoder.1} parent=1 // pred_fallthru
      _
    // Predicated region
    $region14: #{avit_encoder.1} parent=1 // pred_check
      _
    $region15: #{avit_encoder.1} parent=1 // pred_check_branch
      %28 = sbr.rel (0) target = $region17
    $region16: #{avit_encoder.1} parent=1 // pred_region
      _
    $region17: #{avit_encoder.1} parent=1 // pred_fallthru
      _
    // Predicated region
    $region18: #{avit_encoder.1} parent=1 // pred_check
      _
    $region19: #{avit_encoder.1} parent=1 // pred_check_branch
      %30 = sbr.rel (0) target = $region21
    $region20: #{avit_encoder.1} parent=1 // pred_region
      _
    $region21: #{avit_encoder.1} parent=1 // pred_fallthru
      _
    // Predicated region
    $region22: #{avit_encoder.1} parent=1 // pred_check
      _
    $region23: #{avit_encoder.1} parent=1 // pred_check_branch
      %32 = sbr.rel (0) target = $region25
    $region24: #{avit_encoder.1} parent=1 // pred_region
      _
    $region25: #{avit_encoder.1} parent=1 // pred_fallthru
      _
    // Predicated region
    $region26: #{avit_encoder.1} parent=1 // pred_check
      _
    $region27: #{avit_encoder.1} parent=1 // pred_check_branch
      %34 = sbr.rel (0) target = $region29
    $region28: #{avit_encoder.1} parent=1 // pred_region
      _
    $region29: #{avit_encoder.1} parent=1 // pred_fallthru
      _
    // Predicated region
    $region30: #{avit_encoder.1} parent=1 // pred_check
      _
    $region31: #{avit_encoder.1} parent=1 // pred_check_branch
      %36 = sbr.rel (0) target = $region33
    $region32: #{avit_encoder.1} parent=1 // pred_region
      _
    $region33: #{avit_encoder.1} parent=1 // pred_fallthru
      _
    // Predicated region
    $region34: #{avit_encoder.1} parent=1 // pred_check
      _
    $region35: #{avit_encoder.1} parent=1 // pred_check_branch
      %38 = sbr.rel (0) target = $region37
    $region36: #{avit_encoder.1} parent=1 // pred_region
      _
    $region37: #{avit_encoder.1} parent=1 // pred_fallthru
      _
    // Predicated region
    $region38: #{avit_encoder.1} parent=1 // pred_check
      _
    $region39: #{avit_encoder.1} parent=1 // pred_check_branch
      %40 = sbr.rel (0) target = $region41
    $region40: #{avit_encoder.1} parent=1 // pred_region
      _
    $region41: #{avit_encoder.1} parent=1 // pred_fallthru
      _
    // Predicated region
    $region42: #{avit_encoder.1} parent=1 // pred_check
      _
    $region43: #{avit_encoder.1} parent=1 // pred_check_branch
      %42 = sbr.rel (0) target = $region45
    $region44: #{avit_encoder.1} parent=1 // pred_region
      _
    $region45: #{avit_encoder.1} parent=1 // pred_fallthru
      _
    // Predicated region
    $region46: #{avit_encoder.1} parent=1 // pred_check
      _
    $region47: #{avit_encoder.1} parent=1 // pred_check_branch
      %44 = sbr.rel (0) target = $region49
    $region48: #{avit_encoder.1} parent=1 // pred_region
      _
    $region49: #{avit_encoder.1} parent=1 // pred_fallthru
      _
    // Predicated region
    $region50: #{avit_encoder.1} parent=1 // pred_check
      _
    $region51: #{avit_encoder.1} parent=1 // pred_check_branch
      %46 = sbr.rel (0) target = $region53
    $region52: #{avit_encoder.1} parent=1 // pred_region
      _
    $region53: #{avit_encoder.1} parent=1 // pred_fallthru
      _
    // Predicated region
    $region54: #{avit_encoder.1} parent=1 // pred_check
      _
    $region55: #{avit_encoder.1} parent=1 // pred_check_branch
      %48 = sbr.rel (0) target = $region57
    $region56: #{avit_encoder.1} parent=1 // pred_region
      _
    $region57: #{avit_encoder.1} parent=1 // pred_fallthru
      _
    // Predicated region
    $region58: #{avit_encoder.1} parent=1 // pred_check
      _
    $region59: #{avit_encoder.1} parent=1 // pred_check_branch
      %50 = sbr.rel (0) target = $region61
    $region60: #{avit_encoder.1} parent=1 // pred_region
      _
    $region61: #{avit_encoder.1} parent=1 // pred_fallthru
      _
    %v51 = vld [vmem:[%s0] sm:$0xff]
    %v52 = vld [vmem:[%s0 + $0x8] sm:$0xff]
    %v53 = vld [vmem:[%s1] sm:$0x1]
    %v54 = vld [vmem:[%s2] sm:$0x1]
    %v55 = vld [vmem:[%s3] sm:$0xff]
    %v56 = vld [vmem:[%s3 + $0x8] sm:$0xff]
    %v57 = vld [vmem:[%s3 + $0x10] sm:$0xff]
    %v58 = vld [vmem:[%s3 + $0x18] sm:$0xff]
    %v59 = vld [vmem:[%s4] sm:$0x1]
    %v60 = vld [vmem:[%s5] sm:$0xff]
    %v61 = vld [vmem:[%s5 + $0x8] sm:$0xff]
    %v62 = vld [vmem:[%s5 + $0x10] sm:$0xff]
    %v63 = vld [vmem:[%s5 + $0x18] sm:$0xff]
    %v64 = vld [vmem:[%s6] sm:$0x1]
    %v65 = vld [vmem:[%s7] sm:$0x1]
    %v66 = vld [vmem:[%s8] sm:$0x1]
    %v67 = vld [vmem:[%s9] sm:$0xff]
    %v68 = vld [vmem:[%s9 + $0x8] sm:$0xff]
    %v69 = vld [vmem:[%s9 + $0x10] sm:$0xff]
    %v70 = vld [vmem:[%s9 + $0x18] sm:$0xff]
    %v71 = vld [vmem:[%s10] sm:$0x1]
    %v72 = vld [vmem:[%s11] sm:$0xff]
    %v73 = vld [vmem:[%s11 + $0x8] sm:$0xff]
    %v74 = vld [vmem:[%s11 + $0x10] sm:$0xff]
    %v75 = vld [vmem:[%s11 + $0x18] sm:$0xff]
    %v76 = vld [vmem:[%s11 + $0x20] sm:$0xff]
    %v77 = vld [vmem:[%s11 + $0x28] sm:$0xff]
    %v78 = vld [vmem:[%s11 + $0x30] sm:$0xff]
    %v79 = vld [vmem:[%s11 + $0x38] sm:$0xff]
    %v80 = vld [vmem:[%s12] sm:$0x1]
    %vm81 = vcmask 261120
    %v82 = vsel %vm81, %v51, 0.0
    %83 = vadd.xlane.f32.xlu0 %v82
    %v84 = vpop.xlane.xlu0 %83
    %v85 = vsel %vm81, %v52, 0.0
    %86 = vadd.xlane.f32.xlu0 %v85
    %v87 = vpop.xlane.xlu0 %86
    %v88 = vrcp.pop 32.0
    %v89 = vmul.f32 %v84, %v88
    %v90 = vmul.f32 %v87, %v88
    %v91 = vmul.f32 %v51, %v51
    %v92 = vmul.f32 %v52, %v52
    %v93 = vsel %vm81, %v91, 0.0
    %94 = vadd.xlane.f32.xlu0 %v93
    %v95 = vpop.xlane.xlu0 %94
    %v96 = vsel %vm81, %v92, 0.0
    %97 = vadd.xlane.f32.xlu0 %v96
    %v98 = vpop.xlane.xlu0 %97
    %v99 = vmul.f32 %v95, %v88
    %v100 = vmul.f32 %v98, %v88
    %v101 = vmul.f32 %v89, %v89
    %v102 = vmul.f32 %v90, %v90
    %v103 = vsub.f32 %v99, %v101
    %v104 = vsub.f32 %v100, %v102
    %v105 = vsub.f32 %v51, %v89
    %v106 = vsub.f32 %v52, %v90
    %v107 = vadd.f32 %v103, 1e-05
    %v108 = vadd.f32 %v104, 1e-05
    %v109 = vrsqrt.pop %v107
    %v110 = vrsqrt.pop %v108
    %v111 = vmul.f32 %v105, %v109
    %v112 = vmul.f32 %v106, %v110
    %v114 = vlaneseq
    %v115 = vshrl.u32 %v114, 7
    %v116 = vsub.s32 0, %v115
    %v117 = vrot.slane %v53, %v116
    %v119 = vmul.f32 %v111, %v117
    %v120 = vmul.f32 %v112, %v117
    %v122 = vlaneseq
    %v123 = vshrl.u32 %v122, 7
    %v124 = vsub.s32 0, %v123
    %v125 = vrot.slane %v54, %v124
    %v127 = vadd.f32 %v119, %v125
    %v128 = vadd.f32 %v120, %v125
    %v130 = vlaneseq
    %v131 = vshrl.u32 %v130, 7
    %v132 = vsub.s32 0, %v131
    %v133 = vrot.slane %v59, %v132
    %v136 = vsel %vm81, %v127, 0
    %v139 = vsel %vm81, %v128, 0
    %141 = vmatprep.subr.mxu0 0.0
    %142 = vmatpush1.msra.mxu0 0.0
    %143 = vmatprep.subr.mxu0 0.0
    %144 = vmatpush1.msra.mxu0 0.0
    %145 = vmatprep.subr.mxu0 0.0
    %146 = vmatpush1.msra.mxu0 0.0
    %147 = vmatprep.subr.mxu0 0.0
    %148 = vmatpush1.msra.mxu0 0.0
    %149 = vmatprep.subr.mxu0 0.0
    %150 = vmatpush1.msra.mxu0 0.0
    %151 = vmatprep.subr.mxu0 0.0
    %152 = vmatpush1.msra.mxu0 0.0
    %153 = vmatprep.subr.mxu0 0.0
    %154 = vmatpush1.msra.mxu0 0.0
    %155 = vmatprep.subr.mxu0 0.0
    %156 = vmatpush1.msra.mxu0 0.0
    %157 = vmatprep.subr.mxu0 0.0
    %158 = vmatpush1.msra.mxu0 0.0
    %159 = vmatprep.subr.mxu0 0.0
    %160 = vmatpush1.msra.mxu0 0.0
    %161 = vmatprep.subr.mxu0 0.0
    %162 = vmatpush1.msra.mxu0 0.0
    %163 = vmatprep.subr.mxu0 0.0
    %164 = vmatpush1.msra.mxu0 0.0
    %165 = vmatprep.subr.mxu0 0.0
    %166 = vmatpush1.msra.mxu0 %v58
    %167 = vmatprep.subr.mxu0 0.0
    %168 = vmatpush1.msra.mxu0 %v57
    %169 = vmatprep.subr.mxu0 0.0
    %170 = vmatpush1.msra.mxu0 %v56
    %171 = vmatprep.subr.mxu0 0.0
    %172 = vmatpush1.msra.mxu0 %v55
    %173 = vmatprep.subr.mxu0 0.0
    %174 = vmatpush2.msra.mxu0 0.0
    %175 = vmatprep.subr.mxu0 0.0
    %176 = vmatpush2.msra.mxu0 0.0
    %177 = vmatprep.subr.mxu0 0.0
    %178 = vmatpush2.msra.mxu0 0.0
    %179 = vmatprep.subr.mxu0 0.0
    %180 = vmatpush2.msra.mxu0 0.0
    %181 = vmatprep.subr.mxu0 0.0
    %182 = vmatpush2.msra.mxu0 0.0
    %183 = vmatprep.subr.mxu0 0.0
    %184 = vmatpush2.msra.mxu0 0.0
    %185 = vmatprep.subr.mxu0 0.0
    %186 = vmatpush2.msra.mxu0 0.0
    %187 = vmatprep.subr.mxu0 0.0
    %188 = vmatpush2.msra.mxu0 0.0
    %189 = vmatprep.subr.mxu0 0.0
    %190 = vmatpush2.msra.mxu0 0.0
    %191 = vmatprep.subr.mxu0 0.0
    %192 = vmatpush2.msra.mxu0 0.0
    %193 = vmatprep.subr.mxu0 0.0
    %194 = vmatpush2.msra.mxu0 0.0
    %195 = vmatprep.subr.mxu0 0.0
    %196 = vmatpush2.msra.mxu0 0.0
    %197 = vmatprep.subr.mxu0 0.0
    %198 = vmatpush2.msra.mxu0 0.0
    %199 = vmatprep.subr.mxu0 0.0
    %200 = vmatpush2.msra.mxu0 0.0
    %201 = vmatprep.subr.mxu0 0.0
    %202 = vmatpush2.msra.mxu0 0.0
    %203 = vmatprep.subr.mxu0 0.0
    %204 = vmatpush2.msra.mxu0 0.0
    %205 = vmatprep.mubr.f32.mxu0 0.0
    %206 = vmatmul.mubr.f32.gmra.mxu0 %v136
    %v207 = vpop.f32.mrf.mxu0
    %v208 = vadd.f32 %v133, %v207
    %v209 = vpop.f32.mrf.mxu0
    %210 = vmatprep.mubr.f32.mxu0 0.0
    %211 = vmatmul.mubr.f32.gmra.mxu0 %v139
    %v212 = vpop.f32.mrf.mxu0
    %v213 = vadd.f32 %v133, %v212
    %v214 = vpop.f32.mrf.mxu0
    %215 = vdwg.mxu0
    %218 = vrot.lane.b32.xlu0 %v208, 120
    %v219 = vpop.permute.xlu0 %218
    %220 = vrot.lane.b32.xlu0 %v213, 120
    %v221 = vpop.permute.xlu0 %220
    %222 = vrot.lane.b32.xlu0 %v208, 112
    %v223 = vpop.permute.xlu0 %222
    %224 = vrot.lane.b32.xlu0 %v213, 112
    %v225 = vpop.permute.xlu0 %224
    %226 = vrot.lane.b32.xlu0 %v208, 104
    %v227 = vpop.permute.xlu0 %226
    %228 = vrot.lane.b32.xlu0 %v213, 104
    %v229 = vpop.permute.xlu0 %228
    %230 = vrot.lane.b32.xlu0 %v208, 96
    %v231 = vpop.permute.xlu0 %230
    %vm232 = vcmask 64512
    %v233 = vsel %vm232, %v208, 0
    %v235 = vsel %vm232, %v231, 0
    %237 = vmatprep.subr.mxu0 0.0
    %238 = vmatpush1.xpose.msra.mxu0 0.0
    %239 = vmatprep.subr.mxu0 0.0
    %240 = vmatpush1.xpose.msra.mxu0 0.0
    %241 = vmatprep.subr.mxu0 0.0
    %242 = vmatpush1.xpose.msra.mxu0 0.0
    %243 = vmatprep.subr.mxu0 0.0
    %244 = vmatpush1.xpose.msra.mxu0 0.0
    %245 = vmatprep.subr.mxu0 0.0
    %246 = vmatpush1.xpose.msra.mxu0 0.0
    %247 = vmatprep.subr.mxu0 0.0
    %248 = vmatpush1.xpose.msra.mxu0 0.0
    %249 = vmatprep.subr.mxu0 0.0
    %250 = vmatpush1.xpose.msra.mxu0 0.0
    %251 = vmatprep.subr.mxu0 0.0
    %252 = vmatpush1.xpose.msra.mxu0 0.0
    %253 = vmatprep.subr.mxu0 0.0
    %254 = vmatpush1.xpose.msra.mxu0 0.0
    %255 = vmatprep.subr.mxu0 0.0
    %256 = vmatpush1.xpose.msra.mxu0 0.0
    %257 = vmatprep.subr.mxu0 0.0
    %258 = vmatpush1.xpose.msra.mxu0 0.0
    %259 = vmatprep.subr.mxu0 0.0
    %260 = vmatpush1.xpose.msra.mxu0 0.0
    %261 = vmatprep.subr.mxu0 0.0
    %262 = vmatpush1.xpose.msra.mxu0 0.0
    %263 = vmatprep.subr.mxu0 0.0
    %264 = vmatpush1.xpose.msra.mxu0 0.0
    %265 = vmatprep.subr.mxu0 0.0
    %266 = vmatpush1.xpose.msra.mxu0 0.0
    %267 = vmatprep.subr.mxu0 0.0
    %268 = vmatpush1.xpose.msra.mxu0 %v235
    %269 = vmatprep.subr.mxu0 0.0
    %270 = vmatpush2.xpose.msra.mxu0 0.0
    %271 = vmatprep.subr.mxu0 0.0
    %272 = vmatpush2.xpose.msra.mxu0 0.0
    %273 = vmatprep.subr.mxu0 0.0
    %274 = vmatpush2.xpose.msra.mxu0 0.0
    %275 = vmatprep.subr.mxu0 0.0
    %276 = vmatpush2.xpose.msra.mxu0 0.0
    %277 = vmatprep.subr.mxu0 0.0
    %278 = vmatpush2.xpose.msra.mxu0 0.0
    %279 = vmatprep.subr.mxu0 0.0
    %280 = vmatpush2.xpose.msra.mxu0 0.0
    %281 = vmatprep.subr.mxu0 0.0
    %282 = vmatpush2.xpose.msra.mxu0 0.0
    %283 = vmatprep.subr.mxu0 0.0
    %284 = vmatpush2.xpose.msra.mxu0 0.0
    %285 = vmatprep.subr.mxu0 0.0
    %286 = vmatpush2.xpose.msra.mxu0 0.0
    %287 = vmatprep.subr.mxu0 0.0
    %288 = vmatpush2.xpose.msra.mxu0 0.0
    %289 = vmatprep.subr.mxu0 0.0
    %290 = vmatpush2.xpose.msra.mxu0 0.0
    %291 = vmatprep.subr.mxu0 0.0
    %292 = vmatpush2.xpose.msra.mxu0 0.0
    %293 = vmatprep.subr.mxu0 0.0
    %294 = vmatpush2.xpose.msra.mxu0 0.0
    %295 = vmatprep.subr.mxu0 0.0
    %296 = vmatpush2.xpose.msra.mxu0 0.0
    %297 = vmatprep.subr.mxu0 0.0
    %298 = vmatpush2.xpose.msra.mxu0 0.0
    %299 = vmatprep.subr.mxu0 0.0
    %300 = vmatpush2.xpose.msra.mxu0 0.0
    %301 = vmatprep.mubr.f32.mxu0 0.0
    %302 = vmatmul.mubr.f32.gmra.mxu0 %v233
    %v303 = vpop.f32.mrf.mxu0
    %v304 = vadd.f32 0.0, %v303
    %v305 = vpop.f32.mrf.mxu0
    %306 = vdwg.mxu0
    %307 = vrot.lane.b32.xlu0 %v213, 96
    %v308 = vpop.permute.xlu0 %307
    %v309 = vsel %vm232, %v213, 0
    %v311 = vsel %vm232, %v308, 0
    %313 = vmatprep.subr.mxu0 0.0
    %314 = vmatpush1.xpose.msra.mxu0 0.0
    %315 = vmatprep.subr.mxu0 0.0
    %316 = vmatpush1.xpose.msra.mxu0 0.0
    %317 = vmatprep.subr.mxu0 0.0
    %318 = vmatpush1.xpose.msra.mxu0 0.0
    %319 = vmatprep.subr.mxu0 0.0
    %320 = vmatpush1.xpose.msra.mxu0 0.0
    %321 = vmatprep.subr.mxu0 0.0
    %322 = vmatpush1.xpose.msra.mxu0 0.0
    %323 = vmatprep.subr.mxu0 0.0
    %324 = vmatpush1.xpose.msra.mxu0 0.0
    %325 = vmatprep.subr.mxu0 0.0
    %326 = vmatpush1.xpose.msra.mxu0 0.0
    %327 = vmatprep.subr.mxu0 0.0
    %328 = vmatpush1.xpose.msra.mxu0 0.0
    %329 = vmatprep.subr.mxu0 0.0
    %330 = vmatpush1.xpose.msra.mxu0 0.0
    %331 = vmatprep.subr.mxu0 0.0
    %332 = vmatpush1.xpose.msra.mxu0 0.0
    %333 = vmatprep.subr.mxu0 0.0
    %334 = vmatpush1.xpose.msra.mxu0 0.0
    %335 = vmatprep.subr.mxu0 0.0
    %336 = vmatpush1.xpose.msra.mxu0 0.0
    %337 = vmatprep.subr.mxu0 0.0
    %338 = vmatpush1.xpose.msra.mxu0 0.0
    %339 = vmatprep.subr.mxu0 0.0
    %340 = vmatpush1.xpose.msra.mxu0 0.0
    %341 = vmatprep.subr.mxu0 0.0
    %342 = vmatpush1.xpose.msra.mxu0 0.0
    %343 = vmatprep.subr.mxu0 0.0
    %344 = vmatpush1.xpose.msra.mxu0 %v311
    %345 = vmatprep.subr.mxu0 0.0
    %346 = vmatpush2.xpose.msra.mxu0 0.0
    %347 = vmatprep.subr.mxu0 0.0
    %348 = vmatpush2.xpose.msra.mxu0 0.0
    %349 = vmatprep.subr.mxu0 0.0
    %350 = vmatpush2.xpose.msra.mxu0 0.0
    %351 = vmatprep.subr.mxu0 0.0
    %352 = vmatpush2.xpose.msra.mxu0 0.0
    %353 = vmatprep.subr.mxu0 0.0
    %354 = vmatpush2.xpose.msra.mxu0 0.0
    %355 = vmatprep.subr.mxu0 0.0
    %356 = vmatpush2.xpose.msra.mxu0 0.0
    %357 = vmatprep.subr.mxu0 0.0
    %358 = vmatpush2.xpose.msra.mxu0 0.0
    %359 = vmatprep.subr.mxu0 0.0
    %360 = vmatpush2.xpose.msra.mxu0 0.0
    %361 = vmatprep.subr.mxu0 0.0
    %362 = vmatpush2.xpose.msra.mxu0 0.0
    %363 = vmatprep.subr.mxu0 0.0
    %364 = vmatpush2.xpose.msra.mxu0 0.0
    %365 = vmatprep.subr.mxu0 0.0
    %366 = vmatpush2.xpose.msra.mxu0 0.0
    %367 = vmatprep.subr.mxu0 0.0
    %368 = vmatpush2.xpose.msra.mxu0 0.0
    %369 = vmatprep.subr.mxu0 0.0
    %370 = vmatpush2.xpose.msra.mxu0 0.0
    %371 = vmatprep.subr.mxu0 0.0
    %372 = vmatpush2.xpose.msra.mxu0 0.0
    %373 = vmatprep.subr.mxu0 0.0
    %374 = vmatpush2.xpose.msra.mxu0 0.0
    %375 = vmatprep.subr.mxu0 0.0
    %376 = vmatpush2.xpose.msra.mxu0 0.0
    %377 = vmatprep.mubr.f32.mxu0 0.0
    %378 = vmatmul.mubr.f32.gmra.mxu0 %v309
    %v379 = vpop.f32.mrf.mxu0
    %v380 = vadd.f32 0.0, %v379
    %v381 = vpop.f32.mrf.mxu0
    %382 = vdwg.mxu0
    %383 = vrot.lane.b32.xlu0 %v219, 96
    %v384 = vpop.permute.xlu0 %383
    %v385 = vsel %vm232, %v219, 0
    %v387 = vsel %vm232, %v384, 0
    %389 = vmatprep.subr.mxu0 0.0
    %390 = vmatpush1.xpose.msra.mxu0 0.0
    %391 = vmatprep.subr.mxu0 0.0
    %392 = vmatpush1.xpose.msra.mxu0 0.0
    %393 = vmatprep.subr.mxu0 0.0
    %394 = vmatpush1.xpose.msra.mxu0 0.0
    %395 = vmatprep.subr.mxu0 0.0
    %396 = vmatpush1.xpose.msra.mxu0 0.0
    %397 = vmatprep.subr.mxu0 0.0
    %398 = vmatpush1.xpose.msra.mxu0 0.0
    %399 = vmatprep.subr.mxu0 0.0
    %400 = vmatpush1.xpose.msra.mxu0 0.0
    %401 = vmatprep.subr.mxu0 0.0
    %402 = vmatpush1.xpose.msra.mxu0 0.0
    %403 = vmatprep.subr.mxu0 0.0
    %404 = vmatpush1.xpose.msra.mxu0 0.0
    %405 = vmatprep.subr.mxu0 0.0
    %406 = vmatpush1.xpose.msra.mxu0 0.0
    %407 = vmatprep.subr.mxu0 0.0
    %408 = vmatpush1.xpose.msra.mxu0 0.0
    %409 = vmatprep.subr.mxu0 0.0
    %410 = vmatpush1.xpose.msra.mxu0 0.0
    %411 = vmatprep.subr.mxu0 0.0
    %412 = vmatpush1.xpose.msra.mxu0 0.0
    %413 = vmatprep.subr.mxu0 0.0
    %414 = vmatpush1.xpose.msra.mxu0 0.0
    %415 = vmatprep.subr.mxu0 0.0
    %416 = vmatpush1.xpose.msra.mxu0 0.0
    %417 = vmatprep.subr.mxu0 0.0
    %418 = vmatpush1.xpose.msra.mxu0 0.0
    %419 = vmatprep.subr.mxu0 0.0
    %420 = vmatpush1.xpose.msra.mxu0 %v387
    %421 = vmatprep.subr.mxu0 0.0
    %422 = vmatpush2.xpose.msra.mxu0 0.0
    %423 = vmatprep.subr.mxu0 0.0
    %424 = vmatpush2.xpose.msra.mxu0 0.0
    %425 = vmatprep.subr.mxu0 0.0
    %426 = vmatpush2.xpose.msra.mxu0 0.0
    %427 = vmatprep.subr.mxu0 0.0
    %428 = vmatpush2.xpose.msra.mxu0 0.0
    %429 = vmatprep.subr.mxu0 0.0
    %430 = vmatpush2.xpose.msra.mxu0 0.0
    %431 = vmatprep.subr.mxu0 0.0
    %432 = vmatpush2.xpose.msra.mxu0 0.0
    %433 = vmatprep.subr.mxu0 0.0
    %434 = vmatpush2.xpose.msra.mxu0 0.0
    %435 = vmatprep.subr.mxu0 0.0
    %436 = vmatpush2.xpose.msra.mxu0 0.0
    %437 = vmatprep.subr.mxu0 0.0
    %438 = vmatpush2.xpose.msra.mxu0 0.0
    %439 = vmatprep.subr.mxu0 0.0
    %440 = vmatpush2.xpose.msra.mxu0 0.0
    %441 = vmatprep.subr.mxu0 0.0
    %442 = vmatpush2.xpose.msra.mxu0 0.0
    %443 = vmatprep.subr.mxu0 0.0
    %444 = vmatpush2.xpose.msra.mxu0 0.0
    %445 = vmatprep.subr.mxu0 0.0
    %446 = vmatpush2.xpose.msra.mxu0 0.0
    %447 = vmatprep.subr.mxu0 0.0
    %448 = vmatpush2.xpose.msra.mxu0 0.0
    %449 = vmatprep.subr.mxu0 0.0
    %450 = vmatpush2.xpose.msra.mxu0 0.0
    %451 = vmatprep.subr.mxu0 0.0
    %452 = vmatpush2.xpose.msra.mxu0 0.0
    %453 = vmatprep.mubr.f32.mxu0 0.0
    %454 = vmatmul.mubr.f32.gmra.mxu0 %v385
    %v455 = vpop.f32.mrf.mxu0
    %v456 = vadd.f32 0.0, %v455
    %v457 = vpop.f32.mrf.mxu0
    %458 = vdwg.mxu0
    %459 = vrot.lane.b32.xlu0 %v221, 96
    %v460 = vpop.permute.xlu0 %459
    %v461 = vsel %vm232, %v221, 0
    %v463 = vsel %vm232, %v460, 0
    %465 = vmatprep.subr.mxu0 0.0
    %466 = vmatpush1.xpose.msra.mxu0 0.0
    %467 = vmatprep.subr.mxu0 0.0
    %468 = vmatpush1.xpose.msra.mxu0 0.0
    %469 = vmatprep.subr.mxu0 0.0
    %470 = vmatpush1.xpose.msra.mxu0 0.0
    %471 = vmatprep.subr.mxu0 0.0
    %472 = vmatpush1.xpose.msra.mxu0 0.0
    %473 = vmatprep.subr.mxu0 0.0
    %474 = vmatpush1.xpose.msra.mxu0 0.0
    %475 = vmatprep.subr.mxu0 0.0
    %476 = vmatpush1.xpose.msra.mxu0 0.0
    %477 = vmatprep.subr.mxu0 0.0
    %478 = vmatpush1.xpose.msra.mxu0 0.0
    %479 = vmatprep.subr.mxu0 0.0
    %480 = vmatpush1.xpose.msra.mxu0 0.0
    %481 = vmatprep.subr.mxu0 0.0
    %482 = vmatpush1.xpose.msra.mxu0 0.0
    %483 = vmatprep.subr.mxu0 0.0
    %484 = vmatpush1.xpose.msra.mxu0 0.0
    %485 = vmatprep.subr.mxu0 0.0
    %486 = vmatpush1.xpose.msra.mxu0 0.0
    %487 = vmatprep.subr.mxu0 0.0
    %488 = vmatpush1.xpose.msra.mxu0 0.0
    %489 = vmatprep.subr.mxu0 0.0
    %490 = vmatpush1.xpose.msra.mxu0 0.0
    %491 = vmatprep.subr.mxu0 0.0
    %492 = vmatpush1.xpose.msra.mxu0 0.0
    %493 = vmatprep.subr.mxu0 0.0
    %494 = vmatpush1.xpose.msra.mxu0 0.0
    %495 = vmatprep.subr.mxu0 0.0
    %496 = vmatpush1.xpose.msra.mxu0 %v463
    %497 = vmatprep.subr.mxu0 0.0
    %498 = vmatpush2.xpose.msra.mxu0 0.0
    %499 = vmatprep.subr.mxu0 0.0
    %500 = vmatpush2.xpose.msra.mxu0 0.0
    %501 = vmatprep.subr.mxu0 0.0
    %502 = vmatpush2.xpose.msra.mxu0 0.0
    %503 = vmatprep.subr.mxu0 0.0
    %504 = vmatpush2.xpose.msra.mxu0 0.0
    %505 = vmatprep.subr.mxu0 0.0
    %506 = vmatpush2.xpose.msra.mxu0 0.0
    %507 = vmatprep.subr.mxu0 0.0
    %508 = vmatpush2.xpose.msra.mxu0 0.0
    %509 = vmatprep.subr.mxu0 0.0
    %510 = vmatpush2.xpose.msra.mxu0 0.0
    %511 = vmatprep.subr.mxu0 0.0
    %512 = vmatpush2.xpose.msra.mxu0 0.0
    %513 = vmatprep.subr.mxu0 0.0
    %514 = vmatpush2.xpose.msra.mxu0 0.0
    %515 = vmatprep.subr.mxu0 0.0
    %516 = vmatpush2.xpose.msra.mxu0 0.0
    %517 = vmatprep.subr.mxu0 0.0
    %518 = vmatpush2.xpose.msra.mxu0 0.0
    %519 = vmatprep.subr.mxu0 0.0
    %520 = vmatpush2.xpose.msra.mxu0 0.0
    %521 = vmatprep.subr.mxu0 0.0
    %522 = vmatpush2.xpose.msra.mxu0 0.0
    %523 = vmatprep.subr.mxu0 0.0
    %524 = vmatpush2.xpose.msra.mxu0 0.0
    %525 = vmatprep.subr.mxu0 0.0
    %526 = vmatpush2.xpose.msra.mxu0 0.0
    %527 = vmatprep.subr.mxu0 0.0
    %528 = vmatpush2.xpose.msra.mxu0 0.0
    %529 = vmatprep.mubr.f32.mxu0 0.0
    %530 = vmatmul.mubr.f32.gmra.mxu0 %v461
    %v531 = vpop.f32.mrf.mxu0
    %v532 = vadd.f32 0.0, %v531
    %v533 = vpop.f32.mrf.mxu0
    %534 = vdwg.mxu0
    %535 = vrot.lane.b32.xlu0 %v223, 96
    %v536 = vpop.permute.xlu0 %535
    %v537 = vsel %vm232, %v223, 0
    %v539 = vsel %vm232, %v536, 0
    %541 = vmatprep.subr.mxu0 0.0
    %542 = vmatpush1.xpose.msra.mxu0 0.0
    %543 = vmatprep.subr.mxu0 0.0
    %544 = vmatpush1.xpose.msra.mxu0 0.0
    %545 = vmatprep.subr.mxu0 0.0
    %546 = vmatpush1.xpose.msra.mxu0 0.0
    %547 = vmatprep.subr.mxu0 0.0
    %548 = vmatpush1.xpose.msra.mxu0 0.0
    %549 = vmatprep.subr.mxu0 0.0
    %550 = vmatpush1.xpose.msra.mxu0 0.0
    %551 = vmatprep.subr.mxu0 0.0
    %552 = vmatpush1.xpose.msra.mxu0 0.0
    %553 = vmatprep.subr.mxu0 0.0
    %554 = vmatpush1.xpose.msra.mxu0 0.0
    %555 = vmatprep.subr.mxu0 0.0
    %556 = vmatpush1.xpose.msra.mxu0 0.0
    %557 = vmatprep.subr.mxu0 0.0
    %558 = vmatpush1.xpose.msra.mxu0 0.0
    %559 = vmatprep.subr.mxu0 0.0
    %560 = vmatpush1.xpose.msra.mxu0 0.0
    %561 = vmatprep.subr.mxu0 0.0
    %562 = vmatpush1.xpose.msra.mxu0 0.0
    %563 = vmatprep.subr.mxu0 0.0
    %564 = vmatpush1.xpose.msra.mxu0 0.0
    %565 = vmatprep.subr.mxu0 0.0
    %566 = vmatpush1.xpose.msra.mxu0 0.0
    %567 = vmatprep.subr.mxu0 0.0
    %568 = vmatpush1.xpose.msra.mxu0 0.0
    %569 = vmatprep.subr.mxu0 0.0
    %570 = vmatpush1.xpose.msra.mxu0 0.0
    %571 = vmatprep.subr.mxu0 0.0
    %572 = vmatpush1.xpose.msra.mxu0 %v539
    %573 = vmatprep.subr.mxu0 0.0
    %574 = vmatpush2.xpose.msra.mxu0 0.0
    %575 = vmatprep.subr.mxu0 0.0
    %576 = vmatpush2.xpose.msra.mxu0 0.0
    %577 = vmatprep.subr.mxu0 0.0
    %578 = vmatpush2.xpose.msra.mxu0 0.0
    %579 = vmatprep.subr.mxu0 0.0
    %580 = vmatpush2.xpose.msra.mxu0 0.0
    %581 = vmatprep.subr.mxu0 0.0
    %582 = vmatpush2.xpose.msra.mxu0 0.0
    %583 = vmatprep.subr.mxu0 0.0
    %584 = vmatpush2.xpose.msra.mxu0 0.0
    %585 = vmatprep.subr.mxu0 0.0
    %586 = vmatpush2.xpose.msra.mxu0 0.0
    %587 = vmatprep.subr.mxu0 0.0
    %588 = vmatpush2.xpose.msra.mxu0 0.0
    %589 = vmatprep.subr.mxu0 0.0
    %590 = vmatpush2.xpose.msra.mxu0 0.0
    %591 = vmatprep.subr.mxu0 0.0
    %592 = vmatpush2.xpose.msra.mxu0 0.0
    %593 = vmatprep.subr.mxu0 0.0
    %594 = vmatpush2.xpose.msra.mxu0 0.0
    %595 = vmatprep.subr.mxu0 0.0
    %596 = vmatpush2.xpose.msra.mxu0 0.0
    %597 = vmatprep.subr.mxu0 0.0
    %598 = vmatpush2.xpose.msra.mxu0 0.0
    %599 = vmatprep.subr.mxu0 0.0
    %600 = vmatpush2.xpose.msra.mxu0 0.0
    %601 = vmatprep.subr.mxu0 0.0
    %602 = vmatpush2.xpose.msra.mxu0 0.0
    %603 = vmatprep.subr.mxu0 0.0
    %604 = vmatpush2.xpose.msra.mxu0 0.0
    %605 = vmatprep.mubr.f32.mxu0 0.0
    %606 = vmatmul.mubr.f32.gmra.mxu0 %v537
    %v607 = vpop.f32.mrf.mxu0
    %v608 = vadd.f32 0.0, %v607
    %v609 = vpop.f32.mrf.mxu0
    %610 = vdwg.mxu0
    %611 = vrot.lane.b32.xlu0 %v225, 96
    %v612 = vpop.permute.xlu0 %611
    %v613 = vsel %vm232, %v225, 0
    %v615 = vsel %vm232, %v612, 0
    %617 = vmatprep.subr.mxu0 0.0
    %618 = vmatpush1.xpose.msra.mxu0 0.0
    %619 = vmatprep.subr.mxu0 0.0
    %620 = vmatpush1.xpose.msra.mxu0 0.0
    %621 = vmatprep.subr.mxu0 0.0
    %622 = vmatpush1.xpose.msra.mxu0 0.0
    %623 = vmatprep.subr.mxu0 0.0
    %624 = vmatpush1.xpose.msra.mxu0 0.0
    %625 = vmatprep.subr.mxu0 0.0
    %626 = vmatpush1.xpose.msra.mxu0 0.0
    %627 = vmatprep.subr.mxu0 0.0
    %628 = vmatpush1.xpose.msra.mxu0 0.0
    %629 = vmatprep.subr.mxu0 0.0
    %630 = vmatpush1.xpose.msra.mxu0 0.0
    %631 = vmatprep.subr.mxu0 0.0
    %632 = vmatpush1.xpose.msra.mxu0 0.0
    %633 = vmatprep.subr.mxu0 0.0
    %634 = vmatpush1.xpose.msra.mxu0 0.0
    %635 = vmatprep.subr.mxu0 0.0
    %636 = vmatpush1.xpose.msra.mxu0 0.0
    %637 = vmatprep.subr.mxu0 0.0
    %638 = vmatpush1.xpose.msra.mxu0 0.0
    %639 = vmatprep.subr.mxu0 0.0
    %640 = vmatpush1.xpose.msra.mxu0 0.0
    %641 = vmatprep.subr.mxu0 0.0
    %642 = vmatpush1.xpose.msra.mxu0 0.0
    %643 = vmatprep.subr.mxu0 0.0
    %644 = vmatpush1.xpose.msra.mxu0 0.0
    %645 = vmatprep.subr.mxu0 0.0
    %646 = vmatpush1.xpose.msra.mxu0 0.0
    %647 = vmatprep.subr.mxu0 0.0
    %648 = vmatpush1.xpose.msra.mxu0 %v615
    %649 = vmatprep.subr.mxu0 0.0
    %650 = vmatpush2.xpose.msra.mxu0 0.0
    %651 = vmatprep.subr.mxu0 0.0
    %652 = vmatpush2.xpose.msra.mxu0 0.0
    %653 = vmatprep.subr.mxu0 0.0
    %654 = vmatpush2.xpose.msra.mxu0 0.0
    %655 = vmatprep.subr.mxu0 0.0
    %656 = vmatpush2.xpose.msra.mxu0 0.0
    %657 = vmatprep.subr.mxu0 0.0
    %658 = vmatpush2.xpose.msra.mxu0 0.0
    %659 = vmatprep.subr.mxu0 0.0
    %660 = vmatpush2.xpose.msra.mxu0 0.0
    %661 = vmatprep.subr.mxu0 0.0
    %662 = vmatpush2.xpose.msra.mxu0 0.0
    %663 = vmatprep.subr.mxu0 0.0
    %664 = vmatpush2.xpose.msra.mxu0 0.0
    %665 = vmatprep.subr.mxu0 0.0
    %666 = vmatpush2.xpose.msra.mxu0 0.0
    %667 = vmatprep.subr.mxu0 0.0
    %668 = vmatpush2.xpose.msra.mxu0 0.0
    %669 = vmatprep.subr.mxu0 0.0
    %670 = vmatpush2.xpose.msra.mxu0 0.0
    %671 = vmatprep.subr.mxu0 0.0
    %672 = vmatpush2.xpose.msra.mxu0 0.0
    %673 = vmatprep.subr.mxu0 0.0
    %674 = vmatpush2.xpose.msra.mxu0 0.0
    %675 = vmatprep.subr.mxu0 0.0
    %676 = vmatpush2.xpose.msra.mxu0 0.0
    %677 = vmatprep.subr.mxu0 0.0
    %678 = vmatpush2.xpose.msra.mxu0 0.0
    %679 = vmatprep.subr.mxu0 0.0
    %680 = vmatpush2.xpose.msra.mxu0 0.0
    %681 = vmatprep.mubr.f32.mxu0 0.0
    %682 = vmatmul.mubr.f32.gmra.mxu0 %v613
    %v683 = vpop.f32.mrf.mxu0
    %v684 = vadd.f32 0.0, %v683
    %v685 = vpop.f32.mrf.mxu0
    %686 = vdwg.mxu0
    %687 = vrot.lane.b32.xlu0 %v227, 96
    %v688 = vpop.permute.xlu0 %687
    %v689 = vsel %vm232, %v227, 0
    %v691 = vsel %vm232, %v688, 0
    %693 = vmatprep.subr.mxu0 0.0
    %694 = vmatpush1.xpose.msra.mxu0 0.0
    %695 = vmatprep.subr.mxu0 0.0
    %696 = vmatpush1.xpose.msra.mxu0 0.0
    %697 = vmatprep.subr.mxu0 0.0
    %698 = vmatpush1.xpose.msra.mxu0 0.0
    %699 = vmatprep.subr.mxu0 0.0
    %700 = vmatpush1.xpose.msra.mxu0 0.0
    %701 = vmatprep.subr.mxu0 0.0
    %702 = vmatpush1.xpose.msra.mxu0 0.0
    %703 = vmatprep.subr.mxu0 0.0
    %704 = vmatpush1.xpose.msra.mxu0 0.0
    %705 = vmatprep.subr.mxu0 0.0
    %706 = vmatpush1.xpose.msra.mxu0 0.0
    %707 = vmatprep.subr.mxu0 0.0
    %708 = vmatpush1.xpose.msra.mxu0 0.0
    %709 = vmatprep.subr.mxu0 0.0
    %710 = vmatpush1.xpose.msra.mxu0 0.0
    %711 = vmatprep.subr.mxu0 0.0
    %712 = vmatpush1.xpose.msra.mxu0 0.0
    %713 = vmatprep.subr.mxu0 0.0
    %714 = vmatpush1.xpose.msra.mxu0 0.0
    %715 = vmatprep.subr.mxu0 0.0
    %716 = vmatpush1.xpose.msra.mxu0 0.0
    %717 = vmatprep.subr.mxu0 0.0
    %718 = vmatpush1.xpose.msra.mxu0 0.0
    %719 = vmatprep.subr.mxu0 0.0
    %720 = vmatpush1.xpose.msra.mxu0 0.0
    %721 = vmatprep.subr.mxu0 0.0
    %722 = vmatpush1.xpose.msra.mxu0 0.0
    %723 = vmatprep.subr.mxu0 0.0
    %724 = vmatpush1.xpose.msra.mxu0 %v691
    %725 = vmatprep.subr.mxu0 0.0
    %726 = vmatpush2.xpose.msra.mxu0 0.0
    %727 = vmatprep.subr.mxu0 0.0
    %728 = vmatpush2.xpose.msra.mxu0 0.0
    %729 = vmatprep.subr.mxu0 0.0
    %730 = vmatpush2.xpose.msra.mxu0 0.0
    %731 = vmatprep.subr.mxu0 0.0
    %732 = vmatpush2.xpose.msra.mxu0 0.0
    %733 = vmatprep.subr.mxu0 0.0
    %734 = vmatpush2.xpose.msra.mxu0 0.0
    %735 = vmatprep.subr.mxu0 0.0
    %736 = vmatpush2.xpose.msra.mxu0 0.0
    %737 = vmatprep.subr.mxu0 0.0
    %738 = vmatpush2.xpose.msra.mxu0 0.0
    %739 = vmatprep.subr.mxu0 0.0
    %740 = vmatpush2.xpose.msra.mxu0 0.0
    %741 = vmatprep.subr.mxu0 0.0
    %742 = vmatpush2.xpose.msra.mxu0 0.0
    %743 = vmatprep.subr.mxu0 0.0
    %744 = vmatpush2.xpose.msra.mxu0 0.0
    %745 = vmatprep.subr.mxu0 0.0
    %746 = vmatpush2.xpose.msra.mxu0 0.0
    %747 = vmatprep.subr.mxu0 0.0
    %748 = vmatpush2.xpose.msra.mxu0 0.0
    %749 = vmatprep.subr.mxu0 0.0
    %750 = vmatpush2.xpose.msra.mxu0 0.0
    %751 = vmatprep.subr.mxu0 0.0
    %752 = vmatpush2.xpose.msra.mxu0 0.0
    %753 = vmatprep.subr.mxu0 0.0
    %754 = vmatpush2.xpose.msra.mxu0 0.0
    %755 = vmatprep.subr.mxu0 0.0
    %756 = vmatpush2.xpose.msra.mxu0 0.0
    %757 = vmatprep.mubr.f32.mxu0 0.0
    %758 = vmatmul.mubr.f32.gmra.mxu0 %v689
    %v759 = vpop.f32.mrf.mxu0
    %v760 = vadd.f32 0.0, %v759
    %v761 = vpop.f32.mrf.mxu0
    %762 = vdwg.mxu0
    %763 = vrot.lane.b32.xlu0 %v229, 96
    %v764 = vpop.permute.xlu0 %763
    %v765 = vsel %vm232, %v229, 0
    %v767 = vsel %vm232, %v764, 0
    %769 = vmatprep.subr.mxu0 0.0
    %770 = vmatpush1.xpose.msra.mxu0 0.0
    %771 = vmatprep.subr.mxu0 0.0
    %772 = vmatpush1.xpose.msra.mxu0 0.0
    %773 = vmatprep.subr.mxu0 0.0
    %774 = vmatpush1.xpose.msra.mxu0 0.0
    %775 = vmatprep.subr.mxu0 0.0
    %776 = vmatpush1.xpose.msra.mxu0 0.0
    %777 = vmatprep.subr.mxu0 0.0
    %778 = vmatpush1.xpose.msra.mxu0 0.0
    %779 = vmatprep.subr.mxu0 0.0
    %780 = vmatpush1.xpose.msra.mxu0 0.0
    %781 = vmatprep.subr.mxu0 0.0
    %782 = vmatpush1.xpose.msra.mxu0 0.0
    %783 = vmatprep.subr.mxu0 0.0
    %784 = vmatpush1.xpose.msra.mxu0 0.0
    %785 = vmatprep.subr.mxu0 0.0
    %786 = vmatpush1.xpose.msra.mxu0 0.0
    %787 = vmatprep.subr.mxu0 0.0
    %788 = vmatpush1.xpose.msra.mxu0 0.0
    %789 = vmatprep.subr.mxu0 0.0
    %790 = vmatpush1.xpose.msra.mxu0 0.0
    %791 = vmatprep.subr.mxu0 0.0
    %792 = vmatpush1.xpose.msra.mxu0 0.0
    %793 = vmatprep.subr.mxu0 0.0
    %794 = vmatpush1.xpose.msra.mxu0 0.0
    %795 = vmatprep.subr.mxu0 0.0
    %796 = vmatpush1.xpose.msra.mxu0 0.0
    %797 = vmatprep.subr.mxu0 0.0
    %798 = vmatpush1.xpose.msra.mxu0 0.0
    %799 = vmatprep.subr.mxu0 0.0
    %800 = vmatpush1.xpose.msra.mxu0 %v767
    %801 = vmatprep.subr.mxu0 0.0
    %802 = vmatpush2.xpose.msra.mxu0 0.0
    %803 = vmatprep.subr.mxu0 0.0
    %804 = vmatpush2.xpose.msra.mxu0 0.0
    %805 = vmatprep.subr.mxu0 0.0
    %806 = vmatpush2.xpose.msra.mxu0 0.0
    %807 = vmatprep.subr.mxu0 0.0
    %808 = vmatpush2.xpose.msra.mxu0 0.0
    %809 = vmatprep.subr.mxu0 0.0
    %810 = vmatpush2.xpose.msra.mxu0 0.0
    %811 = vmatprep.subr.mxu0 0.0
    %812 = vmatpush2.xpose.msra.mxu0 0.0
    %813 = vmatprep.subr.mxu0 0.0
    %814 = vmatpush2.xpose.msra.mxu0 0.0
    %815 = vmatprep.subr.mxu0 0.0
    %816 = vmatpush2.xpose.msra.mxu0 0.0
    %817 = vmatprep.subr.mxu0 0.0
    %818 = vmatpush2.xpose.msra.mxu0 0.0
    %819 = vmatprep.subr.mxu0 0.0
    %820 = vmatpush2.xpose.msra.mxu0 0.0
    %821 = vmatprep.subr.mxu0 0.0
    %822 = vmatpush2.xpose.msra.mxu0 0.0
    %823 = vmatprep.subr.mxu0 0.0
    %824 = vmatpush2.xpose.msra.mxu0 0.0
    %825 = vmatprep.subr.mxu0 0.0
    %826 = vmatpush2.xpose.msra.mxu0 0.0
    %827 = vmatprep.subr.mxu0 0.0
    %828 = vmatpush2.xpose.msra.mxu0 0.0
    %829 = vmatprep.subr.mxu0 0.0
    %830 = vmatpush2.xpose.msra.mxu0 0.0
    %831 = vmatprep.subr.mxu0 0.0
    %832 = vmatpush2.xpose.msra.mxu0 0.0
    %833 = vmatprep.mubr.f32.mxu0 0.0
    %834 = vmatmul.mubr.f32.gmra.mxu0 %v765
    %v835 = vpop.f32.mrf.mxu0
    %v836 = vadd.f32 0.0, %v835
    %v837 = vpop.f32.mrf.mxu0
    %838 = vdwg.mxu0
    %v839 = vsel %vm232, %v304, -inf
    %840 = vmax.xlane.f32.xlu0 %v839
    %v841 = vpop.xlane.xlu0 %840
    %v842 = vsel %vm232, %v380, -inf
    %843 = vmax.xlane.f32.xlu0 %v842
    %v844 = vpop.xlane.xlu0 %843
    %v845 = vsel %vm232, %v456, -inf
    %846 = vmax.xlane.f32.xlu0 %v845
    %v847 = vpop.xlane.xlu0 %846
    %v848 = vsel %vm232, %v532, -inf
    %849 = vmax.xlane.f32.xlu0 %v848
    %v850 = vpop.xlane.xlu0 %849
    %v851 = vsel %vm232, %v608, -inf
    %852 = vmax.xlane.f32.xlu0 %v851
    %v853 = vpop.xlane.xlu0 %852
    %v854 = vsel %vm232, %v684, -inf
    %855 = vmax.xlane.f32.xlu0 %v854
    %v856 = vpop.xlane.xlu0 %855
    %v857 = vsel %vm232, %v760, -inf
    %858 = vmax.xlane.f32.xlu0 %v857
    %v859 = vpop.xlane.xlu0 %858
    %v860 = vsel %vm232, %v836, -inf
    %861 = vmax.xlane.f32.xlu0 %v860
    %v862 = vpop.xlane.xlu0 %861
    %v863 = vsub.f32 %v304, %v841
    %v864 = vsub.f32 %v380, %v844
    %v865 = vsub.f32 %v456, %v847
    %v866 = vsub.f32 %v532, %v850
    %v867 = vsub.f32 %v608, %v853
    %v868 = vsub.f32 %v684, %v856
    %v869 = vsub.f32 %v760, %v859
    %v870 = vsub.f32 %v836, %v862
    %v871 = vmul.f32 %v863, 1.442695
    %v872 = vpow.pop %v871
    %v873 = vmul.f32 %v864, 1.442695
    %v874 = vpow.pop %v873
    %v875 = vmul.f32 %v865, 1.442695
    %v876 = vpow.pop %v875
    %v877 = vmul.f32 %v866, 1.442695
    %v878 = vpow.pop %v877
    %v879 = vmul.f32 %v867, 1.442695
    %v880 = vpow.pop %v879
    %v881 = vmul.f32 %v868, 1.442695
    %v882 = vpow.pop %v881
    %v883 = vmul.f32 %v869, 1.442695
    %v884 = vpow.pop %v883
    %v885 = vmul.f32 %v870, 1.442695
    %v886 = vpow.pop %v885
    %v887 = vsel %vm232, %v872, 0.0
    %888 = vadd.xlane.f32.xlu0 %v887
    %v889 = vpop.xlane.xlu0 %888
    %v890 = vsel %vm232, %v874, 0.0
    %891 = vadd.xlane.f32.xlu0 %v890
    %v892 = vpop.xlane.xlu0 %891
    %v893 = vsel %vm232, %v876, 0.0
    %894 = vadd.xlane.f32.xlu0 %v893
    %v895 = vpop.xlane.xlu0 %894
    %v896 = vsel %vm232, %v878, 0.0
    %897 = vadd.xlane.f32.xlu0 %v896
    %v898 = vpop.xlane.xlu0 %897
    %v899 = vsel %vm232, %v880, 0.0
    %900 = vadd.xlane.f32.xlu0 %v899
    %v901 = vpop.xlane.xlu0 %900
    %v902 = vsel %vm232, %v882, 0.0
    %903 = vadd.xlane.f32.xlu0 %v902
    %v904 = vpop.xlane.xlu0 %903
    %v905 = vsel %vm232, %v884, 0.0
    %906 = vadd.xlane.f32.xlu0 %v905
    %v907 = vpop.xlane.xlu0 %906
    %v908 = vsel %vm232, %v886, 0.0
    %909 = vadd.xlane.f32.xlu0 %v908
    %v910 = vpop.xlane.xlu0 %909
    %v911 = vrcp.pop %v889
    %v912 = vmul.f32 %v872, %v911
    %v913 = vrcp.pop %v892
    %v914 = vmul.f32 %v874, %v913
    %v915 = vrcp.pop %v895
    %v916 = vmul.f32 %v876, %v915
    %v917 = vrcp.pop %v898
    %v918 = vmul.f32 %v878, %v917
    %v919 = vrcp.pop %v901
    %v920 = vmul.f32 %v880, %v919
    %v921 = vrcp.pop %v904
    %v922 = vmul.f32 %v882, %v921
    %v923 = vrcp.pop %v907
    %v924 = vmul.f32 %v884, %v923
    %v925 = vrcp.pop %v910
    %v926 = vmul.f32 %v886, %v925
    %927 = vrot.lane.b32.xlu0 %v208, 64
    %v928 = vpop.permute.xlu0 %927
    %v931 = vsel %vm232, %v912, 0
    %933 = vmatprep.subr.mxu0 0.0
    %934 = vmatpush1.msra.mxu0 0.0
    %935 = vmatprep.subr.mxu0 0.0
    %936 = vmatpush1.msra.mxu0 0.0
    %937 = vmatprep.subr.mxu0 0.0
    %938 = vmatpush1.msra.mxu0 0.0
    %939 = vmatprep.subr.mxu0 0.0
    %940 = vmatpush1.msra.mxu0 0.0
    %941 = vmatprep.subr.mxu0 0.0
    %942 = vmatpush1.msra.mxu0 0.0
    %943 = vmatprep.subr.mxu0 0.0
    %944 = vmatpush1.msra.mxu0 0.0
    %945 = vmatprep.subr.mxu0 0.0
    %946 = vmatpush1.msra.mxu0 0.0
    %947 = vmatprep.subr.mxu0 0.0
    %948 = vmatpush1.msra.mxu0 0.0
    %949 = vmatprep.subr.mxu0 0.0
    %950 = vmatpush1.msra.mxu0 0.0
    %951 = vmatprep.subr.mxu0 0.0
    %952 = vmatpush1.msra.mxu0 0.0
    %953 = vmatprep.subr.mxu0 0.0
    %954 = vmatpush1.msra.mxu0 0.0
    %955 = vmatprep.subr.mxu0 0.0
    %956 = vmatpush1.msra.mxu0 0.0
    %957 = vmatprep.subr.mxu0 0.0
    %958 = vmatpush1.msra.mxu0 0.0
    %959 = vmatprep.subr.mxu0 0.0
    %960 = vmatpush1.msra.mxu0 0.0
    %961 = vmatprep.subr.mxu0 0.0
    %962 = vmatpush1.msra.mxu0 0.0
    %963 = vmatprep.subr.mxu0 0.0
    %964 = vmatpush1.msra.mxu0 %v928
    %965 = vmatprep.subr.mxu0 0.0
    %966 = vmatpush2.msra.mxu0 0.0
    %967 = vmatprep.subr.mxu0 0.0
    %968 = vmatpush2.msra.mxu0 0.0
    %969 = vmatprep.subr.mxu0 0.0
    %970 = vmatpush2.msra.mxu0 0.0
    %971 = vmatprep.subr.mxu0 0.0
    %972 = vmatpush2.msra.mxu0 0.0
    %973 = vmatprep.subr.mxu0 0.0
    %974 = vmatpush2.msra.mxu0 0.0
    %975 = vmatprep.subr.mxu0 0.0
    %976 = vmatpush2.msra.mxu0 0.0
    %977 = vmatprep.subr.mxu0 0.0
    %978 = vmatpush2.msra.mxu0 0.0
    %979 = vmatprep.subr.mxu0 0.0
    %980 = vmatpush2.msra.mxu0 0.0
    %981 = vmatprep.subr.mxu0 0.0
    %982 = vmatpush2.msra.mxu0 0.0
    %983 = vmatprep.subr.mxu0 0.0
    %984 = vmatpush2.msra.mxu0 0.0
    %985 = vmatprep.subr.mxu0 0.0
    %986 = vmatpush2.msra.mxu0 0.0
    %987 = vmatprep.subr.mxu0 0.0
    %988 = vmatpush2.msra.mxu0 0.0
    %989 = vmatprep.subr.mxu0 0.0
    %990 = vmatpush2.msra.mxu0 0.0
    %991 = vmatprep.subr.mxu0 0.0
    %992 = vmatpush2.msra.mxu0 0.0
    %993 = vmatprep.subr.mxu0 0.0
    %994 = vmatpush2.msra.mxu0 0.0
    %995 = vmatprep.subr.mxu0 0.0
    %996 = vmatpush2.msra.mxu0 0.0
    %997 = vmatprep.mubr.f32.mxu0 0.0
    %998 = vmatmul.mubr.f32.gmra.mxu0 %v931
    %v999 = vpop.f32.mrf.mxu0
    %v1000 = vadd.f32 0.0, %v999
    %v1001 = vpop.f32.mrf.mxu0
    %1002 = vdwg.mxu0
    %1003 = vrot.lane.b32.xlu0 %v213, 64
    %v1004 = vpop.permute.xlu0 %1003
    %v1007 = vsel %vm232, %v914, 0
    %1009 = vmatprep.subr.mxu0 0.0
    %1010 = vmatpush1.msra.mxu0 0.0
    %1011 = vmatprep.subr.mxu0 0.0
    %1012 = vmatpush1.msra.mxu0 0.0
    %1013 = vmatprep.subr.mxu0 0.0
    %1014 = vmatpush1.msra.mxu0 0.0
    %1015 = vmatprep.subr.mxu0 0.0
    %1016 = vmatpush1.msra.mxu0 0.0
    %1017 = vmatprep.subr.mxu0 0.0
    %1018 = vmatpush1.msra.mxu0 0.0
    %1019 = vmatprep.subr.mxu0 0.0
    %1020 = vmatpush1.msra.mxu0 0.0
    %1021 = vmatprep.subr.mxu0 0.0
    %1022 = vmatpush1.msra.mxu0 0.0
    %1023 = vmatprep.subr.mxu0 0.0
    %1024 = vmatpush1.msra.mxu0 0.0
    %1025 = vmatprep.subr.mxu0 0.0
    %1026 = vmatpush1.msra.mxu0 0.0
    %1027 = vmatprep.subr.mxu0 0.0
    %1028 = vmatpush1.msra.mxu0 0.0
    %1029 = vmatprep.subr.mxu0 0.0
    %1030 = vmatpush1.msra.mxu0 0.0
    %1031 = vmatprep.subr.mxu0 0.0
    %1032 = vmatpush1.msra.mxu0 0.0
    %1033 = vmatprep.subr.mxu0 0.0
    %1034 = vmatpush1.msra.mxu0 0.0
    %1035 = vmatprep.subr.mxu0 0.0
    %1036 = vmatpush1.msra.mxu0 0.0
    %1037 = vmatprep.subr.mxu0 0.0
    %1038 = vmatpush1.msra.mxu0 0.0
    %1039 = vmatprep.subr.mxu0 0.0
    %1040 = vmatpush1.msra.mxu0 %v1004
    %1041 = vmatprep.subr.mxu0 0.0
    %1042 = vmatpush2.msra.mxu0 0.0
    %1043 = vmatprep.subr.mxu0 0.0
    %1044 = vmatpush2.msra.mxu0 0.0
    %1045 = vmatprep.subr.mxu0 0.0
    %1046 = vmatpush2.msra.mxu0 0.0
    %1047 = vmatprep.subr.mxu0 0.0
    %1048 = vmatpush2.msra.mxu0 0.0
    %1049 = vmatprep.subr.mxu0 0.0
    %1050 = vmatpush2.msra.mxu0 0.0
    %1051 = vmatprep.subr.mxu0 0.0
    %1052 = vmatpush2.msra.mxu0 0.0
    %1053 = vmatprep.subr.mxu0 0.0
    %1054 = vmatpush2.msra.mxu0 0.0
    %1055 = vmatprep.subr.mxu0 0.0
    %1056 = vmatpush2.msra.mxu0 0.0
    %1057 = vmatprep.subr.mxu0 0.0
    %1058 = vmatpush2.msra.mxu0 0.0
    %1059 = vmatprep.subr.mxu0 0.0
    %1060 = vmatpush2.msra.mxu0 0.0
    %1061 = vmatprep.subr.mxu0 0.0
    %1062 = vmatpush2.msra.mxu0 0.0
    %1063 = vmatprep.subr.mxu0 0.0
    %1064 = vmatpush2.msra.mxu0 0.0
    %1065 = vmatprep.subr.mxu0 0.0
    %1066 = vmatpush2.msra.mxu0 0.0
    %1067 = vmatprep.subr.mxu0 0.0
    %1068 = vmatpush2.msra.mxu0 0.0
    %1069 = vmatprep.subr.mxu0 0.0
    %1070 = vmatpush2.msra.mxu0 0.0
    %1071 = vmatprep.subr.mxu0 0.0
    %1072 = vmatpush2.msra.mxu0 0.0
    %1073 = vmatprep.mubr.f32.mxu0 0.0
    %1074 = vmatmul.mubr.f32.gmra.mxu0 %v1007
    %v1075 = vpop.f32.mrf.mxu0
    %v1076 = vadd.f32 0.0, %v1075
    %v1077 = vpop.f32.mrf.mxu0
    %1078 = vdwg.mxu0
    %1079 = vrot.lane.b32.xlu0 %v219, 64
    %v1080 = vpop.permute.xlu0 %1079
    %v1083 = vsel %vm232, %v916, 0
    %1085 = vmatprep.subr.mxu0 0.0
    %1086 = vmatpush1.msra.mxu0 0.0
    %1087 = vmatprep.subr.mxu0 0.0
    %1088 = vmatpush1.msra.mxu0 0.0
    %1089 = vmatprep.subr.mxu0 0.0
    %1090 = vmatpush1.msra.mxu0 0.0
    %1091 = vmatprep.subr.mxu0 0.0
    %1092 = vmatpush1.msra.mxu0 0.0
    %1093 = vmatprep.subr.mxu0 0.0
    %1094 = vmatpush1.msra.mxu0 0.0
    %1095 = vmatprep.subr.mxu0 0.0
    %1096 = vmatpush1.msra.mxu0 0.0
    %1097 = vmatprep.subr.mxu0 0.0
    %1098 = vmatpush1.msra.mxu0 0.0
    %1099 = vmatprep.subr.mxu0 0.0
    %1100 = vmatpush1.msra.mxu0 0.0
    %1101 = vmatprep.subr.mxu0 0.0
    %1102 = vmatpush1.msra.mxu0 0.0
    %1103 = vmatprep.subr.mxu0 0.0
    %1104 = vmatpush1.msra.mxu0 0.0
    %1105 = vmatprep.subr.mxu0 0.0
    %1106 = vmatpush1.msra.mxu0 0.0
    %1107 = vmatprep.subr.mxu0 0.0
    %1108 = vmatpush1.msra.mxu0 0.0
    %1109 = vmatprep.subr.mxu0 0.0
    %1110 = vmatpush1.msra.mxu0 0.0
    %1111 = vmatprep.subr.mxu0 0.0
    %1112 = vmatpush1.msra.mxu0 0.0
    %1113 = vmatprep.subr.mxu0 0.0
    %1114 = vmatpush1.msra.mxu0 0.0
    %1115 = vmatprep.subr.mxu0 0.0
    %1116 = vmatpush1.msra.mxu0 %v1080
    %1117 = vmatprep.subr.mxu0 0.0
    %1118 = vmatpush2.msra.mxu0 0.0
    %1119 = vmatprep.subr.mxu0 0.0
    %1120 = vmatpush2.msra.mxu0 0.0
    %1121 = vmatprep.subr.mxu0 0.0
    %1122 = vmatpush2.msra.mxu0 0.0
    %1123 = vmatprep.subr.mxu0 0.0
    %1124 = vmatpush2.msra.mxu0 0.0
    %1125 = vmatprep.subr.mxu0 0.0
    %1126 = vmatpush2.msra.mxu0 0.0
    %1127 = vmatprep.subr.mxu0 0.0
    %1128 = vmatpush2.msra.mxu0 0.0
    %1129 = vmatprep.subr.mxu0 0.0
    %1130 = vmatpush2.msra.mxu0 0.0
    %1131 = vmatprep.subr.mxu0 0.0
    %1132 = vmatpush2.msra.mxu0 0.0
    %1133 = vmatprep.subr.mxu0 0.0
    %1134 = vmatpush2.msra.mxu0 0.0
    %1135 = vmatprep.subr.mxu0 0.0
    %1136 = vmatpush2.msra.mxu0 0.0
    %1137 = vmatprep.subr.mxu0 0.0
    %1138 = vmatpush2.msra.mxu0 0.0
    %1139 = vmatprep.subr.mxu0 0.0
    %1140 = vmatpush2.msra.mxu0 0.0
    %1141 = vmatprep.subr.mxu0 0.0
    %1142 = vmatpush2.msra.mxu0 0.0
    %1143 = vmatprep.subr.mxu0 0.0
    %1144 = vmatpush2.msra.mxu0 0.0
    %1145 = vmatprep.subr.mxu0 0.0
    %1146 = vmatpush2.msra.mxu0 0.0
    %1147 = vmatprep.subr.mxu0 0.0
    %1148 = vmatpush2.msra.mxu0 0.0
    %1149 = vmatprep.mubr.f32.mxu0 0.0
    %1150 = vmatmul.mubr.f32.gmra.mxu0 %v1083
    %v1151 = vpop.f32.mrf.mxu0
    %v1152 = vadd.f32 0.0, %v1151
    %v1153 = vpop.f32.mrf.mxu0
    %1154 = vdwg.mxu0
    %1155 = vrot.lane.b32.xlu0 %v221, 64
    %v1156 = vpop.permute.xlu0 %1155
    %v1159 = vsel %vm232, %v918, 0
    %1161 = vmatprep.subr.mxu0 0.0
    %1162 = vmatpush1.msra.mxu0 0.0
    %1163 = vmatprep.subr.mxu0 0.0
    %1164 = vmatpush1.msra.mxu0 0.0
    %1165 = vmatprep.subr.mxu0 0.0
    %1166 = vmatpush1.msra.mxu0 0.0
    %1167 = vmatprep.subr.mxu0 0.0
    %1168 = vmatpush1.msra.mxu0 0.0
    %1169 = vmatprep.subr.mxu0 0.0
    %1170 = vmatpush1.msra.mxu0 0.0
    %1171 = vmatprep.subr.mxu0 0.0
    %1172 = vmatpush1.msra.mxu0 0.0
    %1173 = vmatprep.subr.mxu0 0.0
    %1174 = vmatpush1.msra.mxu0 0.0
    %1175 = vmatprep.subr.mxu0 0.0
    %1176 = vmatpush1.msra.mxu0 0.0
    %1177 = vmatprep.subr.mxu0 0.0
    %1178 = vmatpush1.msra.mxu0 0.0
    %1179 = vmatprep.subr.mxu0 0.0
    %1180 = vmatpush1.msra.mxu0 0.0
    %1181 = vmatprep.subr.mxu0 0.0
    %1182 = vmatpush1.msra.mxu0 0.0
    %1183 = vmatprep.subr.mxu0 0.0
    %1184 = vmatpush1.msra.mxu0 0.0
    %1185 = vmatprep.subr.mxu0 0.0
    %1186 = vmatpush1.msra.mxu0 0.0
    %1187 = vmatprep.subr.mxu0 0.0
    %1188 = vmatpush1.msra.mxu0 0.0
    %1189 = vmatprep.subr.mxu0 0.0
    %1190 = vmatpush1.msra.mxu0 0.0
    %1191 = vmatprep.subr.mxu0 0.0
    %1192 = vmatpush1.msra.mxu0 %v1156
    %1193 = vmatprep.subr.mxu0 0.0
    %1194 = vmatpush2.msra.mxu0 0.0
    %1195 = vmatprep.subr.mxu0 0.0
    %1196 = vmatpush2.msra.mxu0 0.0
    %1197 = vmatprep.subr.mxu0 0.0
    %1198 = vmatpush2.msra.mxu0 0.0
    %1199 = vmatprep.subr.mxu0 0.0
    %1200 = vmatpush2.msra.mxu0 0.0
    %1201 = vmatprep.subr.mxu0 0.0
    %1202 = vmatpush2.msra.mxu0 0.0
    %1203 = vmatprep.subr.mxu0 0.0
    %1204 = vmatpush2.msra.mxu0 0.0
    %1205 = vmatprep.subr.mxu0 0.0
    %1206 = vmatpush2.msra.mxu0 0.0
    %1207 = vmatprep.subr.mxu0 0.0
    %1208 = vmatpush2.msra.mxu0 0.0
    %1209 = vmatprep.subr.mxu0 0.0
    %1210 = vmatpush2.msra.mxu0 0.0
    %1211 = vmatprep.subr.mxu0 0.0
    %1212 = vmatpush2.msra.mxu0 0.0
    %1213 = vmatprep.subr.mxu0 0.0
    %1214 = vmatpush2.msra.mxu0 0.0
    %1215 = vmatprep.subr.mxu0 0.0
    %1216 = vmatpush2.msra.mxu0 0.0
    %1217 = vmatprep.subr.mxu0 0.0
    %1218 = vmatpush2.msra.mxu0 0.0
    %1219 = vmatprep.subr.mxu0 0.0
    %1220 = vmatpush2.msra.mxu0 0.0
    %1221 = vmatprep.subr.mxu0 0.0
    %1222 = vmatpush2.msra.mxu0 0.0
    %1223 = vmatprep.subr.mxu0 0.0
    %1224 = vmatpush2.msra.mxu0 0.0
    %1225 = vmatprep.mubr.f32.mxu0 0.0
    %1226 = vmatmul.mubr.f32.gmra.mxu0 %v1159
    %v1227 = vpop.f32.mrf.mxu0
    %v1228 = vadd.f32 0.0, %v1227
    %v1229 = vpop.f32.mrf.mxu0
    %1230 = vdwg.mxu0
    %1231 = vrot.lane.b32.xlu0 %v223, 64
    %v1232 = vpop.permute.xlu0 %1231
    %v1235 = vsel %vm232, %v920, 0
    %1237 = vmatprep.subr.mxu0 0.0
    %1238 = vmatpush1.msra.mxu0 0.0
    %1239 = vmatprep.subr.mxu0 0.0
    %1240 = vmatpush1.msra.mxu0 0.0
    %1241 = vmatprep.subr.mxu0 0.0
    %1242 = vmatpush1.msra.mxu0 0.0
    %1243 = vmatprep.subr.mxu0 0.0
    %1244 = vmatpush1.msra.mxu0 0.0
    %1245 = vmatprep.subr.mxu0 0.0
    %1246 = vmatpush1.msra.mxu0 0.0
    %1247 = vmatprep.subr.mxu0 0.0
    %1248 = vmatpush1.msra.mxu0 0.0
    %1249 = vmatprep.subr.mxu0 0.0
    %1250 = vmatpush1.msra.mxu0 0.0
    %1251 = vmatprep.subr.mxu0 0.0
    %1252 = vmatpush1.msra.mxu0 0.0
    %1253 = vmatprep.subr.mxu0 0.0
    %1254 = vmatpush1.msra.mxu0 0.0
    %1255 = vmatprep.subr.mxu0 0.0
    %1256 = vmatpush1.msra.mxu0 0.0
    %1257 = vmatprep.subr.mxu0 0.0
    %1258 = vmatpush1.msra.mxu0 0.0
    %1259 = vmatprep.subr.mxu0 0.0
    %1260 = vmatpush1.msra.mxu0 0.0
    %1261 = vmatprep.subr.mxu0 0.0
    %1262 = vmatpush1.msra.mxu0 0.0
    %1263 = vmatprep.subr.mxu0 0.0
    %1264 = vmatpush1.msra.mxu0 0.0
    %1265 = vmatprep.subr.mxu0 0.0
    %1266 = vmatpush1.msra.mxu0 0.0
    %1267 = vmatprep.subr.mxu0 0.0
    %1268 = vmatpush1.msra.mxu0 %v1232
    %1269 = vmatprep.subr.mxu0 0.0
    %1270 = vmatpush2.msra.mxu0 0.0
    %1271 = vmatprep.subr.mxu0 0.0
    %1272 = vmatpush2.msra.mxu0 0.0
    %1273 = vmatprep.subr.mxu0 0.0
    %1274 = vmatpush2.msra.mxu0 0.0
    %1275 = vmatprep.subr.mxu0 0.0
    %1276 = vmatpush2.msra.mxu0 0.0
    %1277 = vmatprep.subr.mxu0 0.0
    %1278 = vmatpush2.msra.mxu0 0.0
    %1279 = vmatprep.subr.mxu0 0.0
    %1280 = vmatpush2.msra.mxu0 0.0
    %1281 = vmatprep.subr.mxu0 0.0
    %1282 = vmatpush2.msra.mxu0 0.0
    %1283 = vmatprep.subr.mxu0 0.0
    %1284 = vmatpush2.msra.mxu0 0.0
    %1285 = vmatprep.subr.mxu0 0.0
    %1286 = vmatpush2.msra.mxu0 0.0
    %1287 = vmatprep.subr.mxu0 0.0
    %1288 = vmatpush2.msra.mxu0 0.0
    %1289 = vmatprep.subr.mxu0 0.0
    %1290 = vmatpush2.msra.mxu0 0.0
    %1291 = vmatprep.subr.mxu0 0.0
    %1292 = vmatpush2.msra.mxu0 0.0
    %1293 = vmatprep.subr.mxu0 0.0
    %1294 = vmatpush2.msra.mxu0 0.0
    %1295 = vmatprep.subr.mxu0 0.0
    %1296 = vmatpush2.msra.mxu0 0.0
    %1297 = vmatprep.subr.mxu0 0.0
    %1298 = vmatpush2.msra.mxu0 0.0
    %1299 = vmatprep.subr.mxu0 0.0
    %1300 = vmatpush2.msra.mxu0 0.0
    %1301 = vmatprep.mubr.f32.mxu0 0.0
    %1302 = vmatmul.mubr.f32.gmra.mxu0 %v1235
    %v1303 = vpop.f32.mrf.mxu0
    %v1304 = vadd.f32 0.0, %v1303
    %v1305 = vpop.f32.mrf.mxu0
    %1306 = vdwg.mxu0
    %1307 = vrot.lane.b32.xlu0 %v225, 64
    %v1308 = vpop.permute.xlu0 %1307
    %v1311 = vsel %vm232, %v922, 0
    %1313 = vmatprep.subr.mxu0 0.0
    %1314 = vmatpush1.msra.mxu0 0.0
    %1315 = vmatprep.subr.mxu0 0.0
    %1316 = vmatpush1.msra.mxu0 0.0
    %1317 = vmatprep.subr.mxu0 0.0
    %1318 = vmatpush1.msra.mxu0 0.0
    %1319 = vmatprep.subr.mxu0 0.0
    %1320 = vmatpush1.msra.mxu0 0.0
    %1321 = vmatprep.subr.mxu0 0.0
    %1322 = vmatpush1.msra.mxu0 0.0
    %1323 = vmatprep.subr.mxu0 0.0
    %1324 = vmatpush1.msra.mxu0 0.0
    %1325 = vmatprep.subr.mxu0 0.0
    %1326 = vmatpush1.msra.mxu0 0.0
    %1327 = vmatprep.subr.mxu0 0.0
    %1328 = vmatpush1.msra.mxu0 0.0
    %1329 = vmatprep.subr.mxu0 0.0
    %1330 = vmatpush1.msra.mxu0 0.0
    %1331 = vmatprep.subr.mxu0 0.0
    %1332 = vmatpush1.msra.mxu0 0.0
    %1333 = vmatprep.subr.mxu0 0.0
    %1334 = vmatpush1.msra.mxu0 0.0
    %1335 = vmatprep.subr.mxu0 0.0
    %1336 = vmatpush1.msra.mxu0 0.0
    %1337 = vmatprep.subr.mxu0 0.0
    %1338 = vmatpush1.msra.mxu0 0.0
    %1339 = vmatprep.subr.mxu0 0.0
    %1340 = vmatpush1.msra.mxu0 0.0
    %1341 = vmatprep.subr.mxu0 0.0
    %1342 = vmatpush1.msra.mxu0 0.0
    %1343 = vmatprep.subr.mxu0 0.0
    %1344 = vmatpush1.msra.mxu0 %v1308
    %1345 = vmatprep.subr.mxu0 0.0
    %1346 = vmatpush2.msra.mxu0 0.0
    %1347 = vmatprep.subr.mxu0 0.0
    %1348 = vmatpush2.msra.mxu0 0.0
    %1349 = vmatprep.subr.mxu0 0.0
    %1350 = vmatpush2.msra.mxu0 0.0
    %1351 = vmatprep.subr.mxu0 0.0
    %1352 = vmatpush2.msra.mxu0 0.0
    %1353 = vmatprep.subr.mxu0 0.0
    %1354 = vmatpush2.msra.mxu0 0.0
    %1355 = vmatprep.subr.mxu0 0.0
    %1356 = vmatpush2.msra.mxu0 0.0
    %1357 = vmatprep.subr.mxu0 0.0
    %1358 = vmatpush2.msra.mxu0 0.0
    %1359 = vmatprep.subr.mxu0 0.0
    %1360 = vmatpush2.msra.mxu0 0.0
    %1361 = vmatprep.subr.mxu0 0.0
    %1362 = vmatpush2.msra.mxu0 0.0
    %1363 = vmatprep.subr.mxu0 0.0
    %1364 = vmatpush2.msra.mxu0 0.0
    %1365 = vmatprep.subr.mxu0 0.0
    %1366 = vmatpush2.msra.mxu0 0.0
    %1367 = vmatprep.subr.mxu0 0.0
    %1368 = vmatpush2.msra.mxu0 0.0
    %1369 = vmatprep.subr.mxu0 0.0
    %1370 = vmatpush2.msra.mxu0 0.0
    %1371 = vmatprep.subr.mxu0 0.0
    %1372 = vmatpush2.msra.mxu0 0.0
    %1373 = vmatprep.subr.mxu0 0.0
    %1374 = vmatpush2.msra.mxu0 0.0
    %1375 = vmatprep.subr.mxu0 0.0
    %1376 = vmatpush2.msra.mxu0 0.0
    %1377 = vmatprep.mubr.f32.mxu0 0.0
    %1378 = vmatmul.mubr.f32.gmra.mxu0 %v1311
    %v1379 = vpop.f32.mrf.mxu0
    %v1380 = vadd.f32 0.0, %v1379
    %v1381 = vpop.f32.mrf.mxu0
    %1382 = vdwg.mxu0
    %1383 = vrot.lane.b32.xlu0 %v227, 64
    %v1384 = vpop.permute.xlu0 %1383
    %v1387 = vsel %vm232, %v924, 0
    %1389 = vmatprep.subr.mxu0 0.0
    %1390 = vmatpush1.msra.mxu0 0.0
    %1391 = vmatprep.subr.mxu0 0.0
    %1392 = vmatpush1.msra.mxu0 0.0
    %1393 = vmatprep.subr.mxu0 0.0
    %1394 = vmatpush1.msra.mxu0 0.0
    %1395 = vmatprep.subr.mxu0 0.0
    %1396 = vmatpush1.msra.mxu0 0.0
    %1397 = vmatprep.subr.mxu0 0.0
    %1398 = vmatpush1.msra.mxu0 0.0
    %1399 = vmatprep.subr.mxu0 0.0
    %1400 = vmatpush1.msra.mxu0 0.0
    %1401 = vmatprep.subr.mxu0 0.0
    %1402 = vmatpush1.msra.mxu0 0.0
    %1403 = vmatprep.subr.mxu0 0.0
    %1404 = vmatpush1.msra.mxu0 0.0
    %1405 = vmatprep.subr.mxu0 0.0
    %1406 = vmatpush1.msra.mxu0 0.0
    %1407 = vmatprep.subr.mxu0 0.0
    %1408 = vmatpush1.msra.mxu0 0.0
    %1409 = vmatprep.subr.mxu0 0.0
    %1410 = vmatpush1.msra.mxu0 0.0
    %1411 = vmatprep.subr.mxu0 0.0
    %1412 = vmatpush1.msra.mxu0 0.0
    %1413 = vmatprep.subr.mxu0 0.0
    %1414 = vmatpush1.msra.mxu0 0.0
    %1415 = vmatprep.subr.mxu0 0.0
    %1416 = vmatpush1.msra.mxu0 0.0
    %1417 = vmatprep.subr.mxu0 0.0
    %1418 = vmatpush1.msra.mxu0 0.0
    %1419 = vmatprep.subr.mxu0 0.0
    %1420 = vmatpush1.msra.mxu0 %v1384
    %1421 = vmatprep.subr.mxu0 0.0
    %1422 = vmatpush2.msra.mxu0 0.0
    %1423 = vmatprep.subr.mxu0 0.0
    %1424 = vmatpush2.msra.mxu0 0.0
    %1425 = vmatprep.subr.mxu0 0.0
    %1426 = vmatpush2.msra.mxu0 0.0
    %1427 = vmatprep.subr.mxu0 0.0
    %1428 = vmatpush2.msra.mxu0 0.0
    %1429 = vmatprep.subr.mxu0 0.0
    %1430 = vmatpush2.msra.mxu0 0.0
    %1431 = vmatprep.subr.mxu0 0.0
    %1432 = vmatpush2.msra.mxu0 0.0
    %1433 = vmatprep.subr.mxu0 0.0
    %1434 = vmatpush2.msra.mxu0 0.0
    %1435 = vmatprep.subr.mxu0 0.0
    %1436 = vmatpush2.msra.mxu0 0.0
    %1437 = vmatprep.subr.mxu0 0.0
    %1438 = vmatpush2.msra.mxu0 0.0
    %1439 = vmatprep.subr.mxu0 0.0
    %1440 = vmatpush2.msra.mxu0 0.0
    %1441 = vmatprep.subr.mxu0 0.0
    %1442 = vmatpush2.msra.mxu0 0.0
    %1443 = vmatprep.subr.mxu0 0.0
    %1444 = vmatpush2.msra.mxu0 0.0
    %1445 = vmatprep.subr.mxu0 0.0
    %1446 = vmatpush2.msra.mxu0 0.0
    %1447 = vmatprep.subr.mxu0 0.0
    %1448 = vmatpush2.msra.mxu0 0.0
    %1449 = vmatprep.subr.mxu0 0.0
    %1450 = vmatpush2.msra.mxu0 0.0
    %1451 = vmatprep.subr.mxu0 0.0
    %1452 = vmatpush2.msra.mxu0 0.0
    %1453 = vmatprep.mubr.f32.mxu0 0.0
    %1454 = vmatmul.mubr.f32.gmra.mxu0 %v1387
    %v1455 = vpop.f32.mrf.mxu0
    %v1456 = vadd.f32 0.0, %v1455
    %v1457 = vpop.f32.mrf.mxu0
    %1458 = vdwg.mxu0
    %1459 = vrot.lane.b32.xlu0 %v229, 64
    %v1460 = vpop.permute.xlu0 %1459
    %v1463 = vsel %vm232, %v926, 0
    %1465 = vmatprep.subr.mxu0 0.0
    %1466 = vmatpush1.msra.mxu0 0.0
    %1467 = vmatprep.subr.mxu0 0.0
    %1468 = vmatpush1.msra.mxu0 0.0
    %1469 = vmatprep.subr.mxu0 0.0
    %1470 = vmatpush1.msra.mxu0 0.0
    %1471 = vmatprep.subr.mxu0 0.0
    %1472 = vmatpush1.msra.mxu0 0.0
    %1473 = vmatprep.subr.mxu0 0.0
    %1474 = vmatpush1.msra.mxu0 0.0
    %1475 = vmatprep.subr.mxu0 0.0
    %1476 = vmatpush1.msra.mxu0 0.0
    %1477 = vmatprep.subr.mxu0 0.0
    %1478 = vmatpush1.msra.mxu0 0.0
    %1479 = vmatprep.subr.mxu0 0.0
    %1480 = vmatpush1.msra.mxu0 0.0
    %1481 = vmatprep.subr.mxu0 0.0
    %1482 = vmatpush1.msra.mxu0 0.0
    %1483 = vmatprep.subr.mxu0 0.0
    %1484 = vmatpush1.msra.mxu0 0.0
    %1485 = vmatprep.subr.mxu0 0.0
    %1486 = vmatpush1.msra.mxu0 0.0
    %1487 = vmatprep.subr.mxu0 0.0
    %1488 = vmatpush1.msra.mxu0 0.0
    %1489 = vmatprep.subr.mxu0 0.0
    %1490 = vmatpush1.msra.mxu0 0.0
    %1491 = vmatprep.subr.mxu0 0.0
    %1492 = vmatpush1.msra.mxu0 0.0
    %1493 = vmatprep.subr.mxu0 0.0
    %1494 = vmatpush1.msra.mxu0 0.0
    %1495 = vmatprep.subr.mxu0 0.0
    %1496 = vmatpush1.msra.mxu0 %v1460
    %1497 = vmatprep.subr.mxu0 0.0
    %1498 = vmatpush2.msra.mxu0 0.0
    %1499 = vmatprep.subr.mxu0 0.0
    %1500 = vmatpush2.msra.mxu0 0.0
    %1501 = vmatprep.subr.mxu0 0.0
    %1502 = vmatpush2.msra.mxu0 0.0
    %1503 = vmatprep.subr.mxu0 0.0
    %1504 = vmatpush2.msra.mxu0 0.0
    %1505 = vmatprep.subr.mxu0 0.0
    %1506 = vmatpush2.msra.mxu0 0.0
    %1507 = vmatprep.subr.mxu0 0.0
    %1508 = vmatpush2.msra.mxu0 0.0
    %1509 = vmatprep.subr.mxu0 0.0
    %1510 = vmatpush2.msra.mxu0 0.0
    %1511 = vmatprep.subr.mxu0 0.0
    %1512 = vmatpush2.msra.mxu0 0.0
    %1513 = vmatprep.subr.mxu0 0.0
    %1514 = vmatpush2.msra.mxu0 0.0
    %1515 = vmatprep.subr.mxu0 0.0
    %1516 = vmatpush2.msra.mxu0 0.0
    %1517 = vmatprep.subr.mxu0 0.0
    %1518 = vmatpush2.msra.mxu0 0.0
    %1519 = vmatprep.subr.mxu0 0.0
    %1520 = vmatpush2.msra.mxu0 0.0
    %1521 = vmatprep.subr.mxu0 0.0
    %1522 = vmatpush2.msra.mxu0 0.0
    %1523 = vmatprep.subr.mxu0 0.0
    %1524 = vmatpush2.msra.mxu0 0.0
    %1525 = vmatprep.subr.mxu0 0.0
    %1526 = vmatpush2.msra.mxu0 0.0
    %1527 = vmatprep.subr.mxu0 0.0
    %1528 = vmatpush2.msra.mxu0 0.0
    %1529 = vmatprep.mubr.f32.mxu0 0.0
    %1530 = vmatmul.mubr.f32.gmra.mxu0 %v1463
    %v1531 = vpop.f32.mrf.mxu0
    %v1532 = vadd.f32 0.0, %v1531
    %v1533 = vpop.f32.mrf.mxu0
    %1534 = vdwg.mxu0
    %1537 = vrot.lane.b32.xlu0 %v1152, 8
    %v1538 = vpop.permute.xlu0 %1537
    %1539 = vrot.lane.b32.xlu0 %v1228, 8
    %v1540 = vpop.permute.xlu0 %1539
    %1545 = vrot.lane.b32.xlu0 %v1304, 16
    %v1546 = vpop.permute.xlu0 %1545
    %1547 = vrot.lane.b32.xlu0 %v1380, 16
    %v1548 = vpop.permute.xlu0 %1547
    %1553 = vrot.lane.b32.xlu0 %v1456, 24
    %v1554 = vpop.permute.xlu0 %1553
    %1555 = vrot.lane.b32.xlu0 %v1532, 24
    %v1556 = vpop.permute.xlu0 %1555
    %v1559 = vsel %vm232, %v1000, %v1538
    %v1560 = vsel %vm232, %v1076, %v1540
    %vm1561 = vcmask 130048
    %v1562 = vsel %vm1561, %v1559, %v1546
    %v1563 = vsel %vm1561, %v1560, %v1548
    %vm1564 = vcmask 195584
    %v1565 = vsel %vm1564, %v1562, %v1554
    %v1566 = vsel %vm1564, %v1563, %v1556
    %v1568 = vlaneseq
    %v1569 = vshrl.u32 %v1568, 7
    %v1570 = vsub.s32 0, %v1569
    %v1571 = vrot.slane %v64, %v1570
    %v1574 = vsel %vm81, %v1565, 0
    %v1577 = vsel %vm81, %v1566, 0
    %1579 = vmatprep.subr.mxu0 0.0
    %1580 = vmatpush1.msra.mxu0 0.0
    %1581 = vmatprep.subr.mxu0 0.0
    %1582 = vmatpush1.msra.mxu0 0.0
    %1583 = vmatprep.subr.mxu0 0.0
    %1584 = vmatpush1.msra.mxu0 0.0
    %1585 = vmatprep.subr.mxu0 0.0
    %1586 = vmatpush1.msra.mxu0 0.0
    %1587 = vmatprep.subr.mxu0 0.0
    %1588 = vmatpush1.msra.mxu0 0.0
    %1589 = vmatprep.subr.mxu0 0.0
    %1590 = vmatpush1.msra.mxu0 0.0
    %1591 = vmatprep.subr.mxu0 0.0
    %1592 = vmatpush1.msra.mxu0 0.0
    %1593 = vmatprep.subr.mxu0 0.0
    %1594 = vmatpush1.msra.mxu0 0.0
    %1595 = vmatprep.subr.mxu0 0.0
    %1596 = vmatpush1.msra.mxu0 0.0
    %1597 = vmatprep.subr.mxu0 0.0
    %1598 = vmatpush1.msra.mxu0 0.0
    %1599 = vmatprep.subr.mxu0 0.0
    %1600 = vmatpush1.msra.mxu0 0.0
    %1601 = vmatprep.subr.mxu0 0.0
    %1602 = vmatpush1.msra.mxu0 0.0
    %1603 = vmatprep.subr.mxu0 0.0
    %1604 = vmatpush1.msra.mxu0 %v63
    %1605 = vmatprep.subr.mxu0 0.0
    %1606 = vmatpush1.msra.mxu0 %v62
    %1607 = vmatprep.subr.mxu0 0.0
    %1608 = vmatpush1.msra.mxu0 %v61
    %1609 = vmatprep.subr.mxu0 0.0
    %1610 = vmatpush1.msra.mxu0 %v60
    %1611 = vmatprep.subr.mxu0 0.0
    %1612 = vmatpush2.msra.mxu0 0.0
    %1613 = vmatprep.subr.mxu0 0.0
    %1614 = vmatpush2.msra.mxu0 0.0
    %1615 = vmatprep.subr.mxu0 0.0
    %1616 = vmatpush2.msra.mxu0 0.0
    %1617 = vmatprep.subr.mxu0 0.0
    %1618 = vmatpush2.msra.mxu0 0.0
    %1619 = vmatprep.subr.mxu0 0.0
    %1620 = vmatpush2.msra.mxu0 0.0
    %1621 = vmatprep.subr.mxu0 0.0
    %1622 = vmatpush2.msra.mxu0 0.0
    %1623 = vmatprep.subr.mxu0 0.0
    %1624 = vmatpush2.msra.mxu0 0.0
    %1625 = vmatprep.subr.mxu0 0.0
    %1626 = vmatpush2.msra.mxu0 0.0
    %1627 = vmatprep.subr.mxu0 0.0
    %1628 = vmatpush2.msra.mxu0 0.0
    %1629 = vmatprep.subr.mxu0 0.0
    %1630 = vmatpush2.msra.mxu0 0.0
    %1631 = vmatprep.subr.mxu0 0.0
    %1632 = vmatpush2.msra.mxu0 0.0
    %1633 = vmatprep.subr.mxu0 0.0
    %1634 = vmatpush2.msra.mxu0 0.0
    %1635 = vmatprep.subr.mxu0 0.0
    %1636 = vmatpush2.msra.mxu0 0.0
    %1637 = vmatprep.subr.mxu0 0.0
    %1638 = vmatpush2.msra.mxu0 0.0
    %1639 = vmatprep.subr.mxu0 0.0
    %1640 = vmatpush2.msra.mxu0 0.0
    %1641 = vmatprep.subr.mxu0 0.0
    %1642 = vmatpush2.msra.mxu0 0.0
    %1643 = vmatprep.mubr.f32.mxu0 0.0
    %1644 = vmatmul.mubr.f32.gmra.mxu0 %v1574
    %v1645 = vpop.f32.mrf.mxu0
    %v1646 = vadd.f32 %v1571, %v1645
    %v1647 = vpop.f32.mrf.mxu0
    %1648 = vmatprep.mubr.f32.mxu0 0.0
    %1649 = vmatmul.mubr.f32.gmra.mxu0 %v1577
    %v1650 = vpop.f32.mrf.mxu0
    %v1651 = vadd.f32 %v1571, %v1650
    %v1652 = vpop.f32.mrf.mxu0
    %1653 = vdwg.mxu0
    %v1654 = vadd.f32 %v51, %v1646
    %v1655 = vadd.f32 %v52, %v1651
    %v1656 = vsel %vm81, %v1654, 0.0
    %1657 = vadd.xlane.f32.xlu0 %v1656
    %v1658 = vpop.xlane.xlu0 %1657
    %v1659 = vsel %vm81, %v1655, 0.0
    %1660 = vadd.xlane.f32.xlu0 %v1659
    %v1661 = vpop.xlane.xlu0 %1660
    %v1662 = vmul.f32 %v1658, %v88
    %v1663 = vmul.f32 %v1661, %v88
    %v1664 = vmul.f32 %v1654, %v1654
    %v1665 = vmul.f32 %v1655, %v1655
    %v1666 = vsel %vm81, %v1664, 0.0
    %1667 = vadd.xlane.f32.xlu0 %v1666
    %v1668 = vpop.xlane.xlu0 %1667
    %v1669 = vsel %vm81, %v1665, 0.0
    %1670 = vadd.xlane.f32.xlu0 %v1669
    %v1671 = vpop.xlane.xlu0 %1670
    %v1672 = vmul.f32 %v1668, %v88
    %v1673 = vmul.f32 %v1671, %v88
    %v1674 = vmul.f32 %v1662, %v1662
    %v1675 = vmul.f32 %v1663, %v1663
    %v1676 = vsub.f32 %v1672, %v1674
    %v1677 = vsub.f32 %v1673, %v1675
    %v1678 = vsub.f32 %v1654, %v1662
    %v1679 = vsub.f32 %v1655, %v1663
    %v1680 = vadd.f32 %v1676, 1e-05
    %v1681 = vadd.f32 %v1677, 1e-05
    %v1682 = vrsqrt.pop %v1680
    %v1683 = vrsqrt.pop %v1681
    %v1684 = vmul.f32 %v1678, %v1682
    %v1685 = vmul.f32 %v1679, %v1683
    %v1687 = vlaneseq
    %v1688 = vshrl.u32 %v1687, 7
    %v1689 = vsub.s32 0, %v1688
    %v1690 = vrot.slane %v65, %v1689
    %v1692 = vmul.f32 %v1684, %v1690
    %v1693 = vmul.f32 %v1685, %v1690
    %v1695 = vlaneseq
    %v1696 = vshrl.u32 %v1695, 7
    %v1697 = vsub.s32 0, %v1696
    %v1698 = vrot.slane %v66, %v1697
    %v1700 = vadd.f32 %v1692, %v1698
    %v1701 = vadd.f32 %v1693, %v1698
    %v1703 = vlaneseq
    %v1704 = vshrl.u32 %v1703, 7
    %v1705 = vsub.s32 0, %v1704
    %v1706 = vrot.slane %v71, %v1705
    %v1709 = vsel %vm81, %v1700, 0
    %v1712 = vsel %vm81, %v1701, 0
    %1714 = vmatprep.subr.mxu0 0.0
    %1715 = vmatpush1.msra.mxu0 0.0
    %1716 = vmatprep.subr.mxu0 0.0
    %1717 = vmatpush1.msra.mxu0 0.0
    %1718 = vmatprep.subr.mxu0 0.0
    %1719 = vmatpush1.msra.mxu0 0.0
    %1720 = vmatprep.subr.mxu0 0.0
    %1721 = vmatpush1.msra.mxu0 0.0
    %1722 = vmatprep.subr.mxu0 0.0
    %1723 = vmatpush1.msra.mxu0 0.0
    %1724 = vmatprep.subr.mxu0 0.0
    %1725 = vmatpush1.msra.mxu0 0.0
    %1726 = vmatprep.subr.mxu0 0.0
    %1727 = vmatpush1.msra.mxu0 0.0
    %1728 = vmatprep.subr.mxu0 0.0
    %1729 = vmatpush1.msra.mxu0 0.0
    %1730 = vmatprep.subr.mxu0 0.0
    %1731 = vmatpush1.msra.mxu0 0.0
    %1732 = vmatprep.subr.mxu0 0.0
    %1733 = vmatpush1.msra.mxu0 0.0
    %1734 = vmatprep.subr.mxu0 0.0
    %1735 = vmatpush1.msra.mxu0 0.0
    %1736 = vmatprep.subr.mxu0 0.0
    %1737 = vmatpush1.msra.mxu0 0.0
    %1738 = vmatprep.subr.mxu0 0.0
    %1739 = vmatpush1.msra.mxu0 %v70
    %1740 = vmatprep.subr.mxu0 0.0
    %1741 = vmatpush1.msra.mxu0 %v69
    %1742 = vmatprep.subr.mxu0 0.0
    %1743 = vmatpush1.msra.mxu0 %v68
    %1744 = vmatprep.subr.mxu0 0.0
    %1745 = vmatpush1.msra.mxu0 %v67
    %1746 = vmatprep.subr.mxu0 0.0
    %1747 = vmatpush2.msra.mxu0 0.0
    %1748 = vmatprep.subr.mxu0 0.0
    %1749 = vmatpush2.msra.mxu0 0.0
    %1750 = vmatprep.subr.mxu0 0.0
    %1751 = vmatpush2.msra.mxu0 0.0
    %1752 = vmatprep.subr.mxu0 0.0
    %1753 = vmatpush2.msra.mxu0 0.0
    %1754 = vmatprep.subr.mxu0 0.0
    %1755 = vmatpush2.msra.mxu0 0.0
    %1756 = vmatprep.subr.mxu0 0.0
    %1757 = vmatpush2.msra.mxu0 0.0
    %1758 = vmatprep.subr.mxu0 0.0
    %1759 = vmatpush2.msra.mxu0 0.0
    %1760 = vmatprep.subr.mxu0 0.0
    %1761 = vmatpush2.msra.mxu0 0.0
    %1762 = vmatprep.subr.mxu0 0.0
    %1763 = vmatpush2.msra.mxu0 0.0
    %1764 = vmatprep.subr.mxu0 0.0
    %1765 = vmatpush2.msra.mxu0 0.0
    %1766 = vmatprep.subr.mxu0 0.0
    %1767 = vmatpush2.msra.mxu0 0.0
    %1768 = vmatprep.subr.mxu0 0.0
    %1769 = vmatpush2.msra.mxu0 0.0
    %1770 = vmatprep.subr.mxu0 0.0
    %1771 = vmatpush2.msra.mxu0 0.0
    %1772 = vmatprep.subr.mxu0 0.0
    %1773 = vmatpush2.msra.mxu0 0.0
    %1774 = vmatprep.subr.mxu0 0.0
    %1775 = vmatpush2.msra.mxu0 0.0
    %1776 = vmatprep.subr.mxu0 0.0
    %1777 = vmatpush2.msra.mxu0 0.0
    %1778 = vmatprep.mubr.f32.mxu0 0.0
    %1779 = vmatmul.mubr.f32.gmra.mxu0 %v1709
    %v1780 = vpop.f32.mrf.mxu0
    %v1781 = vadd.f32 %v1706, %v1780
    %v1782 = vpop.f32.mrf.mxu0
    %1783 = vmatprep.mubr.f32.mxu0 0.0
    %1784 = vmatmul.mubr.f32.gmra.mxu0 %v1712
    %v1785 = vpop.f32.mrf.mxu0
    %v1786 = vadd.f32 %v1706, %v1785
    %v1787 = vpop.f32.mrf.mxu0
    %1788 = vdwg.mxu0
    %v1789 = vmul.f32 %v1781, %v1781
    %v1790 = vmul.f32 %v1786, %v1786
    %v1791 = vmul.f32 %v1781, %v1789
    %v1792 = vmul.f32 %v1786, %v1790
    %v1793 = vmul.f32 %v1791, 0.044715
    %v1794 = vmul.f32 %v1792, 0.044715
    %v1795 = vadd.f32 %v1781, %v1793
    %v1796 = vadd.f32 %v1786, %v1794
    %v1797 = vmul.f32 %v1795, 0.7978846
    %v1798 = vmul.f32 %v1796, 0.7978846
    %v1799 = vtanh.pop %v1797
    %v1800 = vtanh.pop %v1798
    %v1801 = vadd.f32 %v1799, 1.0
    %v1802 = vadd.f32 %v1800, 1.0
    %v1803 = vmul.f32 %v1801, 0.5
    %v1804 = vmul.f32 %v1802, 0.5
    %v1805 = vmul.f32 %v1781, %v1803
    %v1806 = vmul.f32 %v1786, %v1804
    %v1808 = vlaneseq
    %v1809 = vshrl.u32 %v1808, 7
    %v1810 = vsub.s32 0, %v1809
    %v1811 = vrot.slane %v80, %v1810
    %vm1813 = vcmask 523264
    %v1815 = vsel %vm1813, %v1805, 0
    %v1818 = vsel %vm1813, %v1806, 0
    %1820 = vmatprep.subr.mxu0 0.0
    %1821 = vmatpush1.msra.mxu0 0.0
    %1822 = vmatprep.subr.mxu0 0.0
    %1823 = vmatpush1.msra.mxu0 0.0
    %1824 = vmatprep.subr.mxu0 0.0
    %1825 = vmatpush1.msra.mxu0 0.0
    %1826 = vmatprep.subr.mxu0 0.0
    %1827 = vmatpush1.msra.mxu0 0.0
    %1828 = vmatprep.subr.mxu0 0.0
    %1829 = vmatpush1.msra.mxu0 0.0
    %1830 = vmatprep.subr.mxu0 0.0
    %1831 = vmatpush1.msra.mxu0 0.0
    %1832 = vmatprep.subr.mxu0 0.0
    %1833 = vmatpush1.msra.mxu0 0.0
    %1834 = vmatprep.subr.mxu0 0.0
    %1835 = vmatpush1.msra.mxu0 0.0
    %1836 = vmatprep.subr.mxu0 0.0
    %1837 = vmatpush1.msra.mxu0 %v79
    %1838 = vmatprep.subr.mxu0 0.0
    %1839 = vmatpush1.msra.mxu0 %v78
    %1840 = vmatprep.subr.mxu0 0.0
    %1841 = vmatpush1.msra.mxu0 %v77
    %1842 = vmatprep.subr.mxu0 0.0
    %1843 = vmatpush1.msra.mxu0 %v76
    %1844 = vmatprep.subr.mxu0 0.0
    %1845 = vmatpush1.msra.mxu0 %v75
    %1846 = vmatprep.subr.mxu0 0.0
    %1847 = vmatpush1.msra.mxu0 %v74
    %1848 = vmatprep.subr.mxu0 0.0
    %1849 = vmatpush1.msra.mxu0 %v73
    %1850 = vmatprep.subr.mxu0 0.0
    %1851 = vmatpush1.msra.mxu0 %v72
    %1852 = vmatprep.subr.mxu0 0.0
    %1853 = vmatpush2.msra.mxu0 0.0
    %1854 = vmatprep.subr.mxu0 0.0
    %1855 = vmatpush2.msra.mxu0 0.0
    %1856 = vmatprep.subr.mxu0 0.0
    %1857 = vmatpush2.msra.mxu0 0.0
    %1858 = vmatprep.subr.mxu0 0.0
    %1859 = vmatpush2.msra.mxu0 0.0
    %1860 = vmatprep.subr.mxu0 0.0
    %1861 = vmatpush2.msra.mxu0 0.0
    %1862 = vmatprep.subr.mxu0 0.0
    %1863 = vmatpush2.msra.mxu0 0.0
    %1864 = vmatprep.subr.mxu0 0.0
    %1865 = vmatpush2.msra.mxu0 0.0
    %1866 = vmatprep.subr.mxu0 0.0
    %1867 = vmatpush2.msra.mxu0 0.0
    %1868 = vmatprep.subr.mxu0 0.0
    %1869 = vmatpush2.msra.mxu0 0.0
    %1870 = vmatprep.subr.mxu0 0.0
    %1871 = vmatpush2.msra.mxu0 0.0
    %1872 = vmatprep.subr.mxu0 0.0
    %1873 = vmatpush2.msra.mxu0 0.0
    %1874 = vmatprep.subr.mxu0 0.0
    %1875 = vmatpush2.msra.mxu0 0.0
    %1876 = vmatprep.subr.mxu0 0.0
    %1877 = vmatpush2.msra.mxu0 0.0
    %1878 = vmatprep.subr.mxu0 0.0
    %1879 = vmatpush2.msra.mxu0 0.0
    %1880 = vmatprep.subr.mxu0 0.0
    %1881 = vmatpush2.msra.mxu0 0.0
    %1882 = vmatprep.subr.mxu0 0.0
    %1883 = vmatpush2.msra.mxu0 0.0
    %1884 = vmatprep.mubr.f32.mxu0 0.0
    %1885 = vmatmul.mubr.f32.gmra.mxu0 %v1815
    %v1886 = vpop.f32.mrf.mxu0
    %v1887 = vadd.f32 %v1811, %v1886
    %v1888 = vpop.f32.mrf.mxu0
    %1889 = vmatprep.mubr.f32.mxu0 0.0
    %1890 = vmatmul.mubr.f32.gmra.mxu0 %v1818
    %v1891 = vpop.f32.mrf.mxu0
    %v1892 = vadd.f32 %v1811, %v1891
    %v1893 = vpop.f32.mrf.mxu0
    %1894 = vdwg.mxu0
    %v1895 = vadd.f32 %v1654, %v1887
    %v1896 = vadd.f32 %v1655, %v1892
    %v1897 = vmul.f32 %v1895, 10.0
    %v1898 = vmul.f32 %v1896, 10.0
    %v1899 = vsub.f32 %v1897, 30.0
    %v1900 = vsub.f32 %v1898, 30.0
    %v1901 = vxor.u32 %v1899, 2147483648
    %v1902 = vxor.u32 %v1900, 2147483648
    %v1903 = vmul.f32 %v1901, 1.442695
    %v1904 = vpow.pop %v1903
    %v1905 = vmul.f32 %v1902, 1.442695
    %v1906 = vpow.pop %v1905
    %v1907 = vadd.f32 %v1904, 1.0
    %v1908 = vadd.f32 %v1906, 1.0
    %v1909 = vrcp.pop %v1907
    %v1910 = vmul.f32 1.0, %v1909
    %v1911 = vrcp.pop %v1908
    %v1912 = vmul.f32 1.0, %v1911
    %vm1913 = vcmp.gt.f32.partialorder %v1910, 0.99
    %vm1914 = vcmp.gt.f32.partialorder %v1912, 0.99
    %v1915 = vsel %vm1913, 1, 0
    %v1916 = vsel %vm1914, 1, 0
    %v1917 = vcvt.s32.f32 %v1915
    %v1918 = vcvt.s32.f32 %v1916
    %vm1919 = vcmp.lt.f32.partialorder %v1910, 0.99
    %vm1920 = vcmp.lt.f32.partialorder %v1912, 0.99
    %v1921 = vsel %vm1919, 1, 0
    %v1922 = vsel %vm1920, 1, 0
    %v1923 = vcvt.s32.f32 %v1921
    %v1924 = vcvt.s32.f32 %v1922
    %v1925 = vmul.f32 %v1910, %v1923
    %v1926 = vmul.f32 %v1912, %v1924
    %v1927 = vadd.f32 %v1917, %v1925
    %v1928 = vadd.f32 %v1918, %v1926
    %1930 = vset.pattern.permute.xlu0 0
    %1931 = vperm.xlu0 %1930, %v1927
    %v1932 = vpop.permute.xlu0 %1931
    %1935 = vset.pattern.permute.xlu0 0
    %1936 = vperm.xlu0 %1935, %v1928
    %v1937 = vpop.permute.xlu0 %1936
    %v1939 = vmul.f32 %v1895, %v1932
    %v1940 = vmul.f32 %v1896, %v1937
    %v1941 = vsub.f32 1.0, %v1925
    %v1942 = vsub.f32 1.0, %v1926
    %s1943 = scalar_lea.vmem %s1, 1
    %v1944 = vld [vmem:[%s1943] sm:$0x1]
    %s1945 = scalar_lea.vmem %s2, 1
    %v1946 = vld [vmem:[%s1945] sm:$0x1]
    %s1947 = scalar_lea.vmem %s3, 32
    %v1948 = vld [vmem:[%s1947] sm:$0xff]
    %v1949 = vld [vmem:[%s1947 + $0x8] sm:$0xff]
    %v1950 = vld [vmem:[%s1947 + $0x10] sm:$0xff]
    %v1951 = vld [vmem:[%s1947 + $0x18] sm:$0xff]
    %s1952 = scalar_lea.vmem %s4, 1
    %v1953 = vld [vmem:[%s1952] sm:$0x1]
    %s1954 = scalar_lea.vmem %s5, 32
    %v1955 = vld [vmem:[%s1954] sm:$0xff]
    %v1956 = vld [vmem:[%s1954 + $0x8] sm:$0xff]
    %v1957 = vld [vmem:[%s1954 + $0x10] sm:$0xff]
    %v1958 = vld [vmem:[%s1954 + $0x18] sm:$0xff]
    %s1959 = scalar_lea.vmem %s6, 1
    %v1960 = vld [vmem:[%s1959] sm:$0x1]
    %s1961 = scalar_lea.vmem %s7, 1
    %v1962 = vld [vmem:[%s1961] sm:$0x1]
    %s1963 = scalar_lea.vmem %s8, 1
    %v1964 = vld [vmem:[%s1963] sm:$0x1]
    %s1965 = scalar_lea.vmem %s9, 32
    %v1966 = vld [vmem:[%s1965] sm:$0xff]
    %v1967 = vld [vmem:[%s1965 + $0x8] sm:$0xff]
    %v1968 = vld [vmem:[%s1965 + $0x10] sm:$0xff]
    %v1969 = vld [vmem:[%s1965 + $0x18] sm:$0xff]
    %s1970 = scalar_lea.vmem %s10, 1
    %v1971 = vld [vmem:[%s1970] sm:$0x1]
    %s1972 = scalar_lea.vmem %s11, 64
    %v1973 = vld [vmem:[%s1972] sm:$0xff]
    %v1974 = vld [vmem:[%s1972 + $0x8] sm:$0xff]
    %v1975 = vld [vmem:[%s1972 + $0x10] sm:$0xff]
    %v1976 = vld [vmem:[%s1972 + $0x18] sm:$0xff]
    %v1977 = vld [vmem:[%s1972 + $0x20] sm:$0xff]
    %v1978 = vld [vmem:[%s1972 + $0x28] sm:$0xff]
    %v1979 = vld [vmem:[%s1972 + $0x30] sm:$0xff]
    %v1980 = vld [vmem:[%s1972 + $0x38] sm:$0xff]
    %s1981 = scalar_lea.vmem %s12, 1
    %v1982 = vld [vmem:[%s1981] sm:$0x1]
    %1984 = vset.pattern.permute.xlu0 0
    %1985 = vperm.xlu0 %1984, %v1923
    %v1986 = vpop.permute.xlu0 %1985
    %1989 = vset.pattern.permute.xlu0 0
    %1990 = vperm.xlu0 %1989, %v1924
    %v1991 = vpop.permute.xlu0 %1990
    %v1993 = vmul.f32 %v1895, %v1986
    %v1994 = vmul.f32 %v1896, %v1991
    %v1995 = vsel %vm81, %v1993, 0.0
    %1996 = vadd.xlane.f32.xlu0 %v1995
    %v1997 = vpop.xlane.xlu0 %1996
    %v1998 = vsel %vm81, %v1994, 0.0
    %1999 = vadd.xlane.f32.xlu0 %v1998
    %v2000 = vpop.xlane.xlu0 %1999
    %v2001 = vmul.f32 %v1997, %v88
    %v2002 = vmul.f32 %v2000, %v88
    %v2003 = vmul.f32 %v1993, %v1993
    %v2004 = vmul.f32 %v1994, %v1994
    %v2005 = vsel %vm81, %v2003, 0.0
    %2006 = vadd.xlane.f32.xlu0 %v2005
    %v2007 = vpop.xlane.xlu0 %2006
    %v2008 = vsel %vm81, %v2004, 0.0
    %2009 = vadd.xlane.f32.xlu0 %v2008
    %v2010 = vpop.xlane.xlu0 %2009
    %v2011 = vmul.f32 %v2007, %v88
    %v2012 = vmul.f32 %v2010, %v88
    %v2013 = vmul.f32 %v2001, %v2001
    %v2014 = vmul.f32 %v2002, %v2002
    %v2015 = vsub.f32 %v2011, %v2013
    %v2016 = vsub.f32 %v2012, %v2014
    %v2017 = vsub.f32 %v1993, %v2001
    %v2018 = vsub.f32 %v1994, %v2002
    %v2019 = vadd.f32 %v2015, 1e-05
    %v2020 = vadd.f32 %v2016, 1e-05
    %v2021 = vrsqrt.pop %v2019
    %v2022 = vrsqrt.pop %v2020
    %v2023 = vmul.f32 %v2017, %v2021
    %v2024 = vmul.f32 %v2018, %v2022
    %v2026 = vlaneseq
    %v2027 = vshrl.u32 %v2026, 7
    %v2028 = vsub.s32 0, %v2027
    %v2029 = vrot.slane %v1944, %v2028
    %v2031 = vmul.f32 %v2023, %v2029
    %v2032 = vmul.f32 %v2024, %v2029
    %v2034 = vlaneseq
    %v2035 = vshrl.u32 %v2034, 7
    %v2036 = vsub.s32 0, %v2035
    %v2037 = vrot.slane %v1946, %v2036
    %v2039 = vadd.f32 %v2031, %v2037
    %v2040 = vadd.f32 %v2032, %v2037
    %v2041 = vmul.f32 %v2039, %v1986
    %v2042 = vmul.f32 %v2040, %v1991
    %v2044 = vlaneseq
    %v2045 = vshrl.u32 %v2044, 7
    %v2046 = vsub.s32 0, %v2045
    %v2047 = vrot.slane %v1953, %v2046
    %v2050 = vsel %vm81, %v2041, 0
    %v2053 = vsel %vm81, %v2042, 0
    %2055 = vmatprep.subr.mxu0 0.0
    %2056 = vmatpush1.msra.mxu0 0.0
    %2057 = vmatprep.subr.mxu0 0.0
    %2058 = vmatpush1.msra.mxu0 0.0
    %2059 = vmatprep.subr.mxu0 0.0
    %2060 = vmatpush1.msra.mxu0 0.0
    %2061 = vmatprep.subr.mxu0 0.0
    %2062 = vmatpush1.msra.mxu0 0.0
    %2063 = vmatprep.subr.mxu0 0.0
    %2064 = vmatpush1.msra.mxu0 0.0
    %2065 = vmatprep.subr.mxu0 0.0
    %2066 = vmatpush1.msra.mxu0 0.0
    %2067 = vmatprep.subr.mxu0 0.0
    %2068 = vmatpush1.msra.mxu0 0.0
    %2069 = vmatprep.subr.mxu0 0.0
    %2070 = vmatpush1.msra.mxu0 0.0
    %2071 = vmatprep.subr.mxu0 0.0
    %2072 = vmatpush1.msra.mxu0 0.0
    %2073 = vmatprep.subr.mxu0 0.0
    %2074 = vmatpush1.msra.mxu0 0.0
    %2075 = vmatprep.subr.mxu0 0.0
    %2076 = vmatpush1.msra.mxu0 0.0
    %2077 = vmatprep.subr.mxu0 0.0
    %2078 = vmatpush1.msra.mxu0 0.0
    %2079 = vmatprep.subr.mxu0 0.0
    %2080 = vmatpush1.msra.mxu0 %v1951
    %2081 = vmatprep.subr.mxu0 0.0
    %2082 = vmatpush1.msra.mxu0 %v1950
    %2083 = vmatprep.subr.mxu0 0.0
    %2084 = vmatpush1.msra.mxu0 %v1949
    %2085 = vmatprep.subr.mxu0 0.0
    %2086 = vmatpush1.msra.mxu0 %v1948
    %2087 = vmatprep.subr.mxu0 0.0
    %2088 = vmatpush2.msra.mxu0 0.0
    %2089 = vmatprep.subr.mxu0 0.0
    %2090 = vmatpush2.msra.mxu0 0.0
    %2091 = vmatprep.subr.mxu0 0.0
    %2092 = vmatpush2.msra.mxu0 0.0
    %2093 = vmatprep.subr.mxu0 0.0
    %2094 = vmatpush2.msra.mxu0 0.0
    %2095 = vmatprep.subr.mxu0 0.0
    %2096 = vmatpush2.msra.mxu0 0.0
    %2097 = vmatprep.subr.mxu0 0.0
    %2098 = vmatpush2.msra.mxu0 0.0
    %2099 = vmatprep.subr.mxu0 0.0
    %2100 = vmatpush2.msra.mxu0 0.0
    %2101 = vmatprep.subr.mxu0 0.0
    %2102 = vmatpush2.msra.mxu0 0.0
    %2103 = vmatprep.subr.mxu0 0.0
    %2104 = vmatpush2.msra.mxu0 0.0
    %2105 = vmatprep.subr.mxu0 0.0
    %2106 = vmatpush2.msra.mxu0 0.0
    %2107 = vmatprep.subr.mxu0 0.0
    %2108 = vmatpush2.msra.mxu0 0.0
    %2109 = vmatprep.subr.mxu0 0.0
    %2110 = vmatpush2.msra.mxu0 0.0
    %2111 = vmatprep.subr.mxu0 0.0
    %2112 = vmatpush2.msra.mxu0 0.0
    %2113 = vmatprep.subr.mxu0 0.0
    %2114 = vmatpush2.msra.mxu0 0.0
    %2115 = vmatprep.subr.mxu0 0.0
    %2116 = vmatpush2.msra.mxu0 0.0
    %2117 = vmatprep.subr.mxu0 0.0
    %2118 = vmatpush2.msra.mxu0 0.0
    %2119 = vmatprep.mubr.f32.mxu0 0.0
    %2120 = vmatmul.mubr.f32.gmra.mxu0 %v2050
    %v2121 = vpop.f32.mrf.mxu0
    %v2122 = vadd.f32 %v2047, %v2121
    %v2123 = vpop.f32.mrf.mxu0
    %2124 = vmatprep.mubr.f32.mxu0 0.0
    %2125 = vmatmul.mubr.f32.gmra.mxu0 %v2053
    %v2126 = vpop.f32.mrf.mxu0
    %v2127 = vadd.f32 %v2047, %v2126
    %v2128 = vpop.f32.mrf.mxu0
    %2129 = vdwg.mxu0
    %2132 = vrot.lane.b32.xlu0 %v2122, 120
    %v2133 = vpop.permute.xlu0 %2132
    %2134 = vrot.lane.b32.xlu0 %v2127, 120
    %v2135 = vpop.permute.xlu0 %2134
    %2136 = vrot.lane.b32.xlu0 %v2122, 112
    %v2137 = vpop.permute.xlu0 %2136
    %2138 = vrot.lane.b32.xlu0 %v2127, 112
    %v2139 = vpop.permute.xlu0 %2138
    %2140 = vrot.lane.b32.xlu0 %v2122, 104
    %v2141 = vpop.permute.xlu0 %2140
    %2142 = vrot.lane.b32.xlu0 %v2127, 104
    %v2143 = vpop.permute.xlu0 %2142
    %2144 = vrot.lane.b32.xlu0 %v2122, 96
    %v2145 = vpop.permute.xlu0 %2144
    %v2146 = vsel %vm232, %v2122, 0
    %v2148 = vsel %vm232, %v2145, 0
    %2150 = vmatprep.subr.mxu0 0.0
    %2151 = vmatpush1.xpose.msra.mxu0 0.0
    %2152 = vmatprep.subr.mxu0 0.0
    %2153 = vmatpush1.xpose.msra.mxu0 0.0
    %2154 = vmatprep.subr.mxu0 0.0
    %2155 = vmatpush1.xpose.msra.mxu0 0.0
    %2156 = vmatprep.subr.mxu0 0.0
    %2157 = vmatpush1.xpose.msra.mxu0 0.0
    %2158 = vmatprep.subr.mxu0 0.0
    %2159 = vmatpush1.xpose.msra.mxu0 0.0
    %2160 = vmatprep.subr.mxu0 0.0
    %2161 = vmatpush1.xpose.msra.mxu0 0.0
    %2162 = vmatprep.subr.mxu0 0.0
    %2163 = vmatpush1.xpose.msra.mxu0 0.0
    %2164 = vmatprep.subr.mxu0 0.0
    %2165 = vmatpush1.xpose.msra.mxu0 0.0
    %2166 = vmatprep.subr.mxu0 0.0
    %2167 = vmatpush1.xpose.msra.mxu0 0.0
    %2168 = vmatprep.subr.mxu0 0.0
    %2169 = vmatpush1.xpose.msra.mxu0 0.0
    %2170 = vmatprep.subr.mxu0 0.0
    %2171 = vmatpush1.xpose.msra.mxu0 0.0
    %2172 = vmatprep.subr.mxu0 0.0
    %2173 = vmatpush1.xpose.msra.mxu0 0.0
    %2174 = vmatprep.subr.mxu0 0.0
    %2175 = vmatpush1.xpose.msra.mxu0 0.0
    %2176 = vmatprep.subr.mxu0 0.0
    %2177 = vmatpush1.xpose.msra.mxu0 0.0
    %2178 = vmatprep.subr.mxu0 0.0
    %2179 = vmatpush1.xpose.msra.mxu0 0.0
    %2180 = vmatprep.subr.mxu0 0.0
    %2181 = vmatpush1.xpose.msra.mxu0 %v2148
    %2182 = vmatprep.subr.mxu0 0.0
    %2183 = vmatpush2.xpose.msra.mxu0 0.0
    %2184 = vmatprep.subr.mxu0 0.0
    %2185 = vmatpush2.xpose.msra.mxu0 0.0
    %2186 = vmatprep.subr.mxu0 0.0
    %2187 = vmatpush2.xpose.msra.mxu0 0.0
    %2188 = vmatprep.subr.mxu0 0.0
    %2189 = vmatpush2.xpose.msra.mxu0 0.0
    %2190 = vmatprep.subr.mxu0 0.0
    %2191 = vmatpush2.xpose.msra.mxu0 0.0
    %2192 = vmatprep.subr.mxu0 0.0
    %2193 = vmatpush2.xpose.msra.mxu0 0.0
    %2194 = vmatprep.subr.mxu0 0.0
    %2195 = vmatpush2.xpose.msra.mxu0 0.0
    %2196 = vmatprep.subr.mxu0 0.0
    %2197 = vmatpush2.xpose.msra.mxu0 0.0
    %2198 = vmatprep.subr.mxu0 0.0
    %2199 = vmatpush2.xpose.msra.mxu0 0.0
    %2200 = vmatprep.subr.mxu0 0.0
    %2201 = vmatpush2.xpose.msra.mxu0 0.0
    %2202 = vmatprep.subr.mxu0 0.0
    %2203 = vmatpush2.xpose.msra.mxu0 0.0
    %2204 = vmatprep.subr.mxu0 0.0
    %2205 = vmatpush2.xpose.msra.mxu0 0.0
    %2206 = vmatprep.subr.mxu0 0.0
    %2207 = vmatpush2.xpose.msra.mxu0 0.0
    %2208 = vmatprep.subr.mxu0 0.0
    %2209 = vmatpush2.xpose.msra.mxu0 0.0
    %2210 = vmatprep.subr.mxu0 0.0
    %2211 = vmatpush2.xpose.msra.mxu0 0.0
    %2212 = vmatprep.subr.mxu0 0.0
    %2213 = vmatpush2.xpose.msra.mxu0 0.0
    %2214 = vmatprep.mubr.f32.mxu0 0.0
    %2215 = vmatmul.mubr.f32.gmra.mxu0 %v2146
    %v2216 = vpop.f32.mrf.mxu0
    %v2217 = vadd.f32 0.0, %v2216
    %v2218 = vpop.f32.mrf.mxu0
    %2219 = vdwg.mxu0
    %2220 = vrot.lane.b32.xlu0 %v2127, 96
    %v2221 = vpop.permute.xlu0 %2220
    %v2222 = vsel %vm232, %v2127, 0
    %v2224 = vsel %vm232, %v2221, 0
    %2226 = vmatprep.subr.mxu0 0.0
    %2227 = vmatpush1.xpose.msra.mxu0 0.0
    %2228 = vmatprep.subr.mxu0 0.0
    %2229 = vmatpush1.xpose.msra.mxu0 0.0
    %2230 = vmatprep.subr.mxu0 0.0
    %2231 = vmatpush1.xpose.msra.mxu0 0.0
    %2232 = vmatprep.subr.mxu0 0.0
    %2233 = vmatpush1.xpose.msra.mxu0 0.0
    %2234 = vmatprep.subr.mxu0 0.0
    %2235 = vmatpush1.xpose.msra.mxu0 0.0
    %2236 = vmatprep.subr.mxu0 0.0
    %2237 = vmatpush1.xpose.msra.mxu0 0.0
    %2238 = vmatprep.subr.mxu0 0.0
    %2239 = vmatpush1.xpose.msra.mxu0 0.0
    %2240 = vmatprep.subr.mxu0 0.0
    %2241 = vmatpush1.xpose.msra.mxu0 0.0
    %2242 = vmatprep.subr.mxu0 0.0
    %2243 = vmatpush1.xpose.msra.mxu0 0.0
    %2244 = vmatprep.subr.mxu0 0.0
    %2245 = vmatpush1.xpose.msra.mxu0 0.0
    %2246 = vmatprep.subr.mxu0 0.0
    %2247 = vmatpush1.xpose.msra.mxu0 0.0
    %2248 = vmatprep.subr.mxu0 0.0
    %2249 = vmatpush1.xpose.msra.mxu0 0.0
    %2250 = vmatprep.subr.mxu0 0.0
    %2251 = vmatpush1.xpose.msra.mxu0 0.0
    %2252 = vmatprep.subr.mxu0 0.0
    %2253 = vmatpush1.xpose.msra.mxu0 0.0
    %2254 = vmatprep.subr.mxu0 0.0
    %2255 = vmatpush1.xpose.msra.mxu0 0.0
    %2256 = vmatprep.subr.mxu0 0.0
    %2257 = vmatpush1.xpose.msra.mxu0 %v2224
    %2258 = vmatprep.subr.mxu0 0.0
    %2259 = vmatpush2.xpose.msra.mxu0 0.0
    %2260 = vmatprep.subr.mxu0 0.0
    %2261 = vmatpush2.xpose.msra.mxu0 0.0
    %2262 = vmatprep.subr.mxu0 0.0
    %2263 = vmatpush2.xpose.msra.mxu0 0.0
    %2264 = vmatprep.subr.mxu0 0.0
    %2265 = vmatpush2.xpose.msra.mxu0 0.0
    %2266 = vmatprep.subr.mxu0 0.0
    %2267 = vmatpush2.xpose.msra.mxu0 0.0
    %2268 = vmatprep.subr.mxu0 0.0
    %2269 = vmatpush2.xpose.msra.mxu0 0.0
    %2270 = vmatprep.subr.mxu0 0.0
    %2271 = vmatpush2.xpose.msra.mxu0 0.0
    %2272 = vmatprep.subr.mxu0 0.0
    %2273 = vmatpush2.xpose.msra.mxu0 0.0
    %2274 = vmatprep.subr.mxu0 0.0
    %2275 = vmatpush2.xpose.msra.mxu0 0.0
    %2276 = vmatprep.subr.mxu0 0.0
    %2277 = vmatpush2.xpose.msra.mxu0 0.0
    %2278 = vmatprep.subr.mxu0 0.0
    %2279 = vmatpush2.xpose.msra.mxu0 0.0
    %2280 = vmatprep.subr.mxu0 0.0
    %2281 = vmatpush2.xpose.msra.mxu0 0.0
    %2282 = vmatprep.subr.mxu0 0.0
    %2283 = vmatpush2.xpose.msra.mxu0 0.0
    %2284 = vmatprep.subr.mxu0 0.0
    %2285 = vmatpush2.xpose.msra.mxu0 0.0
    %2286 = vmatprep.subr.mxu0 0.0
    %2287 = vmatpush2.xpose.msra.mxu0 0.0
    %2288 = vmatprep.subr.mxu0 0.0
    %2289 = vmatpush2.xpose.msra.mxu0 0.0
    %2290 = vmatprep.mubr.f32.mxu0 0.0
    %2291 = vmatmul.mubr.f32.gmra.mxu0 %v2222
    %v2292 = vpop.f32.mrf.mxu0
    %v2293 = vadd.f32 0.0, %v2292
    %v2294 = vpop.f32.mrf.mxu0
    %2295 = vdwg.mxu0
    %2296 = vrot.lane.b32.xlu0 %v2133, 96
    %v2297 = vpop.permute.xlu0 %2296
    %v2298 = vsel %vm232, %v2133, 0
    %v2300 = vsel %vm232, %v2297, 0
    %2302 = vmatprep.subr.mxu0 0.0
    %2303 = vmatpush1.xpose.msra.mxu0 0.0
    %2304 = vmatprep.subr.mxu0 0.0
    %2305 = vmatpush1.xpose.msra.mxu0 0.0
    %2306 = vmatprep.subr.mxu0 0.0
    %2307 = vmatpush1.xpose.msra.mxu0 0.0
    %2308 = vmatprep.subr.mxu0 0.0
    %2309 = vmatpush1.xpose.msra.mxu0 0.0
    %2310 = vmatprep.subr.mxu0 0.0
    %2311 = vmatpush1.xpose.msra.mxu0 0.0
    %2312 = vmatprep.subr.mxu0 0.0
    %2313 = vmatpush1.xpose.msra.mxu0 0.0
    %2314 = vmatprep.subr.mxu0 0.0
    %2315 = vmatpush1.xpose.msra.mxu0 0.0
    %2316 = vmatprep.subr.mxu0 0.0
    %2317 = vmatpush1.xpose.msra.mxu0 0.0
    %2318 = vmatprep.subr.mxu0 0.0
    %2319 = vmatpush1.xpose.msra.mxu0 0.0
    %2320 = vmatprep.subr.mxu0 0.0
    %2321 = vmatpush1.xpose.msra.mxu0 0.0
    %2322 = vmatprep.subr.mxu0 0.0
    %2323 = vmatpush1.xpose.msra.mxu0 0.0
    %2324 = vmatprep.subr.mxu0 0.0
    %2325 = vmatpush1.xpose.msra.mxu0 0.0
    %2326 = vmatprep.subr.mxu0 0.0
    %2327 = vmatpush1.xpose.msra.mxu0 0.0
    %2328 = vmatprep.subr.mxu0 0.0
    %2329 = vmatpush1.xpose.msra.mxu0 0.0
    %2330 = vmatprep.subr.mxu0 0.0
    %2331 = vmatpush1.xpose.msra.mxu0 0.0
    %2332 = vmatprep.subr.mxu0 0.0
    %2333 = vmatpush1.xpose.msra.mxu0 %v2300
    %2334 = vmatprep.subr.mxu0 0.0
    %2335 = vmatpush2.xpose.msra.mxu0 0.0
    %2336 = vmatprep.subr.mxu0 0.0
    %2337 = vmatpush2.xpose.msra.mxu0 0.0
    %2338 = vmatprep.subr.mxu0 0.0
    %2339 = vmatpush2.xpose.msra.mxu0 0.0
    %2340 = vmatprep.subr.mxu0 0.0
    %2341 = vmatpush2.xpose.msra.mxu0 0.0
    %2342 = vmatprep.subr.mxu0 0.0
    %2343 = vmatpush2.xpose.msra.mxu0 0.0
    %2344 = vmatprep.subr.mxu0 0.0
    %2345 = vmatpush2.xpose.msra.mxu0 0.0
    %2346 = vmatprep.subr.mxu0 0.0
    %2347 = vmatpush2.xpose.msra.mxu0 0.0
    %2348 = vmatprep.subr.mxu0 0.0
    %2349 = vmatpush2.xpose.msra.mxu0 0.0
    %2350 = vmatprep.subr.mxu0 0.0
    %2351 = vmatpush2.xpose.msra.mxu0 0.0
    %2352 = vmatprep.subr.mxu0 0.0
    %2353 = vmatpush2.xpose.msra.mxu0 0.0
    %2354 = vmatprep.subr.mxu0 0.0
    %2355 = vmatpush2.xpose.msra.mxu0 0.0
    %2356 = vmatprep.subr.mxu0 0.0
    %2357 = vmatpush2.xpose.msra.mxu0 0.0
    %2358 = vmatprep.subr.mxu0 0.0
    %2359 = vmatpush2.xpose.msra.mxu0 0.0
    %2360 = vmatprep.subr.mxu0 0.0
    %2361 = vmatpush2.xpose.msra.mxu0 0.0
    %2362 = vmatprep.subr.mxu0 0.0
    %2363 = vmatpush2.xpose.msra.mxu0 0.0
    %2364 = vmatprep.subr.mxu0 0.0
    %2365 = vmatpush2.xpose.msra.mxu0 0.0
    %2366 = vmatprep.mubr.f32.mxu0 0.0
    %2367 = vmatmul.mubr.f32.gmra.mxu0 %v2298
    %v2368 = vpop.f32.mrf.mxu0
    %v2369 = vadd.f32 0.0, %v2368
    %v2370 = vpop.f32.mrf.mxu0
    %2371 = vdwg.mxu0
    %2372 = vrot.lane.b32.xlu0 %v2135, 96
    %v2373 = vpop.permute.xlu0 %2372
    %v2374 = vsel %vm232, %v2135, 0
    %v2376 = vsel %vm232, %v2373, 0
    %2378 = vmatprep.subr.mxu0 0.0
    %2379 = vmatpush1.xpose.msra.mxu0 0.0
    %2380 = vmatprep.subr.mxu0 0.0
    %2381 = vmatpush1.xpose.msra.mxu0 0.0
    %2382 = vmatprep.subr.mxu0 0.0
    %2383 = vmatpush1.xpose.msra.mxu0 0.0
    %2384 = vmatprep.subr.mxu0 0.0
    %2385 = vmatpush1.xpose.msra.mxu0 0.0
    %2386 = vmatprep.subr.mxu0 0.0
    %2387 = vmatpush1.xpose.msra.mxu0 0.0
    %2388 = vmatprep.subr.mxu0 0.0
    %2389 = vmatpush1.xpose.msra.mxu0 0.0
    %2390 = vmatprep.subr.mxu0 0.0
    %2391 = vmatpush1.xpose.msra.mxu0 0.0
    %2392 = vmatprep.subr.mxu0 0.0
    %2393 = vmatpush1.xpose.msra.mxu0 0.0
    %2394 = vmatprep.subr.mxu0 0.0
    %2395 = vmatpush1.xpose.msra.mxu0 0.0
    %2396 = vmatprep.subr.mxu0 0.0
    %2397 = vmatpush1.xpose.msra.mxu0 0.0
    %2398 = vmatprep.subr.mxu0 0.0
    %2399 = vmatpush1.xpose.msra.mxu0 0.0
    %2400 = vmatprep.subr.mxu0 0.0
    %2401 = vmatpush1.xpose.msra.mxu0 0.0
    %2402 = vmatprep.subr.mxu0 0.0
    %2403 = vmatpush1.xpose.msra.mxu0 0.0
    %2404 = vmatprep.subr.mxu0 0.0
    %2405 = vmatpush1.xpose.msra.mxu0 0.0
    %2406 = vmatprep.subr.mxu0 0.0
    %2407 = vmatpush1.xpose.msra.mxu0 0.0
    %2408 = vmatprep.subr.mxu0 0.0
    %2409 = vmatpush1.xpose.msra.mxu0 %v2376
    %2410 = vmatprep.subr.mxu0 0.0
    %2411 = vmatpush2.xpose.msra.mxu0 0.0
    %2412 = vmatprep.subr.mxu0 0.0
    %2413 = vmatpush2.xpose.msra.mxu0 0.0
    %2414 = vmatprep.subr.mxu0 0.0
    %2415 = vmatpush2.xpose.msra.mxu0 0.0
    %2416 = vmatprep.subr.mxu0 0.0
    %2417 = vmatpush2.xpose.msra.mxu0 0.0
    %2418 = vmatprep.subr.mxu0 0.0
    %2419 = vmatpush2.xpose.msra.mxu0 0.0
    %2420 = vmatprep.subr.mxu0 0.0
    %2421 = vmatpush2.xpose.msra.mxu0 0.0
    %2422 = vmatprep.subr.mxu0 0.0
    %2423 = vmatpush2.xpose.msra.mxu0 0.0
    %2424 = vmatprep.subr.mxu0 0.0
    %2425 = vmatpush2.xpose.msra.mxu0 0.0
    %2426 = vmatprep.subr.mxu0 0.0
    %2427 = vmatpush2.xpose.msra.mxu0 0.0
    %2428 = vmatprep.subr.mxu0 0.0
    %2429 = vmatpush2.xpose.msra.mxu0 0.0
    %2430 = vmatprep.subr.mxu0 0.0
    %2431 = vmatpush2.xpose.msra.mxu0 0.0
    %2432 = vmatprep.subr.mxu0 0.0
    %2433 = vmatpush2.xpose.msra.mxu0 0.0
    %2434 = vmatprep.subr.mxu0 0.0
    %2435 = vmatpush2.xpose.msra.mxu0 0.0
    %2436 = vmatprep.subr.mxu0 0.0
    %2437 = vmatpush2.xpose.msra.mxu0 0.0
    %2438 = vmatprep.subr.mxu0 0.0
    %2439 = vmatpush2.xpose.msra.mxu0 0.0
    %2440 = vmatprep.subr.mxu0 0.0
    %2441 = vmatpush2.xpose.msra.mxu0 0.0
    %2442 = vmatprep.mubr.f32.mxu0 0.0
    %2443 = vmatmul.mubr.f32.gmra.mxu0 %v2374
    %v2444 = vpop.f32.mrf.mxu0
    %v2445 = vadd.f32 0.0, %v2444
    %v2446 = vpop.f32.mrf.mxu0
    %2447 = vdwg.mxu0
    %2448 = vrot.lane.b32.xlu0 %v2137, 96
    %v2449 = vpop.permute.xlu0 %2448
    %v2450 = vsel %vm232, %v2137, 0
    %v2452 = vsel %vm232, %v2449, 0
    %2454 = vmatprep.subr.mxu0 0.0
    %2455 = vmatpush1.xpose.msra.mxu0 0.0
    %2456 = vmatprep.subr.mxu0 0.0
    %2457 = vmatpush1.xpose.msra.mxu0 0.0
    %2458 = vmatprep.subr.mxu0 0.0
    %2459 = vmatpush1.xpose.msra.mxu0 0.0
    %2460 = vmatprep.subr.mxu0 0.0
    %2461 = vmatpush1.xpose.msra.mxu0 0.0
    %2462 = vmatprep.subr.mxu0 0.0
    %2463 = vmatpush1.xpose.msra.mxu0 0.0
    %2464 = vmatprep.subr.mxu0 0.0
    %2465 = vmatpush1.xpose.msra.mxu0 0.0
    %2466 = vmatprep.subr.mxu0 0.0
    %2467 = vmatpush1.xpose.msra.mxu0 0.0
    %2468 = vmatprep.subr.mxu0 0.0
    %2469 = vmatpush1.xpose.msra.mxu0 0.0
    %2470 = vmatprep.subr.mxu0 0.0
    %2471 = vmatpush1.xpose.msra.mxu0 0.0
    %2472 = vmatprep.subr.mxu0 0.0
    %2473 = vmatpush1.xpose.msra.mxu0 0.0
    %2474 = vmatprep.subr.mxu0 0.0
    %2475 = vmatpush1.xpose.msra.mxu0 0.0
    %2476 = vmatprep.subr.mxu0 0.0
    %2477 = vmatpush1.xpose.msra.mxu0 0.0
    %2478 = vmatprep.subr.mxu0 0.0
    %2479 = vmatpush1.xpose.msra.mxu0 0.0
    %2480 = vmatprep.subr.mxu0 0.0
    %2481 = vmatpush1.xpose.msra.mxu0 0.0
    %2482 = vmatprep.subr.mxu0 0.0
    %2483 = vmatpush1.xpose.msra.mxu0 0.0
    %2484 = vmatprep.subr.mxu0 0.0
    %2485 = vmatpush1.xpose.msra.mxu0 %v2452
    %2486 = vmatprep.subr.mxu0 0.0
    %2487 = vmatpush2.xpose.msra.mxu0 0.0
    %2488 = vmatprep.subr.mxu0 0.0
    %2489 = vmatpush2.xpose.msra.mxu0 0.0
    %2490 = vmatprep.subr.mxu0 0.0
    %2491 = vmatpush2.xpose.msra.mxu0 0.0
    %2492 = vmatprep.subr.mxu0 0.0
    %2493 = vmatpush2.xpose.msra.mxu0 0.0
    %2494 = vmatprep.subr.mxu0 0.0
    %2495 = vmatpush2.xpose.msra.mxu0 0.0
    %2496 = vmatprep.subr.mxu0 0.0
    %2497 = vmatpush2.xpose.msra.mxu0 0.0
    %2498 = vmatprep.subr.mxu0 0.0
    %2499 = vmatpush2.xpose.msra.mxu0 0.0
    %2500 = vmatprep.subr.mxu0 0.0
    %2501 = vmatpush2.xpose.msra.mxu0 0.0
    %2502 = vmatprep.subr.mxu0 0.0
    %2503 = vmatpush2.xpose.msra.mxu0 0.0
    %2504 = vmatprep.subr.mxu0 0.0
    %2505 = vmatpush2.xpose.msra.mxu0 0.0
    %2506 = vmatprep.subr.mxu0 0.0
    %2507 = vmatpush2.xpose.msra.mxu0 0.0
    %2508 = vmatprep.subr.mxu0 0.0
    %2509 = vmatpush2.xpose.msra.mxu0 0.0
    %2510 = vmatprep.subr.mxu0 0.0
    %2511 = vmatpush2.xpose.msra.mxu0 0.0
    %2512 = vmatprep.subr.mxu0 0.0
    %2513 = vmatpush2.xpose.msra.mxu0 0.0
    %2514 = vmatprep.subr.mxu0 0.0
    %2515 = vmatpush2.xpose.msra.mxu0 0.0
    %2516 = vmatprep.subr.mxu0 0.0
    %2517 = vmatpush2.xpose.msra.mxu0 0.0
    %2518 = vmatprep.mubr.f32.mxu0 0.0
    %2519 = vmatmul.mubr.f32.gmra.mxu0 %v2450
    %v2520 = vpop.f32.mrf.mxu0
    %v2521 = vadd.f32 0.0, %v2520
    %v2522 = vpop.f32.mrf.mxu0
    %2523 = vdwg.mxu0
    %2524 = vrot.lane.b32.xlu0 %v2139, 96
    %v2525 = vpop.permute.xlu0 %2524
    %v2526 = vsel %vm232, %v2139, 0
    %v2528 = vsel %vm232, %v2525, 0
    %2530 = vmatprep.subr.mxu0 0.0
    %2531 = vmatpush1.xpose.msra.mxu0 0.0
    %2532 = vmatprep.subr.mxu0 0.0
    %2533 = vmatpush1.xpose.msra.mxu0 0.0
    %2534 = vmatprep.subr.mxu0 0.0
    %2535 = vmatpush1.xpose.msra.mxu0 0.0
    %2536 = vmatprep.subr.mxu0 0.0
    %2537 = vmatpush1.xpose.msra.mxu0 0.0
    %2538 = vmatprep.subr.mxu0 0.0
    %2539 = vmatpush1.xpose.msra.mxu0 0.0
    %2540 = vmatprep.subr.mxu0 0.0
    %2541 = vmatpush1.xpose.msra.mxu0 0.0
    %2542 = vmatprep.subr.mxu0 0.0
    %2543 = vmatpush1.xpose.msra.mxu0 0.0
    %2544 = vmatprep.subr.mxu0 0.0
    %2545 = vmatpush1.xpose.msra.mxu0 0.0
    %2546 = vmatprep.subr.mxu0 0.0
    %2547 = vmatpush1.xpose.msra.mxu0 0.0
    %2548 = vmatprep.subr.mxu0 0.0
    %2549 = vmatpush1.xpose.msra.mxu0 0.0
    %2550 = vmatprep.subr.mxu0 0.0
    %2551 = vmatpush1.xpose.msra.mxu0 0.0
    %2552 = vmatprep.subr.mxu0 0.0
    %2553 = vmatpush1.xpose.msra.mxu0 0.0
    %2554 = vmatprep.subr.mxu0 0.0
    %2555 = vmatpush1.xpose.msra.mxu0 0.0
    %2556 = vmatprep.subr.mxu0 0.0
    %2557 = vmatpush1.xpose.msra.mxu0 0.0
    %2558 = vmatprep.subr.mxu0 0.0
    %2559 = vmatpush1.xpose.msra.mxu0 0.0
    %2560 = vmatprep.subr.mxu0 0.0
    %2561 = vmatpush1.xpose.msra.mxu0 %v2528
    %2562 = vmatprep.subr.mxu0 0.0
    %2563 = vmatpush2.xpose.msra.mxu0 0.0
    %2564 = vmatprep.subr.mxu0 0.0
    %2565 = vmatpush2.xpose.msra.mxu0 0.0
    %2566 = vmatprep.subr.mxu0 0.0
    %2567 = vmatpush2.xpose.msra.mxu0 0.0
    %2568 = vmatprep.subr.mxu0 0.0
    %2569 = vmatpush2.xpose.msra.mxu0 0.0
    %2570 = vmatprep.subr.mxu0 0.0
    %2571 = vmatpush2.xpose.msra.mxu0 0.0
    %2572 = vmatprep.subr.mxu0 0.0
    %2573 = vmatpush2.xpose.msra.mxu0 0.0
    %2574 = vmatprep.subr.mxu0 0.0
    %2575 = vmatpush2.xpose.msra.mxu0 0.0
    %2576 = vmatprep.subr.mxu0 0.0
    %2577 = vmatpush2.xpose.msra.mxu0 0.0
    %2578 = vmatprep.subr.mxu0 0.0
    %2579 = vmatpush2.xpose.msra.mxu0 0.0
    %2580 = vmatprep.subr.mxu0 0.0
    %2581 = vmatpush2.xpose.msra.mxu0 0.0
    %2582 = vmatprep.subr.mxu0 0.0
    %2583 = vmatpush2.xpose.msra.mxu0 0.0
    %2584 = vmatprep.subr.mxu0 0.0
    %2585 = vmatpush2.xpose.msra.mxu0 0.0
    %2586 = vmatprep.subr.mxu0 0.0
    %2587 = vmatpush2.xpose.msra.mxu0 0.0
    %2588 = vmatprep.subr.mxu0 0.0
    %2589 = vmatpush2.xpose.msra.mxu0 0.0
    %2590 = vmatprep.subr.mxu0 0.0
    %2591 = vmatpush2.xpose.msra.mxu0 0.0
    %2592 = vmatprep.subr.mxu0 0.0
    %2593 = vmatpush2.xpose.msra.mxu0 0.0
    %2594 = vmatprep.mubr.f32.mxu0 0.0
    %2595 = vmatmul.mubr.f32.gmra.mxu0 %v2526
    %v2596 = vpop.f32.mrf.mxu0
    %v2597 = vadd.f32 0.0, %v2596
    %v2598 = vpop.f32.mrf.mxu0
    %2599 = vdwg.mxu0
    %2600 = vrot.lane.b32.xlu0 %v2141, 96
    %v2601 = vpop.permute.xlu0 %2600
    %v2602 = vsel %vm232, %v2141, 0
    %v2604 = vsel %vm232, %v2601, 0
    %2606 = vmatprep.subr.mxu0 0.0
    %2607 = vmatpush1.xpose.msra.mxu0 0.0
    %2608 = vmatprep.subr.mxu0 0.0
    %2609 = vmatpush1.xpose.msra.mxu0 0.0
    %2610 = vmatprep.subr.mxu0 0.0
    %2611 = vmatpush1.xpose.msra.mxu0 0.0
    %2612 = vmatprep.subr.mxu0 0.0
    %2613 = vmatpush1.xpose.msra.mxu0 0.0
    %2614 = vmatprep.subr.mxu0 0.0
    %2615 = vmatpush1.xpose.msra.mxu0 0.0
    %2616 = vmatprep.subr.mxu0 0.0
    %2617 = vmatpush1.xpose.msra.mxu0 0.0
    %2618 = vmatprep.subr.mxu0 0.0
    %2619 = vmatpush1.xpose.msra.mxu0 0.0
    %2620 = vmatprep.subr.mxu0 0.0
    %2621 = vmatpush1.xpose.msra.mxu0 0.0
    %2622 = vmatprep.subr.mxu0 0.0
    %2623 = vmatpush1.xpose.msra.mxu0 0.0
    %2624 = vmatprep.subr.mxu0 0.0
    %2625 = vmatpush1.xpose.msra.mxu0 0.0
    %2626 = vmatprep.subr.mxu0 0.0
    %2627 = vmatpush1.xpose.msra.mxu0 0.0
    %2628 = vmatprep.subr.mxu0 0.0
    %2629 = vmatpush1.xpose.msra.mxu0 0.0
    %2630 = vmatprep.subr.mxu0 0.0
    %2631 = vmatpush1.xpose.msra.mxu0 0.0
    %2632 = vmatprep.subr.mxu0 0.0
    %2633 = vmatpush1.xpose.msra.mxu0 0.0
    %2634 = vmatprep.subr.mxu0 0.0
    %2635 = vmatpush1.xpose.msra.mxu0 0.0
    %2636 = vmatprep.subr.mxu0 0.0
    %2637 = vmatpush1.xpose.msra.mxu0 %v2604
    %2638 = vmatprep.subr.mxu0 0.0
    %2639 = vmatpush2.xpose.msra.mxu0 0.0
    %2640 = vmatprep.subr.mxu0 0.0
    %2641 = vmatpush2.xpose.msra.mxu0 0.0
    %2642 = vmatprep.subr.mxu0 0.0
    %2643 = vmatpush2.xpose.msra.mxu0 0.0
    %2644 = vmatprep.subr.mxu0 0.0
    %2645 = vmatpush2.xpose.msra.mxu0 0.0
    %2646 = vmatprep.subr.mxu0 0.0
    %2647 = vmatpush2.xpose.msra.mxu0 0.0
    %2648 = vmatprep.subr.mxu0 0.0
    %2649 = vmatpush2.xpose.msra.mxu0 0.0
    %2650 = vmatprep.subr.mxu0 0.0
    %2651 = vmatpush2.xpose.msra.mxu0 0.0
    %2652 = vmatprep.subr.mxu0 0.0
    %2653 = vmatpush2.xpose.msra.mxu0 0.0
    %2654 = vmatprep.subr.mxu0 0.0
    %2655 = vmatpush2.xpose.msra.mxu0 0.0
    %2656 = vmatprep.subr.mxu0 0.0
    %2657 = vmatpush2.xpose.msra.mxu0 0.0
    %2658 = vmatprep.subr.mxu0 0.0
    %2659 = vmatpush2.xpose.msra.mxu0 0.0
    %2660 = vmatprep.subr.mxu0 0.0
    %2661 = vmatpush2.xpose.msra.mxu0 0.0
    %2662 = vmatprep.subr.mxu0 0.0
    %2663 = vmatpush2.xpose.msra.mxu0 0.0
    %2664 = vmatprep.subr.mxu0 0.0
    %2665 = vmatpush2.xpose.msra.mxu0 0.0
    %2666 = vmatprep.subr.mxu0 0.0
    %2667 = vmatpush2.xpose.msra.mxu0 0.0
    %2668 = vmatprep.subr.mxu0 0.0
    %2669 = vmatpush2.xpose.msra.mxu0 0.0
    %2670 = vmatprep.mubr.f32.mxu0 0.0
    %2671 = vmatmul.mubr.f32.gmra.mxu0 %v2602
    %v2672 = vpop.f32.mrf.mxu0
    %v2673 = vadd.f32 0.0, %v2672
    %v2674 = vpop.f32.mrf.mxu0
    %2675 = vdwg.mxu0
    %2676 = vrot.lane.b32.xlu0 %v2143, 96
    %v2677 = vpop.permute.xlu0 %2676
    %v2678 = vsel %vm232, %v2143, 0
    %v2680 = vsel %vm232, %v2677, 0
    %2682 = vmatprep.subr.mxu0 0.0
    %2683 = vmatpush1.xpose.msra.mxu0 0.0
    %2684 = vmatprep.subr.mxu0 0.0
    %2685 = vmatpush1.xpose.msra.mxu0 0.0
    %2686 = vmatprep.subr.mxu0 0.0
    %2687 = vmatpush1.xpose.msra.mxu0 0.0
    %2688 = vmatprep.subr.mxu0 0.0
    %2689 = vmatpush1.xpose.msra.mxu0 0.0
    %2690 = vmatprep.subr.mxu0 0.0
    %2691 = vmatpush1.xpose.msra.mxu0 0.0
    %2692 = vmatprep.subr.mxu0 0.0
    %2693 = vmatpush1.xpose.msra.mxu0 0.0
    %2694 = vmatprep.subr.mxu0 0.0
    %2695 = vmatpush1.xpose.msra.mxu0 0.0
    %2696 = vmatprep.subr.mxu0 0.0
    %2697 = vmatpush1.xpose.msra.mxu0 0.0
    %2698 = vmatprep.subr.mxu0 0.0
    %2699 = vmatpush1.xpose.msra.mxu0 0.0
    %2700 = vmatprep.subr.mxu0 0.0
    %2701 = vmatpush1.xpose.msra.mxu0 0.0
    %2702 = vmatprep.subr.mxu0 0.0
    %2703 = vmatpush1.xpose.msra.mxu0 0.0
    %2704 = vmatprep.subr.mxu0 0.0
    %2705 = vmatpush1.xpose.msra.mxu0 0.0
    %2706 = vmatprep.subr.mxu0 0.0
    %2707 = vmatpush1.xpose.msra.mxu0 0.0
    %2708 = vmatprep.subr.mxu0 0.0
    %2709 = vmatpush1.xpose.msra.mxu0 0.0
    %2710 = vmatprep.subr.mxu0 0.0
    %2711 = vmatpush1.xpose.msra.mxu0 0.0
    %2712 = vmatprep.subr.mxu0 0.0
    %2713 = vmatpush1.xpose.msra.mxu0 %v2680
    %2714 = vmatprep.subr.mxu0 0.0
    %2715 = vmatpush2.xpose.msra.mxu0 0.0
    %2716 = vmatprep.subr.mxu0 0.0
    %2717 = vmatpush2.xpose.msra.mxu0 0.0
    %2718 = vmatprep.subr.mxu0 0.0
    %2719 = vmatpush2.xpose.msra.mxu0 0.0
    %2720 = vmatprep.subr.mxu0 0.0
    %2721 = vmatpush2.xpose.msra.mxu0 0.0
    %2722 = vmatprep.subr.mxu0 0.0
    %2723 = vmatpush2.xpose.msra.mxu0 0.0
    %2724 = vmatprep.subr.mxu0 0.0
    %2725 = vmatpush2.xpose.msra.mxu0 0.0
    %2726 = vmatprep.subr.mxu0 0.0
    %2727 = vmatpush2.xpose.msra.mxu0 0.0
    %2728 = vmatprep.subr.mxu0 0.0
    %2729 = vmatpush2.xpose.msra.mxu0 0.0
    %2730 = vmatprep.subr.mxu0 0.0
    %2731 = vmatpush2.xpose.msra.mxu0 0.0
    %2732 = vmatprep.subr.mxu0 0.0
    %2733 = vmatpush2.xpose.msra.mxu0 0.0
    %2734 = vmatprep.subr.mxu0 0.0
    %2735 = vmatpush2.xpose.msra.mxu0 0.0
    %2736 = vmatprep.subr.mxu0 0.0
    %2737 = vmatpush2.xpose.msra.mxu0 0.0
    %2738 = vmatprep.subr.mxu0 0.0
    %2739 = vmatpush2.xpose.msra.mxu0 0.0
    %2740 = vmatprep.subr.mxu0 0.0
    %2741 = vmatpush2.xpose.msra.mxu0 0.0
    %2742 = vmatprep.subr.mxu0 0.0
    %2743 = vmatpush2.xpose.msra.mxu0 0.0
    %2744 = vmatprep.subr.mxu0 0.0
    %2745 = vmatpush2.xpose.msra.mxu0 0.0
    %2746 = vmatprep.mubr.f32.mxu0 0.0
    %2747 = vmatmul.mubr.f32.gmra.mxu0 %v2678
    %v2748 = vpop.f32.mrf.mxu0
    %v2749 = vadd.f32 0.0, %v2748
    %v2750 = vpop.f32.mrf.mxu0
    %2751 = vdwg.mxu0
    %v2752 = vsel %vm232, %v2217, -inf
    %2753 = vmax.xlane.f32.xlu0 %v2752
    %v2754 = vpop.xlane.xlu0 %2753
    %v2755 = vsel %vm232, %v2293, -inf
    %2756 = vmax.xlane.f32.xlu0 %v2755
    %v2757 = vpop.xlane.xlu0 %2756
    %v2758 = vsel %vm232, %v2369, -inf
    %2759 = vmax.xlane.f32.xlu0 %v2758
    %v2760 = vpop.xlane.xlu0 %2759
    %v2761 = vsel %vm232, %v2445, -inf
    %2762 = vmax.xlane.f32.xlu0 %v2761
    %v2763 = vpop.xlane.xlu0 %2762
    %v2764 = vsel %vm232, %v2521, -inf
    %2765 = vmax.xlane.f32.xlu0 %v2764
    %v2766 = vpop.xlane.xlu0 %2765
    %v2767 = vsel %vm232, %v2597, -inf
    %2768 = vmax.xlane.f32.xlu0 %v2767
    %v2769 = vpop.xlane.xlu0 %2768
    %v2770 = vsel %vm232, %v2673, -inf
    %2771 = vmax.xlane.f32.xlu0 %v2770
    %v2772 = vpop.xlane.xlu0 %2771
    %v2773 = vsel %vm232, %v2749, -inf
    %2774 = vmax.xlane.f32.xlu0 %v2773
    %v2775 = vpop.xlane.xlu0 %2774
    %v2776 = vsub.f32 %v2217, %v2754
    %v2777 = vsub.f32 %v2293, %v2757
    %v2778 = vsub.f32 %v2369, %v2760
    %v2779 = vsub.f32 %v2445, %v2763
    %v2780 = vsub.f32 %v2521, %v2766
    %v2781 = vsub.f32 %v2597, %v2769
    %v2782 = vsub.f32 %v2673, %v2772
    %v2783 = vsub.f32 %v2749, %v2775
    %v2784 = vmul.f32 %v2776, 1.442695
    %v2785 = vpow.pop %v2784
    %v2786 = vmul.f32 %v2777, 1.442695
    %v2787 = vpow.pop %v2786
    %v2788 = vmul.f32 %v2778, 1.442695
    %v2789 = vpow.pop %v2788
    %v2790 = vmul.f32 %v2779, 1.442695
    %v2791 = vpow.pop %v2790
    %v2792 = vmul.f32 %v2780, 1.442695
    %v2793 = vpow.pop %v2792
    %v2794 = vmul.f32 %v2781, 1.442695
    %v2795 = vpow.pop %v2794
    %v2796 = vmul.f32 %v2782, 1.442695
    %v2797 = vpow.pop %v2796
    %v2798 = vmul.f32 %v2783, 1.442695
    %v2799 = vpow.pop %v2798
    %v2800 = vsel %vm232, %v2785, 0.0
    %2801 = vadd.xlane.f32.xlu0 %v2800
    %v2802 = vpop.xlane.xlu0 %2801
    %v2803 = vsel %vm232, %v2787, 0.0
    %2804 = vadd.xlane.f32.xlu0 %v2803
    %v2805 = vpop.xlane.xlu0 %2804
    %v2806 = vsel %vm232, %v2789, 0.0
    %2807 = vadd.xlane.f32.xlu0 %v2806
    %v2808 = vpop.xlane.xlu0 %2807
    %v2809 = vsel %vm232, %v2791, 0.0
    %2810 = vadd.xlane.f32.xlu0 %v2809
    %v2811 = vpop.xlane.xlu0 %2810
    %v2812 = vsel %vm232, %v2793, 0.0
    %2813 = vadd.xlane.f32.xlu0 %v2812
    %v2814 = vpop.xlane.xlu0 %2813
    %v2815 = vsel %vm232, %v2795, 0.0
    %2816 = vadd.xlane.f32.xlu0 %v2815
    %v2817 = vpop.xlane.xlu0 %2816
    %v2818 = vsel %vm232, %v2797, 0.0
    %2819 = vadd.xlane.f32.xlu0 %v2818
    %v2820 = vpop.xlane.xlu0 %2819
    %v2821 = vsel %vm232, %v2799, 0.0
    %2822 = vadd.xlane.f32.xlu0 %v2821
    %v2823 = vpop.xlane.xlu0 %2822
    %v2824 = vrcp.pop %v2802
    %v2825 = vmul.f32 %v2785, %v2824
    %v2826 = vrcp.pop %v2805
    %v2827 = vmul.f32 %v2787, %v2826
    %v2828 = vrcp.pop %v2808
    %v2829 = vmul.f32 %v2789, %v2828
    %v2830 = vrcp.pop %v2811
    %v2831 = vmul.f32 %v2791, %v2830
    %v2832 = vrcp.pop %v2814
    %v2833 = vmul.f32 %v2793, %v2832
    %v2834 = vrcp.pop %v2817
    %v2835 = vmul.f32 %v2795, %v2834
    %v2836 = vrcp.pop %v2820
    %v2837 = vmul.f32 %v2797, %v2836
    %v2838 = vrcp.pop %v2823
    %v2839 = vmul.f32 %v2799, %v2838
    %2840 = vrot.lane.b32.xlu0 %v2122, 64
    %v2841 = vpop.permute.xlu0 %2840
    %v2844 = vsel %vm232, %v2825, 0
    %2846 = vmatprep.subr.mxu0 0.0
    %2847 = vmatpush1.msra.mxu0 0.0
    %2848 = vmatprep.subr.mxu0 0.0
    %2849 = vmatpush1.msra.mxu0 0.0
    %2850 = vmatprep.subr.mxu0 0.0
    %2851 = vmatpush1.msra.mxu0 0.0
    %2852 = vmatprep.subr.mxu0 0.0
    %2853 = vmatpush1.msra.mxu0 0.0
    %2854 = vmatprep.subr.mxu0 0.0
    %2855 = vmatpush1.msra.mxu0 0.0
    %2856 = vmatprep.subr.mxu0 0.0
    %2857 = vmatpush1.msra.mxu0 0.0
    %2858 = vmatprep.subr.mxu0 0.0
    %2859 = vmatpush1.msra.mxu0 0.0
    %2860 = vmatprep.subr.mxu0 0.0
    %2861 = vmatpush1.msra.mxu0 0.0
    %2862 = vmatprep.subr.mxu0 0.0
    %2863 = vmatpush1.msra.mxu0 0.0
    %2864 = vmatprep.subr.mxu0 0.0
    %2865 = vmatpush1.msra.mxu0 0.0
    %2866 = vmatprep.subr.mxu0 0.0
    %2867 = vmatpush1.msra.mxu0 0.0
    %2868 = vmatprep.subr.mxu0 0.0
    %2869 = vmatpush1.msra.mxu0 0.0
    %2870 = vmatprep.subr.mxu0 0.0
    %2871 = vmatpush1.msra.mxu0 0.0
    %2872 = vmatprep.subr.mxu0 0.0
    %2873 = vmatpush1.msra.mxu0 0.0
    %2874 = vmatprep.subr.mxu0 0.0
    %2875 = vmatpush1.msra.mxu0 0.0
    %2876 = vmatprep.subr.mxu0 0.0
    %2877 = vmatpush1.msra.mxu0 %v2841
    %2878 = vmatprep.subr.mxu0 0.0
    %2879 = vmatpush2.msra.mxu0 0.0
    %2880 = vmatprep.subr.mxu0 0.0
    %2881 = vmatpush2.msra.mxu0 0.0
    %2882 = vmatprep.subr.mxu0 0.0
    %2883 = vmatpush2.msra.mxu0 0.0
    %2884 = vmatprep.subr.mxu0 0.0
    %2885 = vmatpush2.msra.mxu0 0.0
    %2886 = vmatprep.subr.mxu0 0.0
    %2887 = vmatpush2.msra.mxu0 0.0
    %2888 = vmatprep.subr.mxu0 0.0
    %2889 = vmatpush2.msra.mxu0 0.0
    %2890 = vmatprep.subr.mxu0 0.0
    %2891 = vmatpush2.msra.mxu0 0.0
    %2892 = vmatprep.subr.mxu0 0.0
    %2893 = vmatpush2.msra.mxu0 0.0
    %2894 = vmatprep.subr.mxu0 0.0
    %2895 = vmatpush2.msra.mxu0 0.0
    %2896 = vmatprep.subr.mxu0 0.0
    %2897 = vmatpush2.msra.mxu0 0.0
    %2898 = vmatprep.subr.mxu0 0.0
    %2899 = vmatpush2.msra.mxu0 0.0
    %2900 = vmatprep.subr.mxu0 0.0
    %2901 = vmatpush2.msra.mxu0 0.0
    %2902 = vmatprep.subr.mxu0 0.0
    %2903 = vmatpush2.msra.mxu0 0.0
    %2904 = vmatprep.subr.mxu0 0.0
    %2905 = vmatpush2.msra.mxu0 0.0
    %2906 = vmatprep.subr.mxu0 0.0
    %2907 = vmatpush2.msra.mxu0 0.0
    %2908 = vmatprep.subr.mxu0 0.0
    %2909 = vmatpush2.msra.mxu0 0.0
    %2910 = vmatprep.mubr.f32.mxu0 0.0
    %2911 = vmatmul.mubr.f32.gmra.mxu0 %v2844
    %v2912 = vpop.f32.mrf.mxu0
    %v2913 = vadd.f32 0.0, %v2912
    %v2914 = vpop.f32.mrf.mxu0
    %2915 = vdwg.mxu0
    %2916 = vrot.lane.b32.xlu0 %v2127, 64
    %v2917 = vpop.permute.xlu0 %2916
    %v2920 = vsel %vm232, %v2827, 0
    %2922 = vmatprep.subr.mxu0 0.0
    %2923 = vmatpush1.msra.mxu0 0.0
    %2924 = vmatprep.subr.mxu0 0.0
    %2925 = vmatpush1.msra.mxu0 0.0
    %2926 = vmatprep.subr.mxu0 0.0
    %2927 = vmatpush1.msra.mxu0 0.0
    %2928 = vmatprep.subr.mxu0 0.0
    %2929 = vmatpush1.msra.mxu0 0.0
    %2930 = vmatprep.subr.mxu0 0.0
    %2931 = vmatpush1.msra.mxu0 0.0
    %2932 = vmatprep.subr.mxu0 0.0
    %2933 = vmatpush1.msra.mxu0 0.0
    %2934 = vmatprep.subr.mxu0 0.0
    %2935 = vmatpush1.msra.mxu0 0.0
    %2936 = vmatprep.subr.mxu0 0.0
    %2937 = vmatpush1.msra.mxu0 0.0
    %2938 = vmatprep.subr.mxu0 0.0
    %2939 = vmatpush1.msra.mxu0 0.0
    %2940 = vmatprep.subr.mxu0 0.0
    %2941 = vmatpush1.msra.mxu0 0.0
    %2942 = vmatprep.subr.mxu0 0.0
    %2943 = vmatpush1.msra.mxu0 0.0
    %2944 = vmatprep.subr.mxu0 0.0
    %2945 = vmatpush1.msra.mxu0 0.0
    %2946 = vmatprep.subr.mxu0 0.0
    %2947 = vmatpush1.msra.mxu0 0.0
    %2948 = vmatprep.subr.mxu0 0.0
    %2949 = vmatpush1.msra.mxu0 0.0
    %2950 = vmatprep.subr.mxu0 0.0
    %2951 = vmatpush1.msra.mxu0 0.0
    %2952 = vmatprep.subr.mxu0 0.0
    %2953 = vmatpush1.msra.mxu0 %v2917
    %2954 = vmatprep.subr.mxu0 0.0
    %2955 = vmatpush2.msra.mxu0 0.0
    %2956 = vmatprep.subr.mxu0 0.0
    %2957 = vmatpush2.msra.mxu0 0.0
    %2958 = vmatprep.subr.mxu0 0.0
    %2959 = vmatpush2.msra.mxu0 0.0
    %2960 = vmatprep.subr.mxu0 0.0
    %2961 = vmatpush2.msra.mxu0 0.0
    %2962 = vmatprep.subr.mxu0 0.0
    %2963 = vmatpush2.msra.mxu0 0.0
    %2964 = vmatprep.subr.mxu0 0.0
    %2965 = vmatpush2.msra.mxu0 0.0
    %2966 = vmatprep.subr.mxu0 0.0
    %2967 = vmatpush2.msra.mxu0 0.0
    %2968 = vmatprep.subr.mxu0 0.0
    %2969 = vmatpush2.msra.mxu0 0.0
    %2970 = vmatprep.subr.mxu0 0.0
    %2971 = vmatpush2.msra.mxu0 0.0
    %2972 = vmatprep.subr.mxu0 0.0
    %2973 = vmatpush2.msra.mxu0 0.0
    %2974 = vmatprep.subr.mxu0 0.0
    %2975 = vmatpush2.msra.mxu0 0.0
    %2976 = vmatprep.subr.mxu0 0.0
    %2977 = vmatpush2.msra.mxu0 0.0
    %2978 = vmatprep.subr.mxu0 0.0
    %2979 = vmatpush2.msra.mxu0 0.0
    %2980 = vmatprep.subr.mxu0 0.0
    %2981 = vmatpush2.msra.mxu0 0.0
    %2982 = vmatprep.subr.mxu0 0.0
    %2983 = vmatpush2.msra.mxu0 0.0
    %2984 = vmatprep.subr.mxu0 0.0
    %2985 = vmatpush2.msra.mxu0 0.0
    %2986 = vmatprep.mubr.f32.mxu0 0.0
    %2987 = vmatmul.mubr.f32.gmra.mxu0 %v2920
    %v2988 = vpop.f32.mrf.mxu0
    %v2989 = vadd.f32 0.0, %v2988
    %v2990 = vpop.f32.mrf.mxu0
    %2991 = vdwg.mxu0
    %2992 = vrot.lane.b32.xlu0 %v2133, 64
    %v2993 = vpop.permute.xlu0 %2992
    %v2996 = vsel %vm232, %v2829, 0
    %2998 = vmatprep.subr.mxu0 0.0
    %2999 = vmatpush1.msra.mxu0 0.0
    %3000 = vmatprep.subr.mxu0 0.0
    %3001 = vmatpush1.msra.mxu0 0.0
    %3002 = vmatprep.subr.mxu0 0.0
    %3003 = vmatpush1.msra.mxu0 0.0
    %3004 = vmatprep.subr.mxu0 0.0
    %3005 = vmatpush1.msra.mxu0 0.0
    %3006 = vmatprep.subr.mxu0 0.0
    %3007 = vmatpush1.msra.mxu0 0.0
    %3008 = vmatprep.subr.mxu0 0.0
    %3009 = vmatpush1.msra.mxu0 0.0
    %3010 = vmatprep.subr.mxu0 0.0
    %3011 = vmatpush1.msra.mxu0 0.0
    %3012 = vmatprep.subr.mxu0 0.0
    %3013 = vmatpush1.msra.mxu0 0.0
    %3014 = vmatprep.subr.mxu0 0.0
    %3015 = vmatpush1.msra.mxu0 0.0
    %3016 = vmatprep.subr.mxu0 0.0
    %3017 = vmatpush1.msra.mxu0 0.0
    %3018 = vmatprep.subr.mxu0 0.0
    %3019 = vmatpush1.msra.mxu0 0.0
    %3020 = vmatprep.subr.mxu0 0.0
    %3021 = vmatpush1.msra.mxu0 0.0
    %3022 = vmatprep.subr.mxu0 0.0
    %3023 = vmatpush1.msra.mxu0 0.0
    %3024 = vmatprep.subr.mxu0 0.0
    %3025 = vmatpush1.msra.mxu0 0.0
    %3026 = vmatprep.subr.mxu0 0.0
    %3027 = vmatpush1.msra.mxu0 0.0
    %3028 = vmatprep.subr.mxu0 0.0
    %3029 = vmatpush1.msra.mxu0 %v2993
    %3030 = vmatprep.subr.mxu0 0.0
    %3031 = vmatpush2.msra.mxu0 0.0
    %3032 = vmatprep.subr.mxu0 0.0
    %3033 = vmatpush2.msra.mxu0 0.0
    %3034 = vmatprep.subr.mxu0 0.0
    %3035 = vmatpush2.msra.mxu0 0.0
    %3036 = vmatprep.subr.mxu0 0.0
    %3037 = vmatpush2.msra.mxu0 0.0
    %3038 = vmatprep.subr.mxu0 0.0
    %3039 = vmatpush2.msra.mxu0 0.0
    %3040 = vmatprep.subr.mxu0 0.0
    %3041 = vmatpush2.msra.mxu0 0.0
    %3042 = vmatprep.subr.mxu0 0.0
    %3043 = vmatpush2.msra.mxu0 0.0
    %3044 = vmatprep.subr.mxu0 0.0
    %3045 = vmatpush2.msra.mxu0 0.0
    %3046 = vmatprep.subr.mxu0 0.0
    %3047 = vmatpush2.msra.mxu0 0.0
    %3048 = vmatprep.subr.mxu0 0.0
    %3049 = vmatpush2.msra.mxu0 0.0
    %3050 = vmatprep.subr.mxu0 0.0
    %3051 = vmatpush2.msra.mxu0 0.0
    %3052 = vmatprep.subr.mxu0 0.0
    %3053 = vmatpush2.msra.mxu0 0.0
    %3054 = vmatprep.subr.mxu0 0.0
    %3055 = vmatpush2.msra.mxu0 0.0
    %3056 = vmatprep.subr.mxu0 0.0
    %3057 = vmatpush2.msra.mxu0 0.0
    %3058 = vmatprep.subr.mxu0 0.0
    %3059 = vmatpush2.msra.mxu0 0.0
    %3060 = vmatprep.subr.mxu0 0.0
    %3061 = vmatpush2.msra.mxu0 0.0
    %3062 = vmatprep.mubr.f32.mxu0 0.0
    %3063 = vmatmul.mubr.f32.gmra.mxu0 %v2996
    %v3064 = vpop.f32.mrf.mxu0
    %v3065 = vadd.f32 0.0, %v3064
    %v3066 = vpop.f32.mrf.mxu0
    %3067 = vdwg.mxu0
    %3068 = vrot.lane.b32.xlu0 %v2135, 64
    %v3069 = vpop.permute.xlu0 %3068
    %v3072 = vsel %vm232, %v2831, 0
    %3074 = vmatprep.subr.mxu0 0.0
    %3075 = vmatpush1.msra.mxu0 0.0
    %3076 = vmatprep.subr.mxu0 0.0
    %3077 = vmatpush1.msra.mxu0 0.0
    %3078 = vmatprep.subr.mxu0 0.0
    %3079 = vmatpush1.msra.mxu0 0.0
    %3080 = vmatprep.subr.mxu0 0.0
    %3081 = vmatpush1.msra.mxu0 0.0
    %3082 = vmatprep.subr.mxu0 0.0
    %3083 = vmatpush1.msra.mxu0 0.0
    %3084 = vmatprep.subr.mxu0 0.0
    %3085 = vmatpush1.msra.mxu0 0.0
    %3086 = vmatprep.subr.mxu0 0.0
    %3087 = vmatpush1.msra.mxu0 0.0
    %3088 = vmatprep.subr.mxu0 0.0
    %3089 = vmatpush1.msra.mxu0 0.0
    %3090 = vmatprep.subr.mxu0 0.0
    %3091 = vmatpush1.msra.mxu0 0.0
    %3092 = vmatprep.subr.mxu0 0.0
    %3093 = vmatpush1.msra.mxu0 0.0
    %3094 = vmatprep.subr.mxu0 0.0
    %3095 = vmatpush1.msra.mxu0 0.0
    %3096 = vmatprep.subr.mxu0 0.0
    %3097 = vmatpush1.msra.mxu0 0.0
    %3098 = vmatprep.subr.mxu0 0.0
    %3099 = vmatpush1.msra.mxu0 0.0
    %3100 = vmatprep.subr.mxu0 0.0
    %3101 = vmatpush1.msra.mxu0 0.0
    %3102 = vmatprep.subr.mxu0 0.0
    %3103 = vmatpush1.msra.mxu0 0.0
    %3104 = vmatprep.subr.mxu0 0.0
    %3105 = vmatpush1.msra.mxu0 %v3069
    %3106 = vmatprep.subr.mxu0 0.0
    %3107 = vmatpush2.msra.mxu0 0.0
    %3108 = vmatprep.subr.mxu0 0.0
    %3109 = vmatpush2.msra.mxu0 0.0
    %3110 = vmatprep.subr.mxu0 0.0
    %3111 = vmatpush2.msra.mxu0 0.0
    %3112 = vmatprep.subr.mxu0 0.0
    %3113 = vmatpush2.msra.mxu0 0.0
    %3114 = vmatprep.subr.mxu0 0.0
    %3115 = vmatpush2.msra.mxu0 0.0
    %3116 = vmatprep.subr.mxu0 0.0
    %3117 = vmatpush2.msra.mxu0 0.0
    %3118 = vmatprep.subr.mxu0 0.0
    %3119 = vmatpush2.msra.mxu0 0.0
    %3120 = vmatprep.subr.mxu0 0.0
    %3121 = vmatpush2.msra.mxu0 0.0
    %3122 = vmatprep.subr.mxu0 0.0
    %3123 = vmatpush2.msra.mxu0 0.0
    %3124 = vmatprep.subr.mxu0 0.0
    %3125 = vmatpush2.msra.mxu0 0.0
    %3126 = vmatprep.subr.mxu0 0.0
    %3127 = vmatpush2.msra.mxu0 0.0
    %3128 = vmatprep.subr.mxu0 0.0
    %3129 = vmatpush2.msra.mxu0 0.0
    %3130 = vmatprep.subr.mxu0 0.0
    %3131 = vmatpush2.msra.mxu0 0.0
    %3132 = vmatprep.subr.mxu0 0.0
    %3133 = vmatpush2.msra.mxu0 0.0
    %3134 = vmatprep.subr.mxu0 0.0
    %3135 = vmatpush2.msra.mxu0 0.0
    %3136 = vmatprep.subr.mxu0 0.0
    %3137 = vmatpush2.msra.mxu0 0.0
    %3138 = vmatprep.mubr.f32.mxu0 0.0
    %3139 = vmatmul.mubr.f32.gmra.mxu0 %v3072
    %v3140 = vpop.f32.mrf.mxu0
    %v3141 = vadd.f32 0.0, %v3140
    %v3142 = vpop.f32.mrf.mxu0
    %3143 = vdwg.mxu0
    %3144 = vrot.lane.b32.xlu0 %v2137, 64
    %v3145 = vpop.permute.xlu0 %3144
    %v3148 = vsel %vm232, %v2833, 0
    %3150 = vmatprep.subr.mxu0 0.0
    %3151 = vmatpush1.msra.mxu0 0.0
    %3152 = vmatprep.subr.mxu0 0.0
    %3153 = vmatpush1.msra.mxu0 0.0
    %3154 = vmatprep.subr.mxu0 0.0
    %3155 = vmatpush1.msra.mxu0 0.0
    %3156 = vmatprep.subr.mxu0 0.0
    %3157 = vmatpush1.msra.mxu0 0.0
    %3158 = vmatprep.subr.mxu0 0.0
    %3159 = vmatpush1.msra.mxu0 0.0
    %3160 = vmatprep.subr.mxu0 0.0
    %3161 = vmatpush1.msra.mxu0 0.0
    %3162 = vmatprep.subr.mxu0 0.0
    %3163 = vmatpush1.msra.mxu0 0.0
    %3164 = vmatprep.subr.mxu0 0.0
    %3165 = vmatpush1.msra.mxu0 0.0
    %3166 = vmatprep.subr.mxu0 0.0
    %3167 = vmatpush1.msra.mxu0 0.0
    %3168 = vmatprep.subr.mxu0 0.0
    %3169 = vmatpush1.msra.mxu0 0.0
    %3170 = vmatprep.subr.mxu0 0.0
    %3171 = vmatpush1.msra.mxu0 0.0
    %3172 = vmatprep.subr.mxu0 0.0
    %3173 = vmatpush1.msra.mxu0 0.0
    %3174 = vmatprep.subr.mxu0 0.0
    %3175 = vmatpush1.msra.mxu0 0.0
    %3176 = vmatprep.subr.mxu0 0.0
    %3177 = vmatpush1.msra.mxu0 0.0
    %3178 = vmatprep.subr.mxu0 0.0
    %3179 = vmatpush1.msra.mxu0 0.0
    %3180 = vmatprep.subr.mxu0 0.0
    %3181 = vmatpush1.msra.mxu0 %v3145
    %3182 = vmatprep.subr.mxu0 0.0
    %3183 = vmatpush2.msra.mxu0 0.0
    %3184 = vmatprep.subr.mxu0 0.0
    %3185 = vmatpush2.msra.mxu0 0.0
    %3186 = vmatprep.subr.mxu0 0.0
    %3187 = vmatpush2.msra.mxu0 0.0
    %3188 = vmatprep.subr.mxu0 0.0
    %3189 = vmatpush2.msra.mxu0 0.0
    %3190 = vmatprep.subr.mxu0 0.0
    %3191 = vmatpush2.msra.mxu0 0.0
    %3192 = vmatprep.subr.mxu0 0.0
    %3193 = vmatpush2.msra.mxu0 0.0
    %3194 = vmatprep.subr.mxu0 0.0
    %3195 = vmatpush2.msra.mxu0 0.0
    %3196 = vmatprep.subr.mxu0 0.0
    %3197 = vmatpush2.msra.mxu0 0.0
    %3198 = vmatprep.subr.mxu0 0.0
    %3199 = vmatpush2.msra.mxu0 0.0
    %3200 = vmatprep.subr.mxu0 0.0
    %3201 = vmatpush2.msra.mxu0 0.0
    %3202 = vmatprep.subr.mxu0 0.0
    %3203 = vmatpush2.msra.mxu0 0.0
    %3204 = vmatprep.subr.mxu0 0.0
    %3205 = vmatpush2.msra.mxu0 0.0
    %3206 = vmatprep.subr.mxu0 0.0
    %3207 = vmatpush2.msra.mxu0 0.0
    %3208 = vmatprep.subr.mxu0 0.0
    %3209 = vmatpush2.msra.mxu0 0.0
    %3210 = vmatprep.subr.mxu0 0.0
    %3211 = vmatpush2.msra.mxu0 0.0
    %3212 = vmatprep.subr.mxu0 0.0
    %3213 = vmatpush2.msra.mxu0 0.0
    %3214 = vmatprep.mubr.f32.mxu0 0.0
    %3215 = vmatmul.mubr.f32.gmra.mxu0 %v3148
    %v3216 = vpop.f32.mrf.mxu0
    %v3217 = vadd.f32 0.0, %v3216
    %v3218 = vpop.f32.mrf.mxu0
    %3219 = vdwg.mxu0
    %3220 = vrot.lane.b32.xlu0 %v2139, 64
    %v3221 = vpop.permute.xlu0 %3220
    %v3224 = vsel %vm232, %v2835, 0
    %3226 = vmatprep.subr.mxu0 0.0
    %3227 = vmatpush1.msra.mxu0 0.0
    %3228 = vmatprep.subr.mxu0 0.0
    %3229 = vmatpush1.msra.mxu0 0.0
    %3230 = vmatprep.subr.mxu0 0.0
    %3231 = vmatpush1.msra.mxu0 0.0
    %3232 = vmatprep.subr.mxu0 0.0
    %3233 = vmatpush1.msra.mxu0 0.0
    %3234 = vmatprep.subr.mxu0 0.0
    %3235 = vmatpush1.msra.mxu0 0.0
    %3236 = vmatprep.subr.mxu0 0.0
    %3237 = vmatpush1.msra.mxu0 0.0
    %3238 = vmatprep.subr.mxu0 0.0
    %3239 = vmatpush1.msra.mxu0 0.0
    %3240 = vmatprep.subr.mxu0 0.0
    %3241 = vmatpush1.msra.mxu0 0.0
    %3242 = vmatprep.subr.mxu0 0.0
    %3243 = vmatpush1.msra.mxu0 0.0
    %3244 = vmatprep.subr.mxu0 0.0
    %3245 = vmatpush1.msra.mxu0 0.0
    %3246 = vmatprep.subr.mxu0 0.0
    %3247 = vmatpush1.msra.mxu0 0.0
    %3248 = vmatprep.subr.mxu0 0.0
    %3249 = vmatpush1.msra.mxu0 0.0
    %3250 = vmatprep.subr.mxu0 0.0
    %3251 = vmatpush1.msra.mxu0 0.0
    %3252 = vmatprep.subr.mxu0 0.0
    %3253 = vmatpush1.msra.mxu0 0.0
    %3254 = vmatprep.subr.mxu0 0.0
    %3255 = vmatpush1.msra.mxu0 0.0
    %3256 = vmatprep.subr.mxu0 0.0
    %3257 = vmatpush1.msra.mxu0 %v3221
    %3258 = vmatprep.subr.mxu0 0.0
    %3259 = vmatpush2.msra.mxu0 0.0
    %3260 = vmatprep.subr.mxu0 0.0
    %3261 = vmatpush2.msra.mxu0 0.0
    %3262 = vmatprep.subr.mxu0 0.0
    %3263 = vmatpush2.msra.mxu0 0.0
    %3264 = vmatprep.subr.mxu0 0.0
    %3265 = vmatpush2.msra.mxu0 0.0
    %3266 = vmatprep.subr.mxu0 0.0
    %3267 = vmatpush2.msra.mxu0 0.0
    %3268 = vmatprep.subr.mxu0 0.0
    %3269 = vmatpush2.msra.mxu0 0.0
    %3270 = vmatprep.subr.mxu0 0.0
    %3271 = vmatpush2.msra.mxu0 0.0
    %3272 = vmatprep.subr.mxu0 0.0
    %3273 = vmatpush2.msra.mxu0 0.0
    %3274 = vmatprep.subr.mxu0 0.0
    %3275 = vmatpush2.msra.mxu0 0.0
    %3276 = vmatprep.subr.mxu0 0.0
    %3277 = vmatpush2.msra.mxu0 0.0
    %3278 = vmatprep.subr.mxu0 0.0
    %3279 = vmatpush2.msra.mxu0 0.0
    %3280 = vmatprep.subr.mxu0 0.0
    %3281 = vmatpush2.msra.mxu0 0.0
    %3282 = vmatprep.subr.mxu0 0.0
    %3283 = vmatpush2.msra.mxu0 0.0
    %3284 = vmatprep.subr.mxu0 0.0
    %3285 = vmatpush2.msra.mxu0 0.0
    %3286 = vmatprep.subr.mxu0 0.0
    %3287 = vmatpush2.msra.mxu0 0.0
    %3288 = vmatprep.subr.mxu0 0.0
    %3289 = vmatpush2.msra.mxu0 0.0
    %3290 = vmatprep.mubr.f32.mxu0 0.0
    %3291 = vmatmul.mubr.f32.gmra.mxu0 %v3224
    %v3292 = vpop.f32.mrf.mxu0
    %v3293 = vadd.f32 0.0, %v3292
    %v3294 = vpop.f32.mrf.mxu0
    %3295 = vdwg.mxu0
    %3296 = vrot.lane.b32.xlu0 %v2141, 64
    %v3297 = vpop.permute.xlu0 %3296
    %v3300 = vsel %vm232, %v2837, 0
    %3302 = vmatprep.subr.mxu0 0.0
    %3303 = vmatpush1.msra.mxu0 0.0
    %3304 = vmatprep.subr.mxu0 0.0
    %3305 = vmatpush1.msra.mxu0 0.0
    %3306 = vmatprep.subr.mxu0 0.0
    %3307 = vmatpush1.msra.mxu0 0.0
    %3308 = vmatprep.subr.mxu0 0.0
    %3309 = vmatpush1.msra.mxu0 0.0
    %3310 = vmatprep.subr.mxu0 0.0
    %3311 = vmatpush1.msra.mxu0 0.0
    %3312 = vmatprep.subr.mxu0 0.0
    %3313 = vmatpush1.msra.mxu0 0.0
    %3314 = vmatprep.subr.mxu0 0.0
    %3315 = vmatpush1.msra.mxu0 0.0
    %3316 = vmatprep.subr.mxu0 0.0
    %3317 = vmatpush1.msra.mxu0 0.0
    %3318 = vmatprep.subr.mxu0 0.0
    %3319 = vmatpush1.msra.mxu0 0.0
    %3320 = vmatprep.subr.mxu0 0.0
    %3321 = vmatpush1.msra.mxu0 0.0
    %3322 = vmatprep.subr.mxu0 0.0
    %3323 = vmatpush1.msra.mxu0 0.0
    %3324 = vmatprep.subr.mxu0 0.0
    %3325 = vmatpush1.msra.mxu0 0.0
    %3326 = vmatprep.subr.mxu0 0.0
    %3327 = vmatpush1.msra.mxu0 0.0
    %3328 = vmatprep.subr.mxu0 0.0
    %3329 = vmatpush1.msra.mxu0 0.0
    %3330 = vmatprep.subr.mxu0 0.0
    %3331 = vmatpush1.msra.mxu0 0.0
    %3332 = vmatprep.subr.mxu0 0.0
    %3333 = vmatpush1.msra.mxu0 %v3297
    %3334 = vmatprep.subr.mxu0 0.0
    %3335 = vmatpush2.msra.mxu0 0.0
    %3336 = vmatprep.subr.mxu0 0.0
    %3337 = vmatpush2.msra.mxu0 0.0
    %3338 = vmatprep.subr.mxu0 0.0
    %3339 = vmatpush2.msra.mxu0 0.0
    %3340 = vmatprep.subr.mxu0 0.0
    %3341 = vmatpush2.msra.mxu0 0.0
    %3342 = vmatprep.subr.mxu0 0.0
    %3343 = vmatpush2.msra.mxu0 0.0
    %3344 = vmatprep.subr.mxu0 0.0
    %3345 = vmatpush2.msra.mxu0 0.0
    %3346 = vmatprep.subr.mxu0 0.0
    %3347 = vmatpush2.msra.mxu0 0.0
    %3348 = vmatprep.subr.mxu0 0.0
    %3349 = vmatpush2.msra.mxu0 0.0
    %3350 = vmatprep.subr.mxu0 0.0
    %3351 = vmatpush2.msra.mxu0 0.0
    %3352 = vmatprep.subr.mxu0 0.0
    %3353 = vmatpush2.msra.mxu0 0.0
    %3354 = vmatprep.subr.mxu0 0.0
    %3355 = vmatpush2.msra.mxu0 0.0
    %3356 = vmatprep.subr.mxu0 0.0
    %3357 = vmatpush2.msra.mxu0 0.0
    %3358 = vmatprep.subr.mxu0 0.0
    %3359 = vmatpush2.msra.mxu0 0.0
    %3360 = vmatprep.subr.mxu0 0.0
    %3361 = vmatpush2.msra.mxu0 0.0
    %3362 = vmatprep.subr.mxu0 0.0
    %3363 = vmatpush2.msra.mxu0 0.0
    %3364 = vmatprep.subr.mxu0 0.0
    %3365 = vmatpush2.msra.mxu0 0.0
    %3366 = vmatprep.mubr.f32.mxu0 0.0
    %3367 = vmatmul.mubr.f32.gmra.mxu0 %v3300
    %v3368 = vpop.f32.mrf.mxu0
    %v3369 = vadd.f32 0.0, %v3368
    %v3370 = vpop.f32.mrf.mxu0
    %3371 = vdwg.mxu0
    %3372 = vrot.lane.b32.xlu0 %v2143, 64
    %v3373 = vpop.permute.xlu0 %3372
    %v3376 = vsel %vm232, %v2839, 0
    %3378 = vmatprep.subr.mxu0 0.0
    %3379 = vmatpush1.msra.mxu0 0.0
    %3380 = vmatprep.subr.mxu0 0.0
    %3381 = vmatpush1.msra.mxu0 0.0
    %3382 = vmatprep.subr.mxu0 0.0
    %3383 = vmatpush1.msra.mxu0 0.0
    %3384 = vmatprep.subr.mxu0 0.0
    %3385 = vmatpush1.msra.mxu0 0.0
    %3386 = vmatprep.subr.mxu0 0.0
    %3387 = vmatpush1.msra.mxu0 0.0
    %3388 = vmatprep.subr.mxu0 0.0
    %3389 = vmatpush1.msra.mxu0 0.0
    %3390 = vmatprep.subr.mxu0 0.0
    %3391 = vmatpush1.msra.mxu0 0.0
    %3392 = vmatprep.subr.mxu0 0.0
    %3393 = vmatpush1.msra.mxu0 0.0
    %3394 = vmatprep.subr.mxu0 0.0
    %3395 = vmatpush1.msra.mxu0 0.0
    %3396 = vmatprep.subr.mxu0 0.0
    %3397 = vmatpush1.msra.mxu0 0.0
    %3398 = vmatprep.subr.mxu0 0.0
    %3399 = vmatpush1.msra.mxu0 0.0
    %3400 = vmatprep.subr.mxu0 0.0
    %3401 = vmatpush1.msra.mxu0 0.0
    %3402 = vmatprep.subr.mxu0 0.0
    %3403 = vmatpush1.msra.mxu0 0.0
    %3404 = vmatprep.subr.mxu0 0.0
    %3405 = vmatpush1.msra.mxu0 0.0
    %3406 = vmatprep.subr.mxu0 0.0
    %3407 = vmatpush1.msra.mxu0 0.0
    %3408 = vmatprep.subr.mxu0 0.0
    %3409 = vmatpush1.msra.mxu0 %v3373
    %3410 = vmatprep.subr.mxu0 0.0
    %3411 = vmatpush2.msra.mxu0 0.0
    %3412 = vmatprep.subr.mxu0 0.0
    %3413 = vmatpush2.msra.mxu0 0.0
    %3414 = vmatprep.subr.mxu0 0.0
    %3415 = vmatpush2.msra.mxu0 0.0
    %3416 = vmatprep.subr.mxu0 0.0
    %3417 = vmatpush2.msra.mxu0 0.0
    %3418 = vmatprep.subr.mxu0 0.0
    %3419 = vmatpush2.msra.mxu0 0.0
    %3420 = vmatprep.subr.mxu0 0.0
    %3421 = vmatpush2.msra.mxu0 0.0
    %3422 = vmatprep.subr.mxu0 0.0
    %3423 = vmatpush2.msra.mxu0 0.0
    %3424 = vmatprep.subr.mxu0 0.0
    %3425 = vmatpush2.msra.mxu0 0.0
    %3426 = vmatprep.subr.mxu0 0.0
    %3427 = vmatpush2.msra.mxu0 0.0
    %3428 = vmatprep.subr.mxu0 0.0
    %3429 = vmatpush2.msra.mxu0 0.0
    %3430 = vmatprep.subr.mxu0 0.0
    %3431 = vmatpush2.msra.mxu0 0.0
    %3432 = vmatprep.subr.mxu0 0.0
    %3433 = vmatpush2.msra.mxu0 0.0
    %3434 = vmatprep.subr.mxu0 0.0
    %3435 = vmatpush2.msra.mxu0 0.0
    %3436 = vmatprep.subr.mxu0 0.0
    %3437 = vmatpush2.msra.mxu0 0.0
    %3438 = vmatprep.subr.mxu0 0.0
    %3439 = vmatpush2.msra.mxu0 0.0
    %3440 = vmatprep.subr.mxu0 0.0
    %3441 = vmatpush2.msra.mxu0 0.0
    %3442 = vmatprep.mubr.f32.mxu0 0.0
    %3443 = vmatmul.mubr.f32.gmra.mxu0 %v3376
    %v3444 = vpop.f32.mrf.mxu0
    %v3445 = vadd.f32 0.0, %v3444
    %v3446 = vpop.f32.mrf.mxu0
    %3447 = vdwg.mxu0
    %3450 = vrot.lane.b32.xlu0 %v3065, 8
    %v3451 = vpop.permute.xlu0 %3450
    %3452 = vrot.lane.b32.xlu0 %v3141, 8
    %v3453 = vpop.permute.xlu0 %3452
    %3458 = vrot.lane.b32.xlu0 %v3217, 16
    %v3459 = vpop.permute.xlu0 %3458
    %3460 = vrot.lane.b32.xlu0 %v3293, 16
    %v3461 = vpop.permute.xlu0 %3460
    %3466 = vrot.lane.b32.xlu0 %v3369, 24
    %v3467 = vpop.permute.xlu0 %3466
    %3468 = vrot.lane.b32.xlu0 %v3445, 24
    %v3469 = vpop.permute.xlu0 %3468
    %v3472 = vsel %vm232, %v2913, %v3451
    %v3473 = vsel %vm232, %v2989, %v3453
    %v3474 = vsel %vm1561, %v3472, %v3459
    %v3475 = vsel %vm1561, %v3473, %v3461
    %v3476 = vsel %vm1564, %v3474, %v3467
    %v3477 = vsel %vm1564, %v3475, %v3469
    %v3479 = vlaneseq
    %v3480 = vshrl.u32 %v3479, 7
    %v3481 = vsub.s32 0, %v3480
    %v3482 = vrot.slane %v1960, %v3481
    %v3485 = vsel %vm81, %v3476, 0
    %v3488 = vsel %vm81, %v3477, 0
    %3490 = vmatprep.subr.mxu0 0.0
    %3491 = vmatpush1.msra.mxu0 0.0
    %3492 = vmatprep.subr.mxu0 0.0
    %3493 = vmatpush1.msra.mxu0 0.0
    %3494 = vmatprep.subr.mxu0 0.0
    %3495 = vmatpush1.msra.mxu0 0.0
    %3496 = vmatprep.subr.mxu0 0.0
    %3497 = vmatpush1.msra.mxu0 0.0
    %3498 = vmatprep.subr.mxu0 0.0
    %3499 = vmatpush1.msra.mxu0 0.0
    %3500 = vmatprep.subr.mxu0 0.0
    %3501 = vmatpush1.msra.mxu0 0.0
    %3502 = vmatprep.subr.mxu0 0.0
    %3503 = vmatpush1.msra.mxu0 0.0
    %3504 = vmatprep.subr.mxu0 0.0
    %3505 = vmatpush1.msra.mxu0 0.0
    %3506 = vmatprep.subr.mxu0 0.0
    %3507 = vmatpush1.msra.mxu0 0.0
    %3508 = vmatprep.subr.mxu0 0.0
    %3509 = vmatpush1.msra.mxu0 0.0
    %3510 = vmatprep.subr.mxu0 0.0
    %3511 = vmatpush1.msra.mxu0 0.0
    %3512 = vmatprep.subr.mxu0 0.0
    %3513 = vmatpush1.msra.mxu0 0.0
    %3514 = vmatprep.subr.mxu0 0.0
    %3515 = vmatpush1.msra.mxu0 %v1958
    %3516 = vmatprep.subr.mxu0 0.0
    %3517 = vmatpush1.msra.mxu0 %v1957
    %3518 = vmatprep.subr.mxu0 0.0
    %3519 = vmatpush1.msra.mxu0 %v1956
    %3520 = vmatprep.subr.mxu0 0.0
    %3521 = vmatpush1.msra.mxu0 %v1955
    %3522 = vmatprep.subr.mxu0 0.0
    %3523 = vmatpush2.msra.mxu0 0.0
    %3524 = vmatprep.subr.mxu0 0.0
    %3525 = vmatpush2.msra.mxu0 0.0
    %3526 = vmatprep.subr.mxu0 0.0
    %3527 = vmatpush2.msra.mxu0 0.0
    %3528 = vmatprep.subr.mxu0 0.0
    %3529 = vmatpush2.msra.mxu0 0.0
    %3530 = vmatprep.subr.mxu0 0.0
    %3531 = vmatpush2.msra.mxu0 0.0
    %3532 = vmatprep.subr.mxu0 0.0
    %3533 = vmatpush2.msra.mxu0 0.0
    %3534 = vmatprep.subr.mxu0 0.0
    %3535 = vmatpush2.msra.mxu0 0.0
    %3536 = vmatprep.subr.mxu0 0.0
    %3537 = vmatpush2.msra.mxu0 0.0
    %3538 = vmatprep.subr.mxu0 0.0
    %3539 = vmatpush2.msra.mxu0 0.0
    %3540 = vmatprep.subr.mxu0 0.0
    %3541 = vmatpush2.msra.mxu0 0.0
    %3542 = vmatprep.subr.mxu0 0.0
    %3543 = vmatpush2.msra.mxu0 0.0
    %3544 = vmatprep.subr.mxu0 0.0
    %3545 = vmatpush2.msra.mxu0 0.0
    %3546 = vmatprep.subr.mxu0 0.0
    %3547 = vmatpush2.msra.mxu0 0.0
    %3548 = vmatprep.subr.mxu0 0.0
    %3549 = vmatpush2.msra.mxu0 0.0
    %3550 = vmatprep.subr.mxu0 0.0
    %3551 = vmatpush2.msra.mxu0 0.0
    %3552 = vmatprep.subr.mxu0 0.0
    %3553 = vmatpush2.msra.mxu0 0.0
    %3554 = vmatprep.mubr.f32.mxu0 0.0
    %3555 = vmatmul.mubr.f32.gmra.mxu0 %v3485
    %v3556 = vpop.f32.mrf.mxu0
    %v3557 = vadd.f32 %v3482, %v3556
    %v3558 = vpop.f32.mrf.mxu0
    %3559 = vmatprep.mubr.f32.mxu0 0.0
    %3560 = vmatmul.mubr.f32.gmra.mxu0 %v3488
    %v3561 = vpop.f32.mrf.mxu0
    %v3562 = vadd.f32 %v3482, %v3561
    %v3563 = vpop.f32.mrf.mxu0
    %3564 = vdwg.mxu0
    %v3565 = vadd.f32 %v1993, %v3557
    %v3566 = vadd.f32 %v1994, %v3562
    %v3567 = vmul.f32 %v3565, %v1986
    %v3568 = vmul.f32 %v3566, %v1991
    %v3569 = vsel %vm81, %v3567, 0.0
    %3570 = vadd.xlane.f32.xlu0 %v3569
    %v3571 = vpop.xlane.xlu0 %3570
    %v3572 = vsel %vm81, %v3568, 0.0
    %3573 = vadd.xlane.f32.xlu0 %v3572
    %v3574 = vpop.xlane.xlu0 %3573
    %v3575 = vmul.f32 %v3571, %v88
    %v3576 = vmul.f32 %v3574, %v88
    %v3577 = vmul.f32 %v3567, %v3567
    %v3578 = vmul.f32 %v3568, %v3568
    %v3579 = vsel %vm81, %v3577, 0.0
    %3580 = vadd.xlane.f32.xlu0 %v3579
    %v3581 = vpop.xlane.xlu0 %3580
    %v3582 = vsel %vm81, %v3578, 0.0
    %3583 = vadd.xlane.f32.xlu0 %v3582
    %v3584 = vpop.xlane.xlu0 %3583
    %v3585 = vmul.f32 %v3581, %v88
    %v3586 = vmul.f32 %v3584, %v88
    %v3587 = vmul.f32 %v3575, %v3575
    %v3588 = vmul.f32 %v3576, %v3576
    %v3589 = vsub.f32 %v3585, %v3587
    %v3590 = vsub.f32 %v3586, %v3588
    %v3591 = vsub.f32 %v3567, %v3575
    %v3592 = vsub.f32 %v3568, %v3576
    %v3593 = vadd.f32 %v3589, 1e-05
    %v3594 = vadd.f32 %v3590, 1e-05
    %v3595 = vrsqrt.pop %v3593
    %v3596 = vrsqrt.pop %v3594
    %v3597 = vmul.f32 %v3591, %v3595
    %v3598 = vmul.f32 %v3592, %v3596
    %v3600 = vlaneseq
    %v3601 = vshrl.u32 %v3600, 7
    %v3602 = vsub.s32 0, %v3601
    %v3603 = vrot.slane %v1962, %v3602
    %v3605 = vmul.f32 %v3597, %v3603
    %v3606 = vmul.f32 %v3598, %v3603
    %v3608 = vlaneseq
    %v3609 = vshrl.u32 %v3608, 7
    %v3610 = vsub.s32 0, %v3609
    %v3611 = vrot.slane %v1964, %v3610
    %v3613 = vadd.f32 %v3605, %v3611
    %v3614 = vadd.f32 %v3606, %v3611
    %v3615 = vmul.f32 %v3613, %v1986
    %v3616 = vmul.f32 %v3614, %v1991
    %v3618 = vlaneseq
    %v3619 = vshrl.u32 %v3618, 7
    %v3620 = vsub.s32 0, %v3619
    %v3621 = vrot.slane %v1971, %v3620
    %v3624 = vsel %vm81, %v3615, 0
    %v3627 = vsel %vm81, %v3616, 0
    %3629 = vmatprep.subr.mxu0 0.0
    %3630 = vmatpush1.msra.mxu0 0.0
    %3631 = vmatprep.subr.mxu0 0.0
    %3632 = vmatpush1.msra.mxu0 0.0
    %3633 = vmatprep.subr.mxu0 0.0
    %3634 = vmatpush1.msra.mxu0 0.0
    %3635 = vmatprep.subr.mxu0 0.0
    %3636 = vmatpush1.msra.mxu0 0.0
    %3637 = vmatprep.subr.mxu0 0.0
    %3638 = vmatpush1.msra.mxu0 0.0
    %3639 = vmatprep.subr.mxu0 0.0
    %3640 = vmatpush1.msra.mxu0 0.0
    %3641 = vmatprep.subr.mxu0 0.0
    %3642 = vmatpush1.msra.mxu0 0.0
    %3643 = vmatprep.subr.mxu0 0.0
    %3644 = vmatpush1.msra.mxu0 0.0
    %3645 = vmatprep.subr.mxu0 0.0
    %3646 = vmatpush1.msra.mxu0 0.0
    %3647 = vmatprep.subr.mxu0 0.0
    %3648 = vmatpush1.msra.mxu0 0.0
    %3649 = vmatprep.subr.mxu0 0.0
    %3650 = vmatpush1.msra.mxu0 0.0
    %3651 = vmatprep.subr.mxu0 0.0
    %3652 = vmatpush1.msra.mxu0 0.0
    %3653 = vmatprep.subr.mxu0 0.0
    %3654 = vmatpush1.msra.mxu0 %v1969
    %3655 = vmatprep.subr.mxu0 0.0
    %3656 = vmatpush1.msra.mxu0 %v1968
    %3657 = vmatprep.subr.mxu0 0.0
    %3658 = vmatpush1.msra.mxu0 %v1967
    %3659 = vmatprep.subr.mxu0 0.0
    %3660 = vmatpush1.msra.mxu0 %v1966
    %3661 = vmatprep.subr.mxu0 0.0
    %3662 = vmatpush2.msra.mxu0 0.0
    %3663 = vmatprep.subr.mxu0 0.0
    %3664 = vmatpush2.msra.mxu0 0.0
    %3665 = vmatprep.subr.mxu0 0.0
    %3666 = vmatpush2.msra.mxu0 0.0
    %3667 = vmatprep.subr.mxu0 0.0
    %3668 = vmatpush2.msra.mxu0 0.0
    %3669 = vmatprep.subr.mxu0 0.0
    %3670 = vmatpush2.msra.mxu0 0.0
    %3671 = vmatprep.subr.mxu0 0.0
    %3672 = vmatpush2.msra.mxu0 0.0
    %3673 = vmatprep.subr.mxu0 0.0
    %3674 = vmatpush2.msra.mxu0 0.0
    %3675 = vmatprep.subr.mxu0 0.0
    %3676 = vmatpush2.msra.mxu0 0.0
    %3677 = vmatprep.subr.mxu0 0.0
    %3678 = vmatpush2.msra.mxu0 0.0
    %3679 = vmatprep.subr.mxu0 0.0
    %3680 = vmatpush2.msra.mxu0 0.0
    %3681 = vmatprep.subr.mxu0 0.0
    %3682 = vmatpush2.msra.mxu0 0.0
    %3683 = vmatprep.subr.mxu0 0.0
    %3684 = vmatpush2.msra.mxu0 0.0
    %3685 = vmatprep.subr.mxu0 0.0
    %3686 = vmatpush2.msra.mxu0 0.0
    %3687 = vmatprep.subr.mxu0 0.0
    %3688 = vmatpush2.msra.mxu0 0.0
    %3689 = vmatprep.subr.mxu0 0.0
    %3690 = vmatpush2.msra.mxu0 0.0
    %3691 = vmatprep.subr.mxu0 0.0
    %3692 = vmatpush2.msra.mxu0 0.0
    %3693 = vmatprep.mubr.f32.mxu0 0.0
    %3694 = vmatmul.mubr.f32.gmra.mxu0 %v3624
    %v3695 = vpop.f32.mrf.mxu0
    %v3696 = vadd.f32 %v3621, %v3695
    %v3697 = vpop.f32.mrf.mxu0
    %3698 = vmatprep.mubr.f32.mxu0 0.0
    %3699 = vmatmul.mubr.f32.gmra.mxu0 %v3627
    %v3700 = vpop.f32.mrf.mxu0
    %v3701 = vadd.f32 %v3621, %v3700
    %v3702 = vpop.f32.mrf.mxu0
    %3703 = vdwg.mxu0
    %v3704 = vmul.f32 %v3696, %v3696
    %v3705 = vmul.f32 %v3701, %v3701
    %v3706 = vmul.f32 %v3696, %v3704
    %v3707 = vmul.f32 %v3701, %v3705
    %v3708 = vmul.f32 %v3706, 0.044715
    %v3709 = vmul.f32 %v3707, 0.044715
    %v3710 = vadd.f32 %v3696, %v3708
    %v3711 = vadd.f32 %v3701, %v3709
    %v3712 = vmul.f32 %v3710, 0.7978846
    %v3713 = vmul.f32 %v3711, 0.7978846
    %v3714 = vtanh.pop %v3712
    %v3715 = vtanh.pop %v3713
    %v3716 = vadd.f32 %v3714, 1.0
    %v3717 = vadd.f32 %v3715, 1.0
    %v3718 = vmul.f32 %v3716, 0.5
    %v3719 = vmul.f32 %v3717, 0.5
    %v3720 = vmul.f32 %v3696, %v3718
    %v3721 = vmul.f32 %v3701, %v3719
    %v3723 = vlaneseq
    %v3724 = vshrl.u32 %v3723, 7
    %v3725 = vsub.s32 0, %v3724
    %v3726 = vrot.slane %v1982, %v3725
    %v3729 = vsel %vm1813, %v3720, 0
    %v3732 = vsel %vm1813, %v3721, 0
    %3734 = vmatprep.subr.mxu0 0.0
    %3735 = vmatpush1.msra.mxu0 0.0
    %3736 = vmatprep.subr.mxu0 0.0
    %3737 = vmatpush1.msra.mxu0 0.0
    %3738 = vmatprep.subr.mxu0 0.0
    %3739 = vmatpush1.msra.mxu0 0.0
    %3740 = vmatprep.subr.mxu0 0.0
    %3741 = vmatpush1.msra.mxu0 0.0
    %3742 = vmatprep.subr.mxu0 0.0
    %3743 = vmatpush1.msra.mxu0 0.0
    %3744 = vmatprep.subr.mxu0 0.0
    %3745 = vmatpush1.msra.mxu0 0.0
    %3746 = vmatprep.subr.mxu0 0.0
    %3747 = vmatpush1.msra.mxu0 0.0
    %3748 = vmatprep.subr.mxu0 0.0
    %3749 = vmatpush1.msra.mxu0 0.0
    %3750 = vmatprep.subr.mxu0 0.0
    %3751 = vmatpush1.msra.mxu0 %v1980
    %3752 = vmatprep.subr.mxu0 0.0
    %3753 = vmatpush1.msra.mxu0 %v1979
    %3754 = vmatprep.subr.mxu0 0.0
    %3755 = vmatpush1.msra.mxu0 %v1978
    %3756 = vmatprep.subr.mxu0 0.0
    %3757 = vmatpush1.msra.mxu0 %v1977
    %3758 = vmatprep.subr.mxu0 0.0
    %3759 = vmatpush1.msra.mxu0 %v1976
    %3760 = vmatprep.subr.mxu0 0.0
    %3761 = vmatpush1.msra.mxu0 %v1975
    %3762 = vmatprep.subr.mxu0 0.0
    %3763 = vmatpush1.msra.mxu0 %v1974
    %3764 = vmatprep.subr.mxu0 0.0
    %3765 = vmatpush1.msra.mxu0 %v1973
    %3766 = vmatprep.subr.mxu0 0.0
    %3767 = vmatpush2.msra.mxu0 0.0
    %3768 = vmatprep.subr.mxu0 0.0
    %3769 = vmatpush2.msra.mxu0 0.0
    %3770 = vmatprep.subr.mxu0 0.0
    %3771 = vmatpush2.msra.mxu0 0.0
    %3772 = vmatprep.subr.mxu0 0.0
    %3773 = vmatpush2.msra.mxu0 0.0
    %3774 = vmatprep.subr.mxu0 0.0
    %3775 = vmatpush2.msra.mxu0 0.0
    %3776 = vmatprep.subr.mxu0 0.0
    %3777 = vmatpush2.msra.mxu0 0.0
    %3778 = vmatprep.subr.mxu0 0.0
    %3779 = vmatpush2.msra.mxu0 0.0
    %3780 = vmatprep.subr.mxu0 0.0
    %3781 = vmatpush2.msra.mxu0 0.0
    %3782 = vmatprep.subr.mxu0 0.0
    %3783 = vmatpush2.msra.mxu0 0.0
    %3784 = vmatprep.subr.mxu0 0.0
    %3785 = vmatpush2.msra.mxu0 0.0
    %3786 = vmatprep.subr.mxu0 0.0
    %3787 = vmatpush2.msra.mxu0 0.0
    %3788 = vmatprep.subr.mxu0 0.0
    %3789 = vmatpush2.msra.mxu0 0.0
    %3790 = vmatprep.subr.mxu0 0.0
    %3791 = vmatpush2.msra.mxu0 0.0
    %3792 = vmatprep.subr.mxu0 0.0
    %3793 = vmatpush2.msra.mxu0 0.0
    %3794 = vmatprep.subr.mxu0 0.0
    %3795 = vmatpush2.msra.mxu0 0.0
    %3796 = vmatprep.subr.mxu0 0.0
    %3797 = vmatpush2.msra.mxu0 0.0
    %3798 = vmatprep.mubr.f32.mxu0 0.0
    %3799 = vmatmul.mubr.f32.gmra.mxu0 %v3729
    %v3800 = vpop.f32.mrf.mxu0
    %v3801 = vadd.f32 %v3726, %v3800
    %v3802 = vpop.f32.mrf.mxu0
    %3803 = vmatprep.mubr.f32.mxu0 0.0
    %3804 = vmatmul.mubr.f32.gmra.mxu0 %v3732
    %v3805 = vpop.f32.mrf.mxu0
    %v3806 = vadd.f32 %v3726, %v3805
    %v3807 = vpop.f32.mrf.mxu0
    %3808 = vdwg.mxu0
    %v3809 = vadd.f32 %v3565, %v3801
    %v3810 = vadd.f32 %v3566, %v3806
    %v3811 = vmul.f32 %v3809, %v1986
    %v3812 = vmul.f32 %v3810, %v1991
    %v3813 = vadd.f32 %v1910, 1.0
    %v3814 = vadd.f32 %v1912, 1.0
    %vm3815 = vcmp.gt.f32.partialorder %v3813, 0.99
    %vm3816 = vcmp.gt.f32.partialorder %v3814, 0.99
    %v3817 = vsel %vm3815, 1, 0
    %v3818 = vsel %vm3816, 1, 0
    %v3819 = vcvt.s32.f32 %v3817
    %v3820 = vcvt.s32.f32 %v3818
    %vm3821 = vcmp.lt.f32.partialorder %v3813, 0.99
    %vm3822 = vcmp.lt.f32.partialorder %v3814, 0.99
    %v3823 = vsel %vm3821, 1, 0
    %v3824 = vsel %vm3822, 1, 0
    %v3825 = vcvt.s32.f32 %v3823
    %v3826 = vcvt.s32.f32 %v3824
    %v3827 = vmul.f32 %v1941, %v3819
    %v3828 = vmul.f32 %v1942, %v3820
    %v3829 = vadd.f32 %v3827, %v3825
    %v3830 = vadd.f32 %v3828, %v3826
    %3832 = vset.pattern.permute.xlu0 0
    %3833 = vperm.xlu0 %3832, %v3829
    %v3834 = vpop.permute.xlu0 %3833
    %3837 = vset.pattern.permute.xlu0 0
    %3838 = vperm.xlu0 %3837, %v3830
    %v3839 = vpop.permute.xlu0 %3838
    %v3841 = vmul.f32 %v3811, %v3834
    %v3842 = vmul.f32 %v3812, %v3839
    %v3843 = vadd.f32 %v1939, %v3841
    %v3844 = vadd.f32 %v1940, %v3842
    %v3845 = vld [vmem:[%s13] sm:$0x1]
    %v3846 = vld [vmem:[%s14] sm:$0x1]
    %v3847 = vsel %vm81, %v3843, 0.0
    %3848 = vadd.xlane.f32.xlu0 %v3847
    %v3849 = vpop.xlane.xlu0 %3848
    %v3850 = vsel %vm81, %v3844, 0.0
    %3851 = vadd.xlane.f32.xlu0 %v3850
    %v3852 = vpop.xlane.xlu0 %3851
    %v3853 = vmul.f32 %v3849, %v88
    %v3854 = vmul.f32 %v3852, %v88
    %v3855 = vmul.f32 %v3843, %v3843
    %v3856 = vmul.f32 %v3844, %v3844
    %v3857 = vsel %vm81, %v3855, 0.0
    %3858 = vadd.xlane.f32.xlu0 %v3857
    %v3859 = vpop.xlane.xlu0 %3858
    %v3860 = vsel %vm81, %v3856, 0.0
    %3861 = vadd.xlane.f32.xlu0 %v3860
    %v3862 = vpop.xlane.xlu0 %3861
    %v3863 = vmul.f32 %v3859, %v88
    %v3864 = vmul.f32 %v3862, %v88
    %v3865 = vmul.f32 %v3853, %v3853
    %v3866 = vmul.f32 %v3854, %v3854
    %v3867 = vsub.f32 %v3863, %v3865
    %v3868 = vsub.f32 %v3864, %v3866
    %v3869 = vsub.f32 %v3843, %v3853
    %v3870 = vsub.f32 %v3844, %v3854
    %v3871 = vadd.f32 %v3867, 1e-05
    %v3872 = vadd.f32 %v3868, 1e-05
    %v3873 = vrsqrt.pop %v3871
    %v3874 = vrsqrt.pop %v3872
    %v3875 = vmul.f32 %v3869, %v3873
    %v3876 = vmul.f32 %v3870, %v3874
    %v3878 = vlaneseq
    %v3879 = vshrl.u32 %v3878, 7
    %v3880 = vsub.s32 0, %v3879
    %v3881 = vrot.slane %v3845, %v3880
    %v3883 = vmul.f32 %v3875, %v3881
    %v3884 = vmul.f32 %v3876, %v3881
    %v3886 = vlaneseq
    %v3887 = vshrl.u32 %v3886, 7
    %v3888 = vsub.s32 0, %v3887
    %v3889 = vrot.slane %v3846, %v3888
    %v3891 = vadd.f32 %v3883, %v3889
    %v3892 = vadd.f32 %v3884, %v3889
    %3893 = vst.msk [vmem:[#allocation2] sm:$0xff] %vm81, %v3891
    %3894 = vst.msk [vmem:[#allocation2 + $0x8] sm:$0xff] %vm81, %v3892
    // Predicated region
    $region62: #{avit_encoder.1} parent=1 // pred_check
      _
    $region63: #{avit_encoder.1} parent=1 // pred_check_branch
      %3896 = sbr.rel (0) target = $region65
    $region64: #{avit_encoder.1} parent=1 // pred_region
      %s3898 = ssub.s32 256, 256
      %3899 = vsyncadd [#allocation3], %s3898
      %s3900 = sshll.u32 [#allocation2], 4
      %s3901 = int_to_ptr.vmem [resolvable:$true] %s3900
      %3906 = dma.vmem_to_hbm [thread:$0]  %s3901, 256, %s15, [#allocation3], 128, 128, 8
    $region65: #{avit_encoder.1} parent=1 // pred_fallthru
      _
    // Predicated region
    $region66: #{avit_encoder.1} parent=1 // pred_check
      _
    $region67: #{avit_encoder.1} parent=1 // pred_check_branch
      %3908 = sbr.rel (0) target = $region69
    $region68: #{avit_encoder.1} parent=1 // pred_region
      %3909 = dma.done [#allocation3], 256
    $region69: #{avit_encoder.1} parent=1 // pred_fallthru
      _
    %3910 = vsyncpa [#allocation3], 1

</llo_original>
